<compile_context>
chip_gen: v7x
topology: tpu7x:2x2x1
jax: 0.10.0
libtpu: 0.0.40
codegen_flags: <defaults>
</compile_context>

<pallas_src>
import jax
import jax.numpy as jnp
from jax.experimental import pallas as pl
from jax.experimental.pallas import tpu as pltpu


def _round_up(x, m):
    return ((x + m - 1) // m) * m


def _make_kernel(Bt, HW, HW_p, inv_hw):
    def img_encoder_kernel(x_ref, cw_ref, cb_ref, fw_ref, fb_ref, out_ref):
        # x_ref : (Bt*HW_p, C_p) bf16  flattened block of images (spatial x channels)
        # cw_ref: (C_p, Hd_p)    bf16  1x1 pointwise conv weight (transposed, padded)
        # cb_ref: (1, Hd_p)      f32   conv bias (zero in padded cols)
        # fw_ref: (Hd_p, E_p)    bf16  fc weight (transposed, padded)
        # fb_ref: (1, E_p)       f32   fc bias (zero in padded cols)
        # out_ref:(Bt, E_p)      f32   L2-normalized embeddings (lane-dense store)

        # --- backbone final stage: 1x1 conv == bf16 MXU matmul (f32 accum) + bias + ReLU6
        h = jnp.dot(x_ref[...], cw_ref[...],
                    preferred_element_type=jnp.float32)            # [Bt*HW_p, Hd] f32
        h = jnp.clip(h + cb_ref[...], 0.0, 6.0)

        # --- global average pool: XLU sublane sum over spatial, 1/HW scale kept in f32 ---
        hd = h.shape[-1]
        h3 = h.reshape(Bt, HW_p, hd)
        if HW_p != HW:
            # padded spatial rows became nonzero through bias+ReLU6 -> mask them out
            sp = jax.lax.broadcasted_iota(jnp.int32, (1, HW_p, 1), 1)
            h3 = jnp.where(sp < HW, h3, 0.0)
        feat = jnp.sum(h3, axis=1) * inv_hw                         # [Bt, Hd] f32

        # --- fc: Linear(in_features, embed_size)  (bf16 MXU, f32 accum) ---
        z = jnp.dot(feat.astype(fw_ref.dtype), fw_ref[...],
                    preferred_element_type=jnp.float32)             # [Bt, E] f32
        z = z + fb_ref[...]

        # --- L2 normalize (torch: div by norm(p=2, dim=1)); rsqrt -> EUP slot ---
        # Tiny floor only guards rsqrt(0) on zero-padded batch rows; real rows unchanged.
        sumsq = jnp.sum(z * z, axis=-1, keepdims=True)
        inv_l2 = jax.lax.rsqrt(jnp.maximum(sumsq, 1e-30))
        out_ref[...] = (z * inv_l2).astype(out_ref.dtype)

    return img_encoder_kernel


def _vmem_config():
    """Generation-aware (block_budget_bytes, vmem_limit_bytes)."""
    vmem_cap = None
    try:
        info = pltpu.get_tpu_info()
        vmem_cap = getattr(info, "vmem_capacity_bytes", None)
    except Exception:
        vmem_cap = None
    if vmem_cap is None:
        vmem_cap = 64 * 1024 * 1024                 # conservative (v7x per-TC)
    if vmem_cap >= 96 * 1024 * 1024:                # v5e / v6e: 128 MiB physical
        return 80 * 1024 * 1024, 100 * 1024 * 1024
    return 24 * 1024 * 1024, 48 * 1024 * 1024       # v7x: 64 MiB per TC


def _pick_batch_block(B, HW_p, C_p, Hd_p, E_p, budget_bytes):
    """Images per grid step: biggest multiple of 8 under the VMEM budget, with >= 2
    (even) grid steps when the batch allows, so both v7x TensorCores get work."""
    per_img = (2 * HW_p * C_p * 2      # x block (bf16, double-buffered)
               + HW_p * Hd_p * 4       # conv activation (f32)
               + Hd_p * 4              # pooled feature (f32)
               + 2 * E_p * 4)          # output block (f32, double-buffered)
    fixed = (C_p * Hd_p + Hd_p * E_p) * 2 + (Hd_p + E_p) * 4   # single-buffered weights
    cap = max(8, ((budget_bytes - fixed) // max(per_img, 1)) // 8 * 8)
    b8 = _round_up(B, 8)
    if b8 <= 8:
        return 8, 8                    # tiny batch: one full-block step
    steps = max(2, pl.cdiv(b8, cap))
    if steps % 2:
        steps += 1                     # even step count balances the two v7x TCs
    bt = min(cap, _round_up(pl.cdiv(b8, steps), 8))
    return bt, bt * steps


def img_encoder(x_nchw, conv_w, conv_b, fc_w, fc_b):
    """x_nchw: [B, C, H, W] float32 (PyTorch layout). Returns [B, E] float32."""
    B, C, H, W = x_nchw.shape
    HW = H * W
    Hd, E = conv_w.shape[1], fc_w.shape[1]
    C_p = _round_up(C, 128)
    Hd_p, E_p = _round_up(Hd, 128), _round_up(E, 128)
    HW_p = _round_up(HW, 8)

    budget, vmem_limit = _vmem_config()
    Bt, Bp = _pick_batch_block(B, HW_p, C_p, Hd_p, E_p, budget)

    # Plain-JAX glue: NCHW -> NHWC -> flattened (Bp*HW_p, C_p), zero-pad, bf16 matmul operands.
    x = jnp.transpose(x_nchw, (0, 2, 3, 1)).reshape(B, HW, C)
    x = jnp.pad(x, ((0, Bp - B), (0, HW_p - HW), (0, C_p - C)))
    x = x.reshape(Bp * HW_p, C_p).astype(jnp.bfloat16)
    cw = jnp.pad(conv_w, ((0, C_p - C), (0, Hd_p - Hd))).astype(jnp.bfloat16)
    cb = jnp.pad(conv_b.reshape(1, Hd), ((0, 0), (0, Hd_p - Hd))).astype(jnp.float32)
    fw = jnp.pad(fc_w, ((0, Hd_p - Hd), (0, E_p - E))).astype(jnp.bfloat16)
    fb = jnp.pad(fc_b.reshape(1, E), ((0, 0), (0, E_p - E))).astype(jnp.float32)

    kernel = _make_kernel(Bt, HW, HW_p, 1.0 / HW)

    flops = 2 * Bp * HW_p * C_p * Hd_p + 2 * Bp * Hd_p * E_p   # conv + fc (pool is XLU)
    bytes_accessed = (x.size * 2 + cw.size * 2 + fw.size * 2
                      + (cb.size + fb.size) * 4 + Bp * E_p * 4)

    def _run(weight_mode):
        def wspec(shape):
            if weight_mode is None:
                return pl.BlockSpec(shape, lambda b: (0, 0))
            return pl.BlockSpec(shape, lambda b: (0, 0), pipeline_mode=weight_mode)

        return pl.pallas_call(
            kernel,
            out_shape=jax.ShapeDtypeStruct((Bp, E_p), jnp.float32),
            grid_spec=pltpu.PrefetchScalarGridSpec(
                num_scalar_prefetch=0,
                grid=(Bp // Bt,),                      # one block of Bt images per step
                in_specs=[
                    pl.BlockSpec((Bt * HW_p, C_p), lambda b: (b, 0)),
                    wspec((C_p, Hd_p)),
                    wspec((1, Hd_p)),
                    wspec((Hd_p, E_p)),
                    wspec((1, E_p)),
                ],
                out_specs=pl.BlockSpec((Bt, E_p), lambda b: (b, 0)),
            ),
            compiler_params=pltpu.CompilerParams(
                dimension_semantics=("parallel",),     # shards batch blocks across v7x TCs
                vmem_limit_bytes=vmem_limit,
            ),
            cost_estimate=pl.CostEstimate(
                flops=int(flops), transcendentals=int(Bp),
                bytes_accessed=int(bytes_accessed)),
        )(x, cw, cb, fw, fb)

    try:
        # single-buffer the constant-index weight operands (saves one weight copy of VMEM)
        out = _run(pl.Buffered(1))
    except Exception:
        # fallback: default double-buffering if Buffered(1) is unsupported on this version
        out = _run(None)
    return out[:B, :E]


def reference(x_nchw, conv_w, conv_b, fc_w, fc_b):
    B, C, H, W = x_nchw.shape
    x = jnp.transpose(x_nchw, (0, 2, 3, 1)).reshape(B, H * W, C)
    h = jnp.clip(jnp.einsum("bsc,cd->bsd", x, conv_w) + conv_b.reshape(1, 1, -1), 0.0, 6.0)
    feat = jnp.mean(h, axis=1)                         # global average pool
    z = feat @ fc_w + fc_b.reshape(1, -1)
    l2 = jnp.sqrt(jnp.sum(z * z, axis=1, keepdims=True))
    return z / l2


if __name__ == "__main__":
    # Small shapes consistent with the module: batch=2, channels=4, spatial=16,
    # "in_features" (hidden) = 32, embed_size = 32.
    B, C, H, W = 2, 4, 16, 16
    HIDDEN = 32      # stand-in for mobilenet_v2's classifier in_features (1280)
    EMBED = 32       # embed_size

    key = jax.random.PRNGKey(0)
    k_x, k_cw, k_cb, k_fw, k_fb = jax.random.split(key, 5)

    x = jax.random.normal(k_x, (B, C, H, W), dtype=jnp.float32)
    conv_w = 0.1 * jax.random.normal(k_cw, (C, HIDDEN), dtype=jnp.float32)
    conv_b = 0.1 * jax.random.normal(k_cb, (1, HIDDEN), dtype=jnp.float32)
    fc_w = 0.1 * jax.random.normal(k_fw, (HIDDEN, EMBED), dtype=jnp.float32)
    fc_b = 0.1 * jax.random.normal(k_fb, (1, EMBED), dtype=jnp.float32)

    out = img_encoder(x, conv_w, conv_b, fc_w, fc_b)
    out = jax.block_until_ready(out)

    ref = reference(x, conv_w, conv_b, fc_w, fc_b)
    assert out.shape == (B, EMBED)
    # bf16 matmul operands (f32 accumulation) -> compare against the f32 reference with
    # a bf16-appropriate tolerance.
    assert jnp.allclose(out, ref, rtol=2e-2, atol=2e-2)
    # rows are unit-norm (normalization itself is done in f32 inside the kernel)
    assert jnp.allclose(jnp.linalg.norm(out, axis=1), 1.0, atol=1e-3)

    print("KERNEL_OK")
</pallas_src>

<mosaic_0001>
module attributes {stable_mosaic.version = 11 : i64} {
  func.func @img_encoder_kernel(%arg0: i32, %arg1: memref<2048x128xbf16, #tpu.memory_space<vmem>>, %arg2: memref<128x128xbf16, #tpu.memory_space<vmem>>, %arg3: memref<1x128xf32, #tpu.memory_space<vmem>>, %arg4: memref<128x128xbf16, #tpu.memory_space<vmem>>, %arg5: memref<1x128xf32, #tpu.memory_space<vmem>>, %arg6: memref<8x128xf32, #tpu.memory_space<vmem>>) attributes {dimension_semantics = [#tpu.dimension_semantics<parallel>], iteration_bounds = array<i64: 1>, scalar_prefetch = 0 : i64, scratch_operands = 0 : i64, tpu.core_type = #tpu.core_type<tc>, window_params = [{transform_indices = @transform_0, window_bounds = array<i64: 2048, 128>}, {pipeline_mode = #tpu.pipeline_mode<synchronous>, transform_indices = @transform_1, window_bounds = array<i64: 128, 128>}, {pipeline_mode = #tpu.pipeline_mode<synchronous>, transform_indices = @transform_2, window_bounds = array<i64: 1, 128>}, {pipeline_mode = #tpu.pipeline_mode<synchronous>, transform_indices = @transform_3, window_bounds = array<i64: 128, 128>}, {pipeline_mode = #tpu.pipeline_mode<synchronous>, transform_indices = @transform_4, window_bounds = array<i64: 1, 128>}, {transform_indices = @transform_5, window_bounds = array<i64: 8, 128>}]} {
    %c0 = arith.constant 0 : index
    %c0_0 = arith.constant 0 : index
    %0 = vector.load %arg1[%c0, %c0_0] : memref<2048x128xbf16, #tpu.memory_space<vmem>>, vector<2048x128xbf16>
    %c0_1 = arith.constant 0 : index
    %c0_2 = arith.constant 0 : index
    %1 = vector.load %arg2[%c0_1, %c0_2] : memref<128x128xbf16, #tpu.memory_space<vmem>>, vector<128x128xbf16>
    %cst = arith.constant dense<0.000000e+00> : vector<2048x128xf32>
    %2 = tpu.matmul %0, %1, %cst {dimension_numbers = #tpu.dot_dimension_numbers<[1], [0], [0], [1], [0, 0, 1, 1], [], []>} : vector<2048x128xbf16>, vector<128x128xbf16>, vector<2048x128xf32> -> vector<2048x128xf32>
    %c0_3 = arith.constant 0 : index
    %c0_4 = arith.constant 0 : index
    %3 = vector.load %arg3[%c0_3, %c0_4] : memref<1x128xf32, #tpu.memory_space<vmem>>, vector<1x128xf32>
    %4 = vector.broadcast %3 : vector<1x128xf32> to vector<2048x128xf32>
    %5 = arith.addf %2, %4 : vector<2048x128xf32>
    %cst_5 = arith.constant 0.000000e+00 : f32
    %cst_6 = arith.constant 6.000000e+00 : f32
    %6 = vector.broadcast %cst_5 : f32 to vector<2048x128xf32>
    %7 = arith.maximumf %6, %5 : vector<2048x128xf32>
    %8 = vector.broadcast %cst_6 : f32 to vector<2048x128xf32>
    %9 = arith.minimumf %8, %7 : vector<2048x128xf32>
    %10 = vector.shape_cast %9 : vector<2048x128xf32> to vector<8x256x128xf32>
    %cst_7 = arith.constant dense<0.000000e+00> : vector<8x128xf32>
    %11 = vector.multi_reduction <add>, %10, %cst_7 [1] : vector<8x256x128xf32> to vector<8x128xf32>
    %cst_8 = arith.constant 3.906250e-03 : f32
    %12 = vector.broadcast %cst_8 : f32 to vector<8x128xf32>
    %13 = arith.mulf %11, %12 : vector<8x128xf32>
    %14 = arith.truncf %13 : vector<8x128xf32> to vector<8x128xbf16>
    %c0_9 = arith.constant 0 : index
    %c0_10 = arith.constant 0 : index
    %15 = vector.load %arg4[%c0_9, %c0_10] : memref<128x128xbf16, #tpu.memory_space<vmem>>, vector<128x128xbf16>
    %cst_11 = arith.constant dense<0.000000e+00> : vector<8x128xf32>
    %16 = tpu.matmul %14, %15, %cst_11 {dimension_numbers = #tpu.dot_dimension_numbers<[1], [0], [0], [1], [0, 0, 1, 1], [], []>} : vector<8x128xbf16>, vector<128x128xbf16>, vector<8x128xf32> -> vector<8x128xf32>
    %c0_12 = arith.constant 0 : index
    %c0_13 = arith.constant 0 : index
    %17 = vector.load %arg5[%c0_12, %c0_13] : memref<1x128xf32, #tpu.memory_space<vmem>>, vector<1x128xf32>
    %18 = vector.broadcast %17 : vector<1x128xf32> to vector<8x128xf32>
    %19 = arith.addf %16, %18 : vector<8x128xf32>
    %20 = arith.mulf %19, %19 : vector<8x128xf32>
    %cst_14 = arith.constant dense<0.000000e+00> : vector<8xf32>
    %21 = vector.multi_reduction <add>, %20, %cst_14 [1] : vector<8x128xf32> to vector<8xf32>
    %22 = vector.shape_cast %21 : vector<8xf32> to vector<8x1xf32>
    %cst_15 = arith.constant 1.000000e-30 : f32
    %23 = vector.broadcast %cst_15 : f32 to vector<8x1xf32>
    %24 = arith.maximumf %22, %23 : vector<8x1xf32>
    %25 = math.rsqrt %24 : vector<8x1xf32>
    %26 = vector.broadcast %25 : vector<8x1xf32> to vector<8x128xf32>
    %27 = arith.mulf %19, %26 : vector<8x128xf32>
    %c0_16 = arith.constant 0 : index
    %c0_17 = arith.constant 0 : index
    %28 = vector.load %arg6[%c0_16, %c0_17] : memref<8x128xf32, #tpu.memory_space<vmem>>, vector<8x128xf32>
    tpu.vector_store %arg6[%c0_16, %c0_17], %27 {strides = array<i32>} : memref<8x128xf32, #tpu.memory_space<vmem>>, vector<8x128xf32>,
    return
  }
  func.func @transform_0(%arg0: i32) -> (i32, i32) {
    %c0_i32 = arith.constant 0 : i32
    %c0_i32_0 = arith.constant 0 : i32
    return %arg0, %c0_i32 : i32, i32
  }
  func.func @transform_1(%arg0: i32) -> (i32, i32) {
    %c0_i32 = arith.constant 0 : i32
    %c0_i32_0 = arith.constant 0 : i32
    %c0_i32_1 = arith.constant 0 : i32
    return %c0_i32, %c0_i32_0 : i32, i32
  }
  func.func @transform_2(%arg0: i32) -> (i32, i32) {
    %c0_i32 = arith.constant 0 : i32
    %c0_i32_0 = arith.constant 0 : i32
    %c0_i32_1 = arith.constant 0 : i32
    return %c0_i32, %c0_i32_0 : i32, i32
  }
  func.func @transform_3(%arg0: i32) -> (i32, i32) {
    %c0_i32 = arith.constant 0 : i32
    %c0_i32_0 = arith.constant 0 : i32
    %c0_i32_1 = arith.constant 0 : i32
    return %c0_i32, %c0_i32_0 : i32, i32
  }
  func.func @transform_4(%arg0: i32) -> (i32, i32) {
    %c0_i32 = arith.constant 0 : i32
    %c0_i32_0 = arith.constant 0 : i32
    %c0_i32_1 = arith.constant 0 : i32
    return %c0_i32, %c0_i32_0 : i32, i32
  }
  func.func @transform_5(%arg0: i32) -> (i32, i32) {
    %c0_i32 = arith.constant 0 : i32
    %c0_i32_0 = arith.constant 0 : i32
    return %arg0, %c0_i32 : i32, i32
  }
}

module attributes {stable_mosaic.version = 11 : i64} {
  func.func @img_encoder_kernel(%arg0: i32, %arg1: memref<2048x128xbf16, #tpu.memory_space<vmem>>, %arg2: memref<128x128xbf16, #tpu.memory_space<vmem>>, %arg3: memref<1x128xf32, #tpu.memory_space<vmem>>, %arg4: memref<128x128xbf16, #tpu.memory_space<vmem>>, %arg5: memref<1x128xf32, #tpu.memory_space<vmem>>, %arg6: memref<8x128xf32, #tpu.memory_space<vmem>>) attributes {dimension_semantics = [#tpu.dimension_semantics<parallel>], iteration_bounds = array<i64: 1>, scalar_prefetch = 0 : i64, scratch_operands = 0 : i64, tpu.core_type = #tpu.core_type<tc>, window_params = [{transform_indices = @transform_0, window_bounds = array<i64: 2048, 128>}, {pipeline_mode = #tpu.pipeline_mode<synchronous>, transform_indices = @transform_1, window_bounds = array<i64: 128, 128>}, {pipeline_mode = #tpu.pipeline_mode<synchronous>, transform_indices = @transform_2, window_bounds = array<i64: 1, 128>}, {pipeline_mode = #tpu.pipeline_mode<synchronous>, transform_indices = @transform_3, window_bounds = array<i64: 128, 128>}, {pipeline_mode = #tpu.pipeline_mode<synchronous>, transform_indices = @transform_4, window_bounds = array<i64: 1, 128>}, {transform_indices = @transform_5, window_bounds = array<i64: 8, 128>}]} {
    %c0 = arith.constant 0 : index
    %c0_0 = arith.constant 0 : index
    %0 = vector.load %arg1[%c0, %c0_0] : memref<2048x128xbf16, #tpu.memory_space<vmem>>, vector<2048x128xbf16>
    %c0_1 = arith.constant 0 : index
    %c0_2 = arith.constant 0 : index
    %1 = vector.load %arg2[%c0_1, %c0_2] : memref<128x128xbf16, #tpu.memory_space<vmem>>, vector<128x128xbf16>
    %cst = arith.constant dense<0.000000e+00> : vector<2048x128xf32>
    %2 = tpu.matmul %0, %1, %cst {dimension_numbers = #tpu.dot_dimension_numbers<[1], [0], [0], [1], [0, 0, 1, 1], [], []>} : vector<2048x128xbf16>, vector<128x128xbf16>, vector<2048x128xf32> -> vector<2048x128xf32>
    %c0_3 = arith.constant 0 : index
    %c0_4 = arith.constant 0 : index
    %3 = vector.load %arg3[%c0_3, %c0_4] : memref<1x128xf32, #tpu.memory_space<vmem>>, vector<1x128xf32>
    %4 = vector.broadcast %3 : vector<1x128xf32> to vector<2048x128xf32>
    %5 = arith.addf %2, %4 : vector<2048x128xf32>
    %cst_5 = arith.constant 0.000000e+00 : f32
    %cst_6 = arith.constant 6.000000e+00 : f32
    %6 = vector.broadcast %cst_5 : f32 to vector<2048x128xf32>
    %7 = arith.maximumf %6, %5 : vector<2048x128xf32>
    %8 = vector.broadcast %cst_6 : f32 to vector<2048x128xf32>
    %9 = arith.minimumf %8, %7 : vector<2048x128xf32>
    %10 = vector.shape_cast %9 : vector<2048x128xf32> to vector<8x256x128xf32>
    %cst_7 = arith.constant dense<0.000000e+00> : vector<8x128xf32>
    %11 = vector.multi_reduction <add>, %10, %cst_7 [1] : vector<8x256x128xf32> to vector<8x128xf32>
    %cst_8 = arith.constant 3.906250e-03 : f32
    %12 = vector.broadcast %cst_8 : f32 to vector<8x128xf32>
    %13 = arith.mulf %11, %12 : vector<8x128xf32>
    %14 = arith.truncf %13 : vector<8x128xf32> to vector<8x128xbf16>
    %c0_9 = arith.constant 0 : index
    %c0_10 = arith.constant 0 : index
    %15 = vector.load %arg4[%c0_9, %c0_10] : memref<128x128xbf16, #tpu.memory_space<vmem>>, vector<128x128xbf16>
    %cst_11 = arith.constant dense<0.000000e+00> : vector<8x128xf32>
    %16 = tpu.matmul %14, %15, %cst_11 {dimension_numbers = #tpu.dot_dimension_numbers<[1], [0], [0], [1], [0, 0, 1, 1], [], []>} : vector<8x128xbf16>, vector<128x128xbf16>, vector<8x128xf32> -> vector<8x128xf32>
    %c0_12 = arith.constant 0 : index
    %c0_13 = arith.constant 0 : index
    %17 = vector.load %arg5[%c0_12, %c0_13] : memref<1x128xf32, #tpu.memory_space<vmem>>, vector<1x128xf32>
    %18 = vector.broadcast %17 : vector<1x128xf32> to vector<8x128xf32>
    %19 = arith.addf %16, %18 : vector<8x128xf32>
    %20 = arith.mulf %19, %19 : vector<8x128xf32>
    %cst_14 = arith.constant dense<0.000000e+00> : vector<8xf32>
    %21 = vector.multi_reduction <add>, %20, %cst_14 [1] : vector<8x128xf32> to vector<8xf32>
    %22 = vector.shape_cast %21 : vector<8xf32> to vector<8x1xf32>
    %cst_15 = arith.constant 1.000000e-30 : f32
    %23 = vector.broadcast %cst_15 : f32 to vector<8x1xf32>
    %24 = arith.maximumf %22, %23 : vector<8x1xf32>
    %25 = math.rsqrt %24 : vector<8x1xf32>
    %26 = vector.broadcast %25 : vector<8x1xf32> to vector<8x128xf32>
    %27 = arith.mulf %19, %26 : vector<8x128xf32>
    %c0_16 = arith.constant 0 : index
    %c0_17 = arith.constant 0 : index
    %28 = vector.load %arg6[%c0_16, %c0_17] : memref<8x128xf32, #tpu.memory_space<vmem>>, vector<8x128xf32>
    tpu.vector_store %arg6[%c0_16, %c0_17], %27 {strides = array<i32>} : memref<8x128xf32, #tpu.memory_space<vmem>>, vector<8x128xf32>,
    return
  }
  func.func @transform_0(%arg0: i32) -> (i32, i32) {
    %c0_i32 = arith.constant 0 : i32
    %c0_i32_0 = arith.constant 0 : i32
    return %arg0, %c0_i32 : i32, i32
  }
  func.func @transform_1(%arg0: i32) -> (i32, i32) {
    %c0_i32 = arith.constant 0 : i32
    %c0_i32_0 = arith.constant 0 : i32
    %c0_i32_1 = arith.constant 0 : i32
    return %c0_i32, %c0_i32_0 : i32, i32
  }
  func.func @transform_2(%arg0: i32) -> (i32, i32) {
    %c0_i32 = arith.constant 0 : i32
    %c0_i32_0 = arith.constant 0 : i32
    %c0_i32_1 = arith.constant 0 : i32
    return %c0_i32, %c0_i32_0 : i32, i32
  }
  func.func @transform_3(%arg0: i32) -> (i32, i32) {
    %c0_i32 = arith.constant 0 : i32
    %c0_i32_0 = arith.constant 0 : i32
    %c0_i32_1 = arith.constant 0 : i32
    return %c0_i32, %c0_i32_0 : i32, i32
  }
  func.func @transform_4(%arg0: i32) -> (i32, i32) {
    %c0_i32 = arith.constant 0 : i32
    %c0_i32_0 = arith.constant 0 : i32
    %c0_i32_1 = arith.constant 0 : i32
    return %c0_i32, %c0_i32_0 : i32, i32
  }
  func.func @transform_5(%arg0: i32) -> (i32, i32) {
    %c0_i32 = arith.constant 0 : i32
    %c0_i32_0 = arith.constant 0 : i32
    return %arg0, %c0_i32 : i32, i32
  }
}

</mosaic_0001>

<llo_original>
// kernel: tpu_custom_call.1
$region0: #{tpu_custom_call.1}
  #allocation0 [shape = 'u32[]', space=smem, size = 0x4, offset = 0x4, fixed_abs, tag = 'smem constant byte address 0x4 - core index']
  #allocation1 [shape = 'u32[144,128]{1,0:T(1,128)}', space=vmem, size = 0x12000, scoped, tag = 'internal scratch']
  %s0 = inlined_call_operand.hbm [shape: bf16[2048,128], index: 0, kind: input, shape index: {}]
  %s1 = inlined_call_operand.hbm [shape: bf16[128,128], index: 1, kind: input, shape index: {}]
  %s2 = inlined_call_operand.vmem [shape: f32[1,128], index: 2, kind: input, shape index: {}]
  %s3 = inlined_call_operand.hbm [shape: bf16[128,128], index: 3, kind: input, shape index: {}]
  %s4 = inlined_call_operand.vmem [shape: f32[1,128], index: 4, kind: input, shape index: {}]
  %s5 = inlined_call_operand.hbm [shape: f32[8,128], index: 5, kind: output, shape index: {}]
  %s6 = sld [smem:[#allocation0]]
  $region42: #{tpu_custom_call.1} parent=0
    _
  %s8 = ssub.s32 1, %s6
  %s9 = scalar_select 0, %s8, %s6
  $region1: #{tpu_custom_call.1} parent=0
    #allocation2 [shape = 'u8[524288]{0}', space=vmem, size = 0x80000, scoped, tag = 'input window, operand 0, single buffered']
    #allocation3 [shape = 's32[1]{0}', space=sflag, size = 0x4, scoped, tag = 'scoped memory for tpu_custom_call.1']
    #allocation4 [shape = 's32[1]{0}', space=sflag, size = 0x4, scoped, tag = 'scoped memory for tpu_custom_call.1']
    #allocation5 [shape = 'u8[32768]{0}', space=vmem, size = 0x8000, scoped, tag = 'input window, operand 1, single buffered']
    #allocation6 [shape = 's32[1]{0}', space=sflag, size = 0x4, scoped, tag = 'scoped memory for tpu_custom_call.1']
    #allocation7 [shape = 'u8[32768]{0}', space=vmem, size = 0x8000, scoped, tag = 'input window, operand 3, single buffered']
    #allocation8 [shape = 'u8[4096]{0}', space=vmem, size = 0x1000, scoped, tag = 'output window, operand 0, single buffered']
    %10 = vsyncpa [#allocation3], 0
    %11 = vsyncpa [#allocation6], 0
    %12 = vsyncpa [#allocation4], 0
    // Predicated region
    $region2: #{tpu_custom_call.1} parent=1 // pred_check
      _
    $region3: #{tpu_custom_call.1} parent=1 // pred_check_branch
      %14 = sbr.rel (0) target = $region5
    $region4: #{tpu_custom_call.1} parent=1 // pred_region
      %s16 = ssub.s32 16384, 16384
      %17 = vsyncadd [#allocation3], %s16
      %s18 = sshll.u32 [#allocation2], 4
      %s19 = int_to_ptr.vmem [resolvable:$true] %s18
      %24 = dma.hbm_to_vmem [thread:$0]  %s0, 16384, %s19, [#allocation3], 64, 64, 4
    $region5: #{tpu_custom_call.1} parent=1 // pred_fallthru
      _
    // Predicated region
    $region6: #{tpu_custom_call.1} parent=1 // pred_check
      _
    $region7: #{tpu_custom_call.1} parent=1 // pred_check_branch
      %26 = sbr.rel (0) target = $region9
    $region8: #{tpu_custom_call.1} parent=1 // pred_region
      %s28 = ssub.s32 1024, 1024
      %29 = vsyncadd [#allocation6], %s28
      %s30 = sshll.u32 [#allocation5], 4
      %s31 = int_to_ptr.vmem [resolvable:$true] %s30
      %36 = dma.hbm_to_vmem [thread:$0]  %s1, 1024, %s31, [#allocation6], 64, 64, 4
    $region9: #{tpu_custom_call.1} parent=1 // pred_fallthru
      _
    // Predicated region
    $region10: #{tpu_custom_call.1} parent=1 // pred_check
      _
    $region11: #{tpu_custom_call.1} parent=1 // pred_check_branch
      %38 = sbr.rel (0) target = $region13
    $region12: #{tpu_custom_call.1} parent=1 // pred_region
      _
    $region13: #{tpu_custom_call.1} parent=1 // pred_fallthru
      _
    // Predicated region
    $region14: #{tpu_custom_call.1} parent=1 // pred_check
      _
    $region15: #{tpu_custom_call.1} parent=1 // pred_check_branch
      %40 = sbr.rel (0) target = $region17
    $region16: #{tpu_custom_call.1} parent=1 // pred_region
      %s42 = ssub.s32 1024, 1024
      %43 = vsyncadd [#allocation6], %s42
      %s44 = sshll.u32 [#allocation7], 4
      %s45 = int_to_ptr.vmem [resolvable:$true] %s44
      %50 = dma.hbm_to_vmem [thread:$0]  %s3, 1024, %s45, [#allocation6], 64, 64, 4
    $region17: #{tpu_custom_call.1} parent=1 // pred_fallthru
      _
    // Predicated region
    $region18: #{tpu_custom_call.1} parent=1 // pred_check
      _
    $region19: #{tpu_custom_call.1} parent=1 // pred_check_branch
      %52 = sbr.rel (0) target = $region21
    $region20: #{tpu_custom_call.1} parent=1 // pred_region
      _
    $region21: #{tpu_custom_call.1} parent=1 // pred_fallthru
      _
    // Predicated region
    $region22: #{tpu_custom_call.1} parent=1 // pred_check
      _
    $region23: #{tpu_custom_call.1} parent=1 // pred_check_branch
      %54 = sbr.rel (0) target = $region25
    $region24: #{tpu_custom_call.1} parent=1 // pred_region
      %55 = dma.done [#allocation3], 16384
    $region25: #{tpu_custom_call.1} parent=1 // pred_fallthru
      _
    // Predicated region
    $region26: #{tpu_custom_call.1} parent=1 // pred_check
      _
    $region27: #{tpu_custom_call.1} parent=1 // pred_check_branch
      %57 = sbr.rel (0) target = $region29
    $region28: #{tpu_custom_call.1} parent=1 // pred_region
      %58 = dma.done [#allocation6], 1024
    $region29: #{tpu_custom_call.1} parent=1 // pred_fallthru
      _
    // Predicated region
    $region30: #{tpu_custom_call.1} parent=1 // pred_check
      _
    $region31: #{tpu_custom_call.1} parent=1 // pred_check_branch
      %60 = sbr.rel (0) target = $region33
    $region32: #{tpu_custom_call.1} parent=1 // pred_region
      %61 = dma.done [#allocation6], 1024
    $region33: #{tpu_custom_call.1} parent=1 // pred_fallthru
      _
    %v63 = vld [vmem:[#allocation2] sm:$0xf]
    %v64 = vld [vmem:[#allocation2 + $0x4] sm:$0xf]
    %v65 = vld [vmem:[#allocation2 + $0x8] sm:$0xf]
    %v66 = vld [vmem:[#allocation2 + $0xc] sm:$0xf]
    %v67 = vld [vmem:[#allocation2 + $0x10] sm:$0xf]
    %v68 = vld [vmem:[#allocation2 + $0x14] sm:$0xf]
    %v69 = vld [vmem:[#allocation2 + $0x18] sm:$0xf]
    %v70 = vld [vmem:[#allocation2 + $0x1c] sm:$0xf]
    %v71 = vld [vmem:[#allocation2 + $0x20] sm:$0xf]
    %v72 = vld [vmem:[#allocation2 + $0x24] sm:$0xf]
    %v73 = vld [vmem:[#allocation2 + $0x28] sm:$0xf]
    %v74 = vld [vmem:[#allocation2 + $0x2c] sm:$0xf]
    %v75 = vld [vmem:[#allocation2 + $0x30] sm:$0xf]
    %v76 = vld [vmem:[#allocation2 + $0x34] sm:$0xf]
    %v77 = vld [vmem:[#allocation2 + $0x38] sm:$0xf]
    %v78 = vld [vmem:[#allocation2 + $0x3c] sm:$0xf]
    %v79 = vld [vmem:[#allocation2 + $0x40] sm:$0xf]
    %v80 = vld [vmem:[#allocation2 + $0x44] sm:$0xf]
    %v81 = vld [vmem:[#allocation2 + $0x48] sm:$0xf]
    %v82 = vld [vmem:[#allocation2 + $0x4c] sm:$0xf]
    %v83 = vld [vmem:[#allocation2 + $0x50] sm:$0xf]
    %v84 = vld [vmem:[#allocation2 + $0x54] sm:$0xf]
    %v85 = vld [vmem:[#allocation2 + $0x58] sm:$0xf]
    %v86 = vld [vmem:[#allocation2 + $0x5c] sm:$0xf]
    %v87 = vld [vmem:[#allocation2 + $0x60] sm:$0xf]
    %v88 = vld [vmem:[#allocation2 + $0x64] sm:$0xf]
    %v89 = vld [vmem:[#allocation2 + $0x68] sm:$0xf]
    %v90 = vld [vmem:[#allocation2 + $0x6c] sm:$0xf]
    %v91 = vld [vmem:[#allocation2 + $0x70] sm:$0xf]
    %v92 = vld [vmem:[#allocation2 + $0x74] sm:$0xf]
    %v93 = vld [vmem:[#allocation2 + $0x78] sm:$0xf]
    %v94 = vld [vmem:[#allocation2 + $0x7c] sm:$0xf]
    %v95 = vld [vmem:[#allocation2 + $0x80] sm:$0xf]
    %v96 = vld [vmem:[#allocation2 + $0x84] sm:$0xf]
    %v97 = vld [vmem:[#allocation2 + $0x88] sm:$0xf]
    %v98 = vld [vmem:[#allocation2 + $0x8c] sm:$0xf]
    %v99 = vld [vmem:[#allocation2 + $0x90] sm:$0xf]
    %v100 = vld [vmem:[#allocation2 + $0x94] sm:$0xf]
    %v101 = vld [vmem:[#allocation2 + $0x98] sm:$0xf]
    %v102 = vld [vmem:[#allocation2 + $0x9c] sm:$0xf]
    %v103 = vld [vmem:[#allocation2 + $0xa0] sm:$0xf]
    %v104 = vld [vmem:[#allocation2 + $0xa4] sm:$0xf]
    %v105 = vld [vmem:[#allocation2 + $0xa8] sm:$0xf]
    %v106 = vld [vmem:[#allocation2 + $0xac] sm:$0xf]
    %v107 = vld [vmem:[#allocation2 + $0xb0] sm:$0xf]
    %v108 = vld [vmem:[#allocation2 + $0xb4] sm:$0xf]
    %v109 = vld [vmem:[#allocation2 + $0xb8] sm:$0xf]
    %v110 = vld [vmem:[#allocation2 + $0xbc] sm:$0xf]
    %v111 = vld [vmem:[#allocation2 + $0xc0] sm:$0xf]
    %v112 = vld [vmem:[#allocation2 + $0xc4] sm:$0xf]
    %v113 = vld [vmem:[#allocation2 + $0xc8] sm:$0xf]
    %v114 = vld [vmem:[#allocation2 + $0xcc] sm:$0xf]
    %v115 = vld [vmem:[#allocation2 + $0xd0] sm:$0xf]
    %v116 = vld [vmem:[#allocation2 + $0xd4] sm:$0xf]
    %v117 = vld [vmem:[#allocation2 + $0xd8] sm:$0xf]
    %v118 = vld [vmem:[#allocation2 + $0xdc] sm:$0xf]
    %v119 = vld [vmem:[#allocation2 + $0xe0] sm:$0xf]
    %v120 = vld [vmem:[#allocation2 + $0xe4] sm:$0xf]
    %v121 = vld [vmem:[#allocation2 + $0xe8] sm:$0xf]
    %v122 = vld [vmem:[#allocation2 + $0xec] sm:$0xf]
    %v123 = vld [vmem:[#allocation2 + $0xf0] sm:$0xf]
    %v124 = vld [vmem:[#allocation2 + $0xf4] sm:$0xf]
    %v125 = vld [vmem:[#allocation2 + $0xf8] sm:$0xf]
    %v126 = vld [vmem:[#allocation2 + $0xfc] sm:$0xf]
    %v127 = vld [vmem:[#allocation2 + $0x100] sm:$0xf]
    %v128 = vld [vmem:[#allocation2 + $0x104] sm:$0xf]
    %v129 = vld [vmem:[#allocation2 + $0x108] sm:$0xf]
    %v130 = vld [vmem:[#allocation2 + $0x10c] sm:$0xf]
    %v131 = vld [vmem:[#allocation2 + $0x110] sm:$0xf]
    %v132 = vld [vmem:[#allocation2 + $0x114] sm:$0xf]
    %v133 = vld [vmem:[#allocation2 + $0x118] sm:$0xf]
    %v134 = vld [vmem:[#allocation2 + $0x11c] sm:$0xf]
    %v135 = vld [vmem:[#allocation2 + $0x120] sm:$0xf]
    %v136 = vld [vmem:[#allocation2 + $0x124] sm:$0xf]
    %v137 = vld [vmem:[#allocation2 + $0x128] sm:$0xf]
    %v138 = vld [vmem:[#allocation2 + $0x12c] sm:$0xf]
    %v139 = vld [vmem:[#allocation2 + $0x130] sm:$0xf]
    %v140 = vld [vmem:[#allocation2 + $0x134] sm:$0xf]
    %v141 = vld [vmem:[#allocation2 + $0x138] sm:$0xf]
    %v142 = vld [vmem:[#allocation2 + $0x13c] sm:$0xf]
    %v143 = vld [vmem:[#allocation2 + $0x140] sm:$0xf]
    %v144 = vld [vmem:[#allocation2 + $0x144] sm:$0xf]
    %v145 = vld [vmem:[#allocation2 + $0x148] sm:$0xf]
    %v146 = vld [vmem:[#allocation2 + $0x14c] sm:$0xf]
    %v147 = vld [vmem:[#allocation2 + $0x150] sm:$0xf]
    %v148 = vld [vmem:[#allocation2 + $0x154] sm:$0xf]
    %v149 = vld [vmem:[#allocation2 + $0x158] sm:$0xf]
    %v150 = vld [vmem:[#allocation2 + $0x15c] sm:$0xf]
    %v151 = vld [vmem:[#allocation2 + $0x160] sm:$0xf]
    %v152 = vld [vmem:[#allocation2 + $0x164] sm:$0xf]
    %v153 = vld [vmem:[#allocation2 + $0x168] sm:$0xf]
    %v154 = vld [vmem:[#allocation2 + $0x16c] sm:$0xf]
    %v155 = vld [vmem:[#allocation2 + $0x170] sm:$0xf]
    %v156 = vld [vmem:[#allocation2 + $0x174] sm:$0xf]
    %v157 = vld [vmem:[#allocation2 + $0x178] sm:$0xf]
    %v158 = vld [vmem:[#allocation2 + $0x17c] sm:$0xf]
    %v159 = vld [vmem:[#allocation2 + $0x180] sm:$0xf]
    %v160 = vld [vmem:[#allocation2 + $0x184] sm:$0xf]
    %v161 = vld [vmem:[#allocation2 + $0x188] sm:$0xf]
    %v162 = vld [vmem:[#allocation2 + $0x18c] sm:$0xf]
    %v163 = vld [vmem:[#allocation2 + $0x190] sm:$0xf]
    %v164 = vld [vmem:[#allocation2 + $0x194] sm:$0xf]
    %v165 = vld [vmem:[#allocation2 + $0x198] sm:$0xf]
    %v166 = vld [vmem:[#allocation2 + $0x19c] sm:$0xf]
    %v167 = vld [vmem:[#allocation2 + $0x1a0] sm:$0xf]
    %v168 = vld [vmem:[#allocation2 + $0x1a4] sm:$0xf]
    %v169 = vld [vmem:[#allocation2 + $0x1a8] sm:$0xf]
    %v170 = vld [vmem:[#allocation2 + $0x1ac] sm:$0xf]
    %v171 = vld [vmem:[#allocation2 + $0x1b0] sm:$0xf]
    %v172 = vld [vmem:[#allocation2 + $0x1b4] sm:$0xf]
    %v173 = vld [vmem:[#allocation2 + $0x1b8] sm:$0xf]
    %v174 = vld [vmem:[#allocation2 + $0x1bc] sm:$0xf]
    %v175 = vld [vmem:[#allocation2 + $0x1c0] sm:$0xf]
    %v176 = vld [vmem:[#allocation2 + $0x1c4] sm:$0xf]
    %v177 = vld [vmem:[#allocation2 + $0x1c8] sm:$0xf]
    %v178 = vld [vmem:[#allocation2 + $0x1cc] sm:$0xf]
    %v179 = vld [vmem:[#allocation2 + $0x1d0] sm:$0xf]
    %v180 = vld [vmem:[#allocation2 + $0x1d4] sm:$0xf]
    %v181 = vld [vmem:[#allocation2 + $0x1d8] sm:$0xf]
    %v182 = vld [vmem:[#allocation2 + $0x1dc] sm:$0xf]
    %v183 = vld [vmem:[#allocation2 + $0x1e0] sm:$0xf]
    %v184 = vld [vmem:[#allocation2 + $0x1e4] sm:$0xf]
    %v185 = vld [vmem:[#allocation2 + $0x1e8] sm:$0xf]
    %v186 = vld [vmem:[#allocation2 + $0x1ec] sm:$0xf]
    %v187 = vld [vmem:[#allocation2 + $0x1f0] sm:$0xf]
    %v188 = vld [vmem:[#allocation2 + $0x1f4] sm:$0xf]
    %v189 = vld [vmem:[#allocation2 + $0x1f8] sm:$0xf]
    %v190 = vld [vmem:[#allocation2 + $0x1fc] sm:$0xf]
    %v191 = vld [vmem:[#allocation2 + $0x200] sm:$0xf]
    %v192 = vld [vmem:[#allocation2 + $0x204] sm:$0xf]
    %v193 = vld [vmem:[#allocation2 + $0x208] sm:$0xf]
    %v194 = vld [vmem:[#allocation2 + $0x20c] sm:$0xf]
    %v195 = vld [vmem:[#allocation2 + $0x210] sm:$0xf]
    %v196 = vld [vmem:[#allocation2 + $0x214] sm:$0xf]
    %v197 = vld [vmem:[#allocation2 + $0x218] sm:$0xf]
    %v198 = vld [vmem:[#allocation2 + $0x21c] sm:$0xf]
    %v199 = vld [vmem:[#allocation2 + $0x220] sm:$0xf]
    %v200 = vld [vmem:[#allocation2 + $0x224] sm:$0xf]
    %v201 = vld [vmem:[#allocation2 + $0x228] sm:$0xf]
    %v202 = vld [vmem:[#allocation2 + $0x22c] sm:$0xf]
    %v203 = vld [vmem:[#allocation2 + $0x230] sm:$0xf]
    %v204 = vld [vmem:[#allocation2 + $0x234] sm:$0xf]
    %v205 = vld [vmem:[#allocation2 + $0x238] sm:$0xf]
    %v206 = vld [vmem:[#allocation2 + $0x23c] sm:$0xf]
    %v207 = vld [vmem:[#allocation2 + $0x240] sm:$0xf]
    %v208 = vld [vmem:[#allocation2 + $0x244] sm:$0xf]
    %v209 = vld [vmem:[#allocation2 + $0x248] sm:$0xf]
    %v210 = vld [vmem:[#allocation2 + $0x24c] sm:$0xf]
    %v211 = vld [vmem:[#allocation2 + $0x250] sm:$0xf]
    %v212 = vld [vmem:[#allocation2 + $0x254] sm:$0xf]
    %v213 = vld [vmem:[#allocation2 + $0x258] sm:$0xf]
    %v214 = vld [vmem:[#allocation2 + $0x25c] sm:$0xf]
    %v215 = vld [vmem:[#allocation2 + $0x260] sm:$0xf]
    %v216 = vld [vmem:[#allocation2 + $0x264] sm:$0xf]
    %v217 = vld [vmem:[#allocation2 + $0x268] sm:$0xf]
    %v218 = vld [vmem:[#allocation2 + $0x26c] sm:$0xf]
    %v219 = vld [vmem:[#allocation2 + $0x270] sm:$0xf]
    %v220 = vld [vmem:[#allocation2 + $0x274] sm:$0xf]
    %v221 = vld [vmem:[#allocation2 + $0x278] sm:$0xf]
    %v222 = vld [vmem:[#allocation2 + $0x27c] sm:$0xf]
    %v223 = vld [vmem:[#allocation2 + $0x280] sm:$0xf]
    %v224 = vld [vmem:[#allocation2 + $0x284] sm:$0xf]
    %v225 = vld [vmem:[#allocation2 + $0x288] sm:$0xf]
    %v226 = vld [vmem:[#allocation2 + $0x28c] sm:$0xf]
    %v227 = vld [vmem:[#allocation2 + $0x290] sm:$0xf]
    %v228 = vld [vmem:[#allocation2 + $0x294] sm:$0xf]
    %v229 = vld [vmem:[#allocation2 + $0x298] sm:$0xf]
    %v230 = vld [vmem:[#allocation2 + $0x29c] sm:$0xf]
    %v231 = vld [vmem:[#allocation2 + $0x2a0] sm:$0xf]
    %v232 = vld [vmem:[#allocation2 + $0x2a4] sm:$0xf]
    %v233 = vld [vmem:[#allocation2 + $0x2a8] sm:$0xf]
    %v234 = vld [vmem:[#allocation2 + $0x2ac] sm:$0xf]
    %v235 = vld [vmem:[#allocation2 + $0x2b0] sm:$0xf]
    %v236 = vld [vmem:[#allocation2 + $0x2b4] sm:$0xf]
    %v237 = vld [vmem:[#allocation2 + $0x2b8] sm:$0xf]
    %v238 = vld [vmem:[#allocation2 + $0x2bc] sm:$0xf]
    %v239 = vld [vmem:[#allocation2 + $0x2c0] sm:$0xf]
    %v240 = vld [vmem:[#allocation2 + $0x2c4] sm:$0xf]
    %v241 = vld [vmem:[#allocation2 + $0x2c8] sm:$0xf]
    %v242 = vld [vmem:[#allocation2 + $0x2cc] sm:$0xf]
    %v243 = vld [vmem:[#allocation2 + $0x2d0] sm:$0xf]
    %v244 = vld [vmem:[#allocation2 + $0x2d4] sm:$0xf]
    %v245 = vld [vmem:[#allocation2 + $0x2d8] sm:$0xf]
    %v246 = vld [vmem:[#allocation2 + $0x2dc] sm:$0xf]
    %v247 = vld [vmem:[#allocation2 + $0x2e0] sm:$0xf]
    %v248 = vld [vmem:[#allocation2 + $0x2e4] sm:$0xf]
    %v249 = vld [vmem:[#allocation2 + $0x2e8] sm:$0xf]
    %v250 = vld [vmem:[#allocation2 + $0x2ec] sm:$0xf]
    %v251 = vld [vmem:[#allocation2 + $0x2f0] sm:$0xf]
    %v252 = vld [vmem:[#allocation2 + $0x2f4] sm:$0xf]
    %v253 = vld [vmem:[#allocation2 + $0x2f8] sm:$0xf]
    %v254 = vld [vmem:[#allocation2 + $0x2fc] sm:$0xf]
    %v255 = vld [vmem:[#allocation2 + $0x300] sm:$0xf]
    %v256 = vld [vmem:[#allocation2 + $0x304] sm:$0xf]
    %v257 = vld [vmem:[#allocation2 + $0x308] sm:$0xf]
    %v258 = vld [vmem:[#allocation2 + $0x30c] sm:$0xf]
    %v259 = vld [vmem:[#allocation2 + $0x310] sm:$0xf]
    %v260 = vld [vmem:[#allocation2 + $0x314] sm:$0xf]
    %v261 = vld [vmem:[#allocation2 + $0x318] sm:$0xf]
    %v262 = vld [vmem:[#allocation2 + $0x31c] sm:$0xf]
    %v263 = vld [vmem:[#allocation2 + $0x320] sm:$0xf]
    %v264 = vld [vmem:[#allocation2 + $0x324] sm:$0xf]
    %v265 = vld [vmem:[#allocation2 + $0x328] sm:$0xf]
    %v266 = vld [vmem:[#allocation2 + $0x32c] sm:$0xf]
    %v267 = vld [vmem:[#allocation2 + $0x330] sm:$0xf]
    %v268 = vld [vmem:[#allocation2 + $0x334] sm:$0xf]
    %v269 = vld [vmem:[#allocation2 + $0x338] sm:$0xf]
    %v270 = vld [vmem:[#allocation2 + $0x33c] sm:$0xf]
    %v271 = vld [vmem:[#allocation2 + $0x340] sm:$0xf]
    %v272 = vld [vmem:[#allocation2 + $0x344] sm:$0xf]
    %v273 = vld [vmem:[#allocation2 + $0x348] sm:$0xf]
    %v274 = vld [vmem:[#allocation2 + $0x34c] sm:$0xf]
    %v275 = vld [vmem:[#allocation2 + $0x350] sm:$0xf]
    %v276 = vld [vmem:[#allocation2 + $0x354] sm:$0xf]
    %v277 = vld [vmem:[#allocation2 + $0x358] sm:$0xf]
    %v278 = vld [vmem:[#allocation2 + $0x35c] sm:$0xf]
    %v279 = vld [vmem:[#allocation2 + $0x360] sm:$0xf]
    %v280 = vld [vmem:[#allocation2 + $0x364] sm:$0xf]
    %v281 = vld [vmem:[#allocation2 + $0x368] sm:$0xf]
    %v282 = vld [vmem:[#allocation2 + $0x36c] sm:$0xf]
    %v283 = vld [vmem:[#allocation2 + $0x370] sm:$0xf]
    %v284 = vld [vmem:[#allocation2 + $0x374] sm:$0xf]
    %v285 = vld [vmem:[#allocation2 + $0x378] sm:$0xf]
    %v286 = vld [vmem:[#allocation2 + $0x37c] sm:$0xf]
    %v287 = vld [vmem:[#allocation2 + $0x380] sm:$0xf]
    %v288 = vld [vmem:[#allocation2 + $0x384] sm:$0xf]
    %v289 = vld [vmem:[#allocation2 + $0x388] sm:$0xf]
    %v290 = vld [vmem:[#allocation2 + $0x38c] sm:$0xf]
    %v291 = vld [vmem:[#allocation2 + $0x390] sm:$0xf]
    %v292 = vld [vmem:[#allocation2 + $0x394] sm:$0xf]
    %v293 = vld [vmem:[#allocation2 + $0x398] sm:$0xf]
    %v294 = vld [vmem:[#allocation2 + $0x39c] sm:$0xf]
    %v295 = vld [vmem:[#allocation2 + $0x3a0] sm:$0xf]
    %v296 = vld [vmem:[#allocation2 + $0x3a4] sm:$0xf]
    %v297 = vld [vmem:[#allocation2 + $0x3a8] sm:$0xf]
    %v298 = vld [vmem:[#allocation2 + $0x3ac] sm:$0xf]
    %v299 = vld [vmem:[#allocation2 + $0x3b0] sm:$0xf]
    %v300 = vld [vmem:[#allocation2 + $0x3b4] sm:$0xf]
    %v301 = vld [vmem:[#allocation2 + $0x3b8] sm:$0xf]
    %v302 = vld [vmem:[#allocation2 + $0x3bc] sm:$0xf]
    %v303 = vld [vmem:[#allocation2 + $0x3c0] sm:$0xf]
    %v304 = vld [vmem:[#allocation2 + $0x3c4] sm:$0xf]
    %v305 = vld [vmem:[#allocation2 + $0x3c8] sm:$0xf]
    %v306 = vld [vmem:[#allocation2 + $0x3cc] sm:$0xf]
    %v307 = vld [vmem:[#allocation2 + $0x3d0] sm:$0xf]
    %v308 = vld [vmem:[#allocation2 + $0x3d4] sm:$0xf]
    %v309 = vld [vmem:[#allocation2 + $0x3d8] sm:$0xf]
    %v310 = vld [vmem:[#allocation2 + $0x3dc] sm:$0xf]
    %v311 = vld [vmem:[#allocation2 + $0x3e0] sm:$0xf]
    %v312 = vld [vmem:[#allocation2 + $0x3e4] sm:$0xf]
    %v313 = vld [vmem:[#allocation2 + $0x3e8] sm:$0xf]
    %v314 = vld [vmem:[#allocation2 + $0x3ec] sm:$0xf]
    %v315 = vld [vmem:[#allocation2 + $0x3f0] sm:$0xf]
    %v316 = vld [vmem:[#allocation2 + $0x3f4] sm:$0xf]
    %v317 = vld [vmem:[#allocation2 + $0x3f8] sm:$0xf]
    %v318 = vld [vmem:[#allocation2 + $0x3fc] sm:$0xf]
    %v319 = vld [vmem:[#allocation5] sm:$0xf]
    %v320 = vld [vmem:[#allocation5 + $0x4] sm:$0xf]
    %v321 = vld [vmem:[#allocation5 + $0x8] sm:$0xf]
    %v322 = vld [vmem:[#allocation5 + $0xc] sm:$0xf]
    %v323 = vld [vmem:[#allocation5 + $0x10] sm:$0xf]
    %v324 = vld [vmem:[#allocation5 + $0x14] sm:$0xf]
    %v325 = vld [vmem:[#allocation5 + $0x18] sm:$0xf]
    %v326 = vld [vmem:[#allocation5 + $0x1c] sm:$0xf]
    %v327 = vld [vmem:[#allocation5 + $0x20] sm:$0xf]
    %v328 = vld [vmem:[#allocation5 + $0x24] sm:$0xf]
    %v329 = vld [vmem:[#allocation5 + $0x28] sm:$0xf]
    %v330 = vld [vmem:[#allocation5 + $0x2c] sm:$0xf]
    %v331 = vld [vmem:[#allocation5 + $0x30] sm:$0xf]
    %v332 = vld [vmem:[#allocation5 + $0x34] sm:$0xf]
    %v333 = vld [vmem:[#allocation5 + $0x38] sm:$0xf]
    %v334 = vld [vmem:[#allocation5 + $0x3c] sm:$0xf]
    %v335 = vld [vmem:[%s2] sm:$0x1]
    %v337 = vlaneseq
    %v338 = vshrl.u32 %v337, 7
    %v339 = vsub.s32 0, %v338
    %v340 = vrot.slane %v335, %v339
    %v598 = vunpack.c.l.b16 %v63
    %v599 = vunpack.c.l.b16 %v64
    %v600 = vunpack.c.l.b16 %v65
    %v601 = vunpack.c.l.b16 %v66
    %v602 = vunpack.c.l.b16 %v67
    %v603 = vunpack.c.l.b16 %v68
    %v604 = vunpack.c.l.b16 %v69
    %v605 = vunpack.c.l.b16 %v70
    %v606 = vunpack.c.l.b16 %v71
    %v607 = vunpack.c.l.b16 %v72
    %v608 = vunpack.c.l.b16 %v73
    %v609 = vunpack.c.l.b16 %v74
    %v610 = vunpack.c.l.b16 %v75
    %v611 = vunpack.c.l.b16 %v76
    %v612 = vunpack.c.l.b16 %v77
    %v613 = vunpack.c.l.b16 %v78
    %v614 = vunpack.c.l.b16 %v79
    %v615 = vunpack.c.l.b16 %v80
    %v616 = vunpack.c.l.b16 %v81
    %v617 = vunpack.c.l.b16 %v82
    %v618 = vunpack.c.l.b16 %v83
    %v619 = vunpack.c.l.b16 %v84
    %v620 = vunpack.c.l.b16 %v85
    %v621 = vunpack.c.l.b16 %v86
    %v622 = vunpack.c.l.b16 %v87
    %v623 = vunpack.c.l.b16 %v88
    %v624 = vunpack.c.l.b16 %v89
    %v625 = vunpack.c.l.b16 %v90
    %v626 = vunpack.c.l.b16 %v91
    %v627 = vunpack.c.l.b16 %v92
    %v628 = vunpack.c.l.b16 %v93
    %v629 = vunpack.c.l.b16 %v94
    %v630 = vunpack.c.l.b16 %v95
    %v631 = vunpack.c.l.b16 %v96
    %v632 = vunpack.c.l.b16 %v97
    %v633 = vunpack.c.l.b16 %v98
    %v634 = vunpack.c.l.b16 %v99
    %v635 = vunpack.c.l.b16 %v100
    %v636 = vunpack.c.l.b16 %v101
    %v637 = vunpack.c.l.b16 %v102
    %v638 = vunpack.c.l.b16 %v103
    %v639 = vunpack.c.l.b16 %v104
    %v640 = vunpack.c.l.b16 %v105
    %v641 = vunpack.c.l.b16 %v106
    %v642 = vunpack.c.l.b16 %v107
    %v643 = vunpack.c.l.b16 %v108
    %v644 = vunpack.c.l.b16 %v109
    %v645 = vunpack.c.l.b16 %v110
    %v646 = vunpack.c.l.b16 %v111
    %v647 = vunpack.c.l.b16 %v112
    %v648 = vunpack.c.l.b16 %v113
    %v649 = vunpack.c.l.b16 %v114
    %v650 = vunpack.c.l.b16 %v115
    %v651 = vunpack.c.l.b16 %v116
    %v652 = vunpack.c.l.b16 %v117
    %v653 = vunpack.c.l.b16 %v118
    %v654 = vunpack.c.l.b16 %v119
    %v655 = vunpack.c.l.b16 %v120
    %v656 = vunpack.c.l.b16 %v121
    %v657 = vunpack.c.l.b16 %v122
    %v658 = vunpack.c.l.b16 %v123
    %v659 = vunpack.c.l.b16 %v124
    %v660 = vunpack.c.l.b16 %v125
    %v661 = vunpack.c.l.b16 %v126
    %v662 = vunpack.c.l.b16 %v127
    %v663 = vunpack.c.l.b16 %v128
    %v664 = vunpack.c.l.b16 %v129
    %v665 = vunpack.c.l.b16 %v130
    %v666 = vunpack.c.l.b16 %v131
    %v667 = vunpack.c.l.b16 %v132
    %v668 = vunpack.c.l.b16 %v133
    %v669 = vunpack.c.l.b16 %v134
    %v670 = vunpack.c.l.b16 %v135
    %v671 = vunpack.c.l.b16 %v136
    %v672 = vunpack.c.l.b16 %v137
    %v673 = vunpack.c.l.b16 %v138
    %v674 = vunpack.c.l.b16 %v139
    %v675 = vunpack.c.l.b16 %v140
    %v676 = vunpack.c.l.b16 %v141
    %v677 = vunpack.c.l.b16 %v142
    %v678 = vunpack.c.l.b16 %v143
    %v679 = vunpack.c.l.b16 %v144
    %v680 = vunpack.c.l.b16 %v145
    %v681 = vunpack.c.l.b16 %v146
    %v682 = vunpack.c.l.b16 %v147
    %v683 = vunpack.c.l.b16 %v148
    %v684 = vunpack.c.l.b16 %v149
    %v685 = vunpack.c.l.b16 %v150
    %v686 = vunpack.c.l.b16 %v151
    %v687 = vunpack.c.l.b16 %v152
    %v688 = vunpack.c.l.b16 %v153
    %v689 = vunpack.c.l.b16 %v154
    %v690 = vunpack.c.l.b16 %v155
    %v691 = vunpack.c.l.b16 %v156
    %v692 = vunpack.c.l.b16 %v157
    %v693 = vunpack.c.l.b16 %v158
    %v694 = vunpack.c.l.b16 %v159
    %v695 = vunpack.c.l.b16 %v160
    %v696 = vunpack.c.l.b16 %v161
    %v697 = vunpack.c.l.b16 %v162
    %v698 = vunpack.c.l.b16 %v163
    %v699 = vunpack.c.l.b16 %v164
    %v700 = vunpack.c.l.b16 %v165
    %v701 = vunpack.c.l.b16 %v166
    %v702 = vunpack.c.l.b16 %v167
    %v703 = vunpack.c.l.b16 %v168
    %v704 = vunpack.c.l.b16 %v169
    %v705 = vunpack.c.l.b16 %v170
    %v706 = vunpack.c.l.b16 %v171
    %v707 = vunpack.c.l.b16 %v172
    %v708 = vunpack.c.l.b16 %v173
    %v709 = vunpack.c.l.b16 %v174
    %v710 = vunpack.c.l.b16 %v175
    %v711 = vunpack.c.l.b16 %v176
    %v712 = vunpack.c.l.b16 %v177
    %v713 = vunpack.c.l.b16 %v178
    %v714 = vunpack.c.l.b16 %v179
    %v715 = vunpack.c.l.b16 %v180
    %v716 = vunpack.c.l.b16 %v181
    %v717 = vunpack.c.l.b16 %v182
    %v718 = vunpack.c.l.b16 %v183
    %v719 = vunpack.c.l.b16 %v184
    %v720 = vunpack.c.l.b16 %v185
    %v721 = vunpack.c.l.b16 %v186
    %v722 = vunpack.c.l.b16 %v187
    %v723 = vunpack.c.l.b16 %v188
    %v724 = vunpack.c.l.b16 %v189
    %v725 = vunpack.c.l.b16 %v190
    %v726 = vunpack.c.l.b16 %v191
    %v727 = vunpack.c.l.b16 %v192
    %v728 = vunpack.c.l.b16 %v193
    %v729 = vunpack.c.l.b16 %v194
    %v730 = vunpack.c.l.b16 %v195
    %v731 = vunpack.c.l.b16 %v196
    %v732 = vunpack.c.l.b16 %v197
    %v733 = vunpack.c.l.b16 %v198
    %v734 = vunpack.c.l.b16 %v199
    %v735 = vunpack.c.l.b16 %v200
    %v736 = vunpack.c.l.b16 %v201
    %v737 = vunpack.c.l.b16 %v202
    %v738 = vunpack.c.l.b16 %v203
    %v739 = vunpack.c.l.b16 %v204
    %v740 = vunpack.c.l.b16 %v205
    %v741 = vunpack.c.l.b16 %v206
    %v742 = vunpack.c.l.b16 %v207
    %v743 = vunpack.c.l.b16 %v208
    %v744 = vunpack.c.l.b16 %v209
    %v745 = vunpack.c.l.b16 %v210
    %v746 = vunpack.c.l.b16 %v211
    %v747 = vunpack.c.l.b16 %v212
    %v748 = vunpack.c.l.b16 %v213
    %v749 = vunpack.c.l.b16 %v214
    %v750 = vunpack.c.l.b16 %v215
    %v751 = vunpack.c.l.b16 %v216
    %v752 = vunpack.c.l.b16 %v217
    %v753 = vunpack.c.l.b16 %v218
    %v754 = vunpack.c.l.b16 %v219
    %v755 = vunpack.c.l.b16 %v220
    %v756 = vunpack.c.l.b16 %v221
    %v757 = vunpack.c.l.b16 %v222
    %v758 = vunpack.c.l.b16 %v223
    %v759 = vunpack.c.l.b16 %v224
    %v760 = vunpack.c.l.b16 %v225
    %v761 = vunpack.c.l.b16 %v226
    %v762 = vunpack.c.l.b16 %v227
    %v763 = vunpack.c.l.b16 %v228
    %v764 = vunpack.c.l.b16 %v229
    %v765 = vunpack.c.l.b16 %v230
    %v766 = vunpack.c.l.b16 %v231
    %v767 = vunpack.c.l.b16 %v232
    %v768 = vunpack.c.l.b16 %v233
    %v769 = vunpack.c.l.b16 %v234
    %v770 = vunpack.c.l.b16 %v235
    %v771 = vunpack.c.l.b16 %v236
    %v772 = vunpack.c.l.b16 %v237
    %v773 = vunpack.c.l.b16 %v238
    %v774 = vunpack.c.l.b16 %v239
    %v775 = vunpack.c.l.b16 %v240
    %v776 = vunpack.c.l.b16 %v241
    %v777 = vunpack.c.l.b16 %v242
    %v778 = vunpack.c.l.b16 %v243
    %v779 = vunpack.c.l.b16 %v244
    %v780 = vunpack.c.l.b16 %v245
    %v781 = vunpack.c.l.b16 %v246
    %v782 = vunpack.c.l.b16 %v247
    %v783 = vunpack.c.l.b16 %v248
    %v784 = vunpack.c.l.b16 %v249
    %v785 = vunpack.c.l.b16 %v250
    %v786 = vunpack.c.l.b16 %v251
    %v787 = vunpack.c.l.b16 %v252
    %v788 = vunpack.c.l.b16 %v253
    %v789 = vunpack.c.l.b16 %v254
    %v790 = vunpack.c.l.b16 %v255
    %v791 = vunpack.c.l.b16 %v256
    %v792 = vunpack.c.l.b16 %v257
    %v793 = vunpack.c.l.b16 %v258
    %v794 = vunpack.c.l.b16 %v259
    %v795 = vunpack.c.l.b16 %v260
    %v796 = vunpack.c.l.b16 %v261
    %v797 = vunpack.c.l.b16 %v262
    %v798 = vunpack.c.l.b16 %v263
    %v799 = vunpack.c.l.b16 %v264
    %v800 = vunpack.c.l.b16 %v265
    %v801 = vunpack.c.l.b16 %v266
    %v802 = vunpack.c.l.b16 %v267
    %v803 = vunpack.c.l.b16 %v268
    %v804 = vunpack.c.l.b16 %v269
    %v805 = vunpack.c.l.b16 %v270
    %v806 = vunpack.c.l.b16 %v271
    %v807 = vunpack.c.l.b16 %v272
    %v808 = vunpack.c.l.b16 %v273
    %v809 = vunpack.c.l.b16 %v274
    %v810 = vunpack.c.l.b16 %v275
    %v811 = vunpack.c.l.b16 %v276
    %v812 = vunpack.c.l.b16 %v277
    %v813 = vunpack.c.l.b16 %v278
    %v814 = vunpack.c.l.b16 %v279
    %v815 = vunpack.c.l.b16 %v280
    %v816 = vunpack.c.l.b16 %v281
    %v817 = vunpack.c.l.b16 %v282
    %v818 = vunpack.c.l.b16 %v283
    %v819 = vunpack.c.l.b16 %v284
    %v820 = vunpack.c.l.b16 %v285
    %v821 = vunpack.c.l.b16 %v286
    %v822 = vunpack.c.l.b16 %v287
    %v823 = vunpack.c.l.b16 %v288
    %v824 = vunpack.c.l.b16 %v289
    %v825 = vunpack.c.l.b16 %v290
    %v826 = vunpack.c.l.b16 %v291
    %v827 = vunpack.c.l.b16 %v292
    %v828 = vunpack.c.l.b16 %v293
    %v829 = vunpack.c.l.b16 %v294
    %v830 = vunpack.c.l.b16 %v295
    %v831 = vunpack.c.l.b16 %v296
    %v832 = vunpack.c.l.b16 %v297
    %v833 = vunpack.c.l.b16 %v298
    %v834 = vunpack.c.l.b16 %v299
    %v835 = vunpack.c.l.b16 %v300
    %v836 = vunpack.c.l.b16 %v301
    %v837 = vunpack.c.l.b16 %v302
    %v838 = vunpack.c.l.b16 %v303
    %v839 = vunpack.c.l.b16 %v304
    %v840 = vunpack.c.l.b16 %v305
    %v841 = vunpack.c.l.b16 %v306
    %v842 = vunpack.c.l.b16 %v307
    %v843 = vunpack.c.l.b16 %v308
    %v844 = vunpack.c.l.b16 %v309
    %v845 = vunpack.c.l.b16 %v310
    %v846 = vunpack.c.l.b16 %v311
    %v847 = vunpack.c.l.b16 %v312
    %v848 = vunpack.c.l.b16 %v313
    %v849 = vunpack.c.l.b16 %v314
    %v850 = vunpack.c.l.b16 %v315
    %v851 = vunpack.c.l.b16 %v316
    %v852 = vunpack.c.l.b16 %v317
    %v853 = vunpack.c.l.b16 %v318
    %v854 = vpack.c.b16 %v599, %v598
    %v855 = vpack.c.b16 %v601, %v600
    %v856 = vpack.c.b16 %v603, %v602
    %v857 = vpack.c.b16 %v605, %v604
    %v858 = vpack.c.b16 %v607, %v606
    %v859 = vpack.c.b16 %v609, %v608
    %v860 = vpack.c.b16 %v611, %v610
    %v861 = vpack.c.b16 %v613, %v612
    %v862 = vpack.c.b16 %v615, %v614
    %v863 = vpack.c.b16 %v617, %v616
    %v864 = vpack.c.b16 %v619, %v618
    %v865 = vpack.c.b16 %v621, %v620
    %v866 = vpack.c.b16 %v623, %v622
    %v867 = vpack.c.b16 %v625, %v624
    %v868 = vpack.c.b16 %v627, %v626
    %v869 = vpack.c.b16 %v629, %v628
    %v870 = vpack.c.b16 %v631, %v630
    %v871 = vpack.c.b16 %v633, %v632
    %v872 = vpack.c.b16 %v635, %v634
    %v873 = vpack.c.b16 %v637, %v636
    %v874 = vpack.c.b16 %v639, %v638
    %v875 = vpack.c.b16 %v641, %v640
    %v876 = vpack.c.b16 %v643, %v642
    %v877 = vpack.c.b16 %v645, %v644
    %v878 = vpack.c.b16 %v647, %v646
    %v879 = vpack.c.b16 %v649, %v648
    %v880 = vpack.c.b16 %v651, %v650
    %v881 = vpack.c.b16 %v653, %v652
    %v882 = vpack.c.b16 %v655, %v654
    %v883 = vpack.c.b16 %v657, %v656
    %v884 = vpack.c.b16 %v659, %v658
    %v885 = vpack.c.b16 %v661, %v660
    %v886 = vpack.c.b16 %v663, %v662
    %v887 = vpack.c.b16 %v665, %v664
    %v888 = vpack.c.b16 %v667, %v666
    %v889 = vpack.c.b16 %v669, %v668
    %v890 = vpack.c.b16 %v671, %v670
    %v891 = vpack.c.b16 %v673, %v672
    %v892 = vpack.c.b16 %v675, %v674
    %v893 = vpack.c.b16 %v677, %v676
    %v894 = vpack.c.b16 %v679, %v678
    %v895 = vpack.c.b16 %v681, %v680
    %v896 = vpack.c.b16 %v683, %v682
    %v897 = vpack.c.b16 %v685, %v684
    %v898 = vpack.c.b16 %v687, %v686
    %v899 = vpack.c.b16 %v689, %v688
    %v900 = vpack.c.b16 %v691, %v690
    %v901 = vpack.c.b16 %v693, %v692
    %v902 = vpack.c.b16 %v695, %v694
    %v903 = vpack.c.b16 %v697, %v696
    %v904 = vpack.c.b16 %v699, %v698
    %v905 = vpack.c.b16 %v701, %v700
    %v906 = vpack.c.b16 %v703, %v702
    %v907 = vpack.c.b16 %v705, %v704
    %v908 = vpack.c.b16 %v707, %v706
    %v909 = vpack.c.b16 %v709, %v708
    %v910 = vpack.c.b16 %v711, %v710
    %v911 = vpack.c.b16 %v713, %v712
    %v912 = vpack.c.b16 %v715, %v714
    %v913 = vpack.c.b16 %v717, %v716
    %v914 = vpack.c.b16 %v719, %v718
    %v915 = vpack.c.b16 %v721, %v720
    %v916 = vpack.c.b16 %v723, %v722
    %v917 = vpack.c.b16 %v725, %v724
    %v918 = vpack.c.b16 %v727, %v726
    %v919 = vpack.c.b16 %v729, %v728
    %v920 = vpack.c.b16 %v731, %v730
    %v921 = vpack.c.b16 %v733, %v732
    %v922 = vpack.c.b16 %v735, %v734
    %v923 = vpack.c.b16 %v737, %v736
    %v924 = vpack.c.b16 %v739, %v738
    %v925 = vpack.c.b16 %v741, %v740
    %v926 = vpack.c.b16 %v743, %v742
    %v927 = vpack.c.b16 %v745, %v744
    %v928 = vpack.c.b16 %v747, %v746
    %v929 = vpack.c.b16 %v749, %v748
    %v930 = vpack.c.b16 %v751, %v750
    %v931 = vpack.c.b16 %v753, %v752
    %v932 = vpack.c.b16 %v755, %v754
    %v933 = vpack.c.b16 %v757, %v756
    %v934 = vpack.c.b16 %v759, %v758
    %v935 = vpack.c.b16 %v761, %v760
    %v936 = vpack.c.b16 %v763, %v762
    %v937 = vpack.c.b16 %v765, %v764
    %v938 = vpack.c.b16 %v767, %v766
    %v939 = vpack.c.b16 %v769, %v768
    %v940 = vpack.c.b16 %v771, %v770
    %v941 = vpack.c.b16 %v773, %v772
    %v942 = vpack.c.b16 %v775, %v774
    %v943 = vpack.c.b16 %v777, %v776
    %v944 = vpack.c.b16 %v779, %v778
    %v945 = vpack.c.b16 %v781, %v780
    %v946 = vpack.c.b16 %v783, %v782
    %v947 = vpack.c.b16 %v785, %v784
    %v948 = vpack.c.b16 %v787, %v786
    %v949 = vpack.c.b16 %v789, %v788
    %v950 = vpack.c.b16 %v791, %v790
    %v951 = vpack.c.b16 %v793, %v792
    %v952 = vpack.c.b16 %v795, %v794
    %v953 = vpack.c.b16 %v797, %v796
    %v954 = vpack.c.b16 %v799, %v798
    %v955 = vpack.c.b16 %v801, %v800
    %v956 = vpack.c.b16 %v803, %v802
    %v957 = vpack.c.b16 %v805, %v804
    %v958 = vpack.c.b16 %v807, %v806
    %v959 = vpack.c.b16 %v809, %v808
    %v960 = vpack.c.b16 %v811, %v810
    %v961 = vpack.c.b16 %v813, %v812
    %v962 = vpack.c.b16 %v815, %v814
    %v963 = vpack.c.b16 %v817, %v816
    %v964 = vpack.c.b16 %v819, %v818
    %v965 = vpack.c.b16 %v821, %v820
    %v966 = vpack.c.b16 %v823, %v822
    %v967 = vpack.c.b16 %v825, %v824
    %v968 = vpack.c.b16 %v827, %v826
    %v969 = vpack.c.b16 %v829, %v828
    %v970 = vpack.c.b16 %v831, %v830
    %v971 = vpack.c.b16 %v833, %v832
    %v972 = vpack.c.b16 %v835, %v834
    %v973 = vpack.c.b16 %v837, %v836
    %v974 = vpack.c.b16 %v839, %v838
    %v975 = vpack.c.b16 %v841, %v840
    %v976 = vpack.c.b16 %v843, %v842
    %v977 = vpack.c.b16 %v845, %v844
    %v978 = vpack.c.b16 %v847, %v846
    %v979 = vpack.c.b16 %v849, %v848
    %v980 = vpack.c.b16 %v851, %v850
    %v981 = vpack.c.b16 %v853, %v852
    %v1126 = vunpack.c.l.b16 %v319
    %v1127 = vunpack.c.l.b16 %v320
    %v1128 = vunpack.c.l.b16 %v321
    %v1129 = vunpack.c.l.b16 %v322
    %v1130 = vunpack.c.l.b16 %v323
    %v1131 = vunpack.c.l.b16 %v324
    %v1132 = vunpack.c.l.b16 %v325
    %v1133 = vunpack.c.l.b16 %v326
    %v1134 = vunpack.c.l.b16 %v327
    %v1135 = vunpack.c.l.b16 %v328
    %v1136 = vunpack.c.l.b16 %v329
    %v1137 = vunpack.c.l.b16 %v330
    %v1138 = vunpack.c.l.b16 %v331
    %v1139 = vunpack.c.l.b16 %v332
    %v1140 = vunpack.c.l.b16 %v333
    %v1141 = vunpack.c.l.b16 %v334
    %v1142 = vpack.c.b16 %v1127, %v1126
    %v1143 = vpack.c.b16 %v1129, %v1128
    %v1144 = vpack.c.b16 %v1131, %v1130
    %v1145 = vpack.c.b16 %v1133, %v1132
    %v1146 = vpack.c.b16 %v1135, %v1134
    %v1147 = vpack.c.b16 %v1137, %v1136
    %v1148 = vpack.c.b16 %v1139, %v1138
    %v1149 = vpack.c.b16 %v1141, %v1140
    %1158 = vmatprep.subr.bf16.mxu0 0
    %1159 = vmatpush1.bf16.msra.mxu0 %v1142
    %1160 = vmatprep.subr.bf16.mxu0 0
    %1161 = vmatpush1.bf16.msra.mxu0 %v1143
    %1162 = vmatprep.subr.bf16.mxu0 0
    %1163 = vmatpush1.bf16.msra.mxu0 %v1144
    %1164 = vmatprep.subr.bf16.mxu0 0
    %1165 = vmatpush1.bf16.msra.mxu0 %v1145
    %1166 = vmatprep.subr.bf16.mxu0 0
    %1167 = vmatpush1.bf16.msra.mxu0 %v1146
    %1168 = vmatprep.subr.bf16.mxu0 0
    %1169 = vmatpush1.bf16.msra.mxu0 %v1147
    %1170 = vmatprep.subr.bf16.mxu0 0
    %1171 = vmatpush1.bf16.msra.mxu0 %v1148
    %1172 = vmatprep.subr.bf16.mxu0 0
    %1173 = vmatpush1.bf16.msra.mxu0 %v1149
    %1174 = vmatprep.subr.bf16.mxu0 0
    %1175 = vmatpush1.bf16.msra.mxu0 0
    %1176 = vmatprep.subr.bf16.mxu0 0
    %1177 = vmatpush1.bf16.msra.mxu0 0
    %1178 = vmatprep.subr.bf16.mxu0 0
    %1179 = vmatpush1.bf16.msra.mxu0 0
    %1180 = vmatprep.subr.bf16.mxu0 0
    %1181 = vmatpush1.bf16.msra.mxu0 0
    %1182 = vmatprep.subr.bf16.mxu0 0
    %1183 = vmatpush1.bf16.msra.mxu0 0
    %1184 = vmatprep.subr.bf16.mxu0 0
    %1185 = vmatpush1.bf16.msra.mxu0 0
    %1186 = vmatprep.subr.bf16.mxu0 0
    %1187 = vmatpush1.bf16.msra.mxu0 0
    %1188 = vmatprep.subr.bf16.mxu0 0
    %1189 = vmatpush1.bf16.msra.mxu0 0
    %1190 = vmatprep.mubr.bf16.mxu0 0
    %1191 = vmatmul.mubr.bf16.gmra.mrb[0].mxu0 %v854
    %v1192 = vpop.f32.mrb[0].mxu0
    %v1193 = vadd.f32 %v340, %v1192
    %v1194 = vpop.f32.mrb[0].mxu0
    %v1195 = vpop.f32.mrb[0].mxu0
    %v1196 = vadd.f32 %v340, %v1195
    %v1197 = vpop.f32.mrb[0].mxu0
    %1198 = vmatprep.mubr.bf16.mxu0 0
    %1199 = vmatmul.mubr.bf16.gmra.mrb[0].mxu0 %v855
    %v1200 = vpop.f32.mrb[0].mxu0
    %v1201 = vadd.f32 %v340, %v1200
    %v1202 = vpop.f32.mrb[0].mxu0
    %v1203 = vpop.f32.mrb[0].mxu0
    %v1204 = vadd.f32 %v340, %v1203
    %v1205 = vpop.f32.mrb[0].mxu0
    %1206 = vmatprep.mubr.bf16.mxu0 0
    %1207 = vmatmul.mubr.bf16.gmra.mrb[0].mxu0 %v856
    %v1208 = vpop.f32.mrb[0].mxu0
    %v1209 = vadd.f32 %v340, %v1208
    %v1210 = vpop.f32.mrb[0].mxu0
    %v1211 = vpop.f32.mrb[0].mxu0
    %v1212 = vadd.f32 %v340, %v1211
    %v1213 = vpop.f32.mrb[0].mxu0
    %1214 = vmatprep.mubr.bf16.mxu0 0
    %1215 = vmatmul.mubr.bf16.gmra.mrb[0].mxu0 %v857
    %v1216 = vpop.f32.mrb[0].mxu0
    %v1217 = vadd.f32 %v340, %v1216
    %v1218 = vpop.f32.mrb[0].mxu0
    %v1219 = vpop.f32.mrb[0].mxu0
    %v1220 = vadd.f32 %v340, %v1219
    %v1221 = vpop.f32.mrb[0].mxu0
    %1222 = vmatprep.mubr.bf16.mxu0 0
    %1223 = vmatmul.mubr.bf16.gmra.mrb[0].mxu0 %v858
    %v1224 = vpop.f32.mrb[0].mxu0
    %v1225 = vadd.f32 %v340, %v1224
    %v1226 = vpop.f32.mrb[0].mxu0
    %v1227 = vpop.f32.mrb[0].mxu0
    %v1228 = vadd.f32 %v340, %v1227
    %v1229 = vpop.f32.mrb[0].mxu0
    %1230 = vmatprep.mubr.bf16.mxu0 0
    %1231 = vmatmul.mubr.bf16.gmra.mrb[0].mxu0 %v859
    %v1232 = vpop.f32.mrb[0].mxu0
    %v1233 = vadd.f32 %v340, %v1232
    %v1234 = vpop.f32.mrb[0].mxu0
    %v1235 = vpop.f32.mrb[0].mxu0
    %v1236 = vadd.f32 %v340, %v1235
    %v1237 = vpop.f32.mrb[0].mxu0
    %1238 = vmatprep.mubr.bf16.mxu0 0
    %1239 = vmatmul.mubr.bf16.gmra.mrb[0].mxu0 %v860
    %v1240 = vpop.f32.mrb[0].mxu0
    %v1241 = vadd.f32 %v340, %v1240
    %v1242 = vpop.f32.mrb[0].mxu0
    %v1243 = vpop.f32.mrb[0].mxu0
    %v1244 = vadd.f32 %v340, %v1243
    %v1245 = vpop.f32.mrb[0].mxu0
    %1246 = vmatprep.mubr.bf16.mxu0 0
    %1247 = vmatmul.mubr.bf16.gmra.mrb[0].mxu0 %v861
    %v1248 = vpop.f32.mrb[0].mxu0
    %v1249 = vadd.f32 %v340, %v1248
    %v1250 = vpop.f32.mrb[0].mxu0
    %v1251 = vpop.f32.mrb[0].mxu0
    %v1252 = vadd.f32 %v340, %v1251
    %v1253 = vpop.f32.mrb[0].mxu0
    %1254 = vmatprep.mubr.bf16.mxu0 0
    %1255 = vmatmul.mubr.bf16.gmra.mrb[0].mxu0 %v862
    %v1256 = vpop.f32.mrb[0].mxu0
    %v1257 = vadd.f32 %v340, %v1256
    %v1258 = vpop.f32.mrb[0].mxu0
    %v1259 = vpop.f32.mrb[0].mxu0
    %v1260 = vadd.f32 %v340, %v1259
    %v1261 = vpop.f32.mrb[0].mxu0
    %1262 = vmatprep.mubr.bf16.mxu0 0
    %1263 = vmatmul.mubr.bf16.gmra.mrb[0].mxu0 %v863
    %v1264 = vpop.f32.mrb[0].mxu0
    %v1265 = vadd.f32 %v340, %v1264
    %v1266 = vpop.f32.mrb[0].mxu0
    %v1267 = vpop.f32.mrb[0].mxu0
    %v1268 = vadd.f32 %v340, %v1267
    %v1269 = vpop.f32.mrb[0].mxu0
    %1270 = vmatprep.mubr.bf16.mxu0 0
    %1271 = vmatmul.mubr.bf16.gmra.mrb[0].mxu0 %v864
    %v1272 = vpop.f32.mrb[0].mxu0
    %v1273 = vadd.f32 %v340, %v1272
    %v1274 = vpop.f32.mrb[0].mxu0
    %v1275 = vpop.f32.mrb[0].mxu0
    %v1276 = vadd.f32 %v340, %v1275
    %v1277 = vpop.f32.mrb[0].mxu0
    %1278 = vmatprep.mubr.bf16.mxu0 0
    %1279 = vmatmul.mubr.bf16.gmra.mrb[0].mxu0 %v865
    %v1280 = vpop.f32.mrb[0].mxu0
    %v1281 = vadd.f32 %v340, %v1280
    %v1282 = vpop.f32.mrb[0].mxu0
    %v1283 = vpop.f32.mrb[0].mxu0
    %v1284 = vadd.f32 %v340, %v1283
    %v1285 = vpop.f32.mrb[0].mxu0
    %1286 = vmatprep.mubr.bf16.mxu0 0
    %1287 = vmatmul.mubr.bf16.gmra.mrb[0].mxu0 %v866
    %v1288 = vpop.f32.mrb[0].mxu0
    %v1289 = vadd.f32 %v340, %v1288
    %v1290 = vpop.f32.mrb[0].mxu0
    %v1291 = vpop.f32.mrb[0].mxu0
    %v1292 = vadd.f32 %v340, %v1291
    %v1293 = vpop.f32.mrb[0].mxu0
    %1294 = vmatprep.mubr.bf16.mxu0 0
    %1295 = vmatmul.mubr.bf16.gmra.mrb[0].mxu0 %v867
    %v1296 = vpop.f32.mrb[0].mxu0
    %v1297 = vadd.f32 %v340, %v1296
    %v1298 = vpop.f32.mrb[0].mxu0
    %v1299 = vpop.f32.mrb[0].mxu0
    %v1300 = vadd.f32 %v340, %v1299
    %v1301 = vpop.f32.mrb[0].mxu0
    %1302 = vmatprep.mubr.bf16.mxu0 0
    %1303 = vmatmul.mubr.bf16.gmra.mrb[0].mxu0 %v868
    %v1304 = vpop.f32.mrb[0].mxu0
    %v1305 = vadd.f32 %v340, %v1304
    %v1306 = vpop.f32.mrb[0].mxu0
    %v1307 = vpop.f32.mrb[0].mxu0
    %v1308 = vadd.f32 %v340, %v1307
    %v1309 = vpop.f32.mrb[0].mxu0
    %1310 = vmatprep.mubr.bf16.mxu0 0
    %1311 = vmatmul.mubr.bf16.gmra.mrb[0].mxu0 %v869
    %v1312 = vpop.f32.mrb[0].mxu0
    %v1313 = vadd.f32 %v340, %v1312
    %v1314 = vpop.f32.mrb[0].mxu0
    %v1315 = vpop.f32.mrb[0].mxu0
    %v1316 = vadd.f32 %v340, %v1315
    %v1317 = vpop.f32.mrb[0].mxu0
    %1318 = vmatprep.mubr.bf16.mxu0 0
    %1319 = vmatmul.mubr.bf16.gmra.mrb[0].mxu0 %v870
    %v1320 = vpop.f32.mrb[0].mxu0
    %v1321 = vadd.f32 %v340, %v1320
    %v1322 = vpop.f32.mrb[0].mxu0
    %v1323 = vpop.f32.mrb[0].mxu0
    %v1324 = vadd.f32 %v340, %v1323
    %v1325 = vpop.f32.mrb[0].mxu0
    %1326 = vmatprep.mubr.bf16.mxu0 0
    %1327 = vmatmul.mubr.bf16.gmra.mrb[0].mxu0 %v871
    %v1328 = vpop.f32.mrb[0].mxu0
    %v1329 = vadd.f32 %v340, %v1328
    %v1330 = vpop.f32.mrb[0].mxu0
    %v1331 = vpop.f32.mrb[0].mxu0
    %v1332 = vadd.f32 %v340, %v1331
    %v1333 = vpop.f32.mrb[0].mxu0
    %1334 = vmatprep.mubr.bf16.mxu0 0
    %1335 = vmatmul.mubr.bf16.gmra.mrb[0].mxu0 %v872
    %v1336 = vpop.f32.mrb[0].mxu0
    %v1337 = vadd.f32 %v340, %v1336
    %v1338 = vpop.f32.mrb[0].mxu0
    %v1339 = vpop.f32.mrb[0].mxu0
    %v1340 = vadd.f32 %v340, %v1339
    %v1341 = vpop.f32.mrb[0].mxu0
    %1342 = vmatprep.mubr.bf16.mxu0 0
    %1343 = vmatmul.mubr.bf16.gmra.mrb[0].mxu0 %v873
    %v1344 = vpop.f32.mrb[0].mxu0
    %v1345 = vadd.f32 %v340, %v1344
    %v1346 = vpop.f32.mrb[0].mxu0
    %v1347 = vpop.f32.mrb[0].mxu0
    %v1348 = vadd.f32 %v340, %v1347
    %v1349 = vpop.f32.mrb[0].mxu0
    %1350 = vmatprep.mubr.bf16.mxu0 0
    %1351 = vmatmul.mubr.bf16.gmra.mrb[0].mxu0 %v874
    %v1352 = vpop.f32.mrb[0].mxu0
    %v1353 = vadd.f32 %v340, %v1352
    %v1354 = vpop.f32.mrb[0].mxu0
    %v1355 = vpop.f32.mrb[0].mxu0
    %v1356 = vadd.f32 %v340, %v1355
    %v1357 = vpop.f32.mrb[0].mxu0
    %1358 = vmatprep.mubr.bf16.mxu0 0
    %1359 = vmatmul.mubr.bf16.gmra.mrb[0].mxu0 %v875
    %v1360 = vpop.f32.mrb[0].mxu0
    %v1361 = vadd.f32 %v340, %v1360
    %v1362 = vpop.f32.mrb[0].mxu0
    %v1363 = vpop.f32.mrb[0].mxu0
    %v1364 = vadd.f32 %v340, %v1363
    %v1365 = vpop.f32.mrb[0].mxu0
    %1366 = vmatprep.mubr.bf16.mxu0 0
    %1367 = vmatmul.mubr.bf16.gmra.mrb[0].mxu0 %v876
    %v1368 = vpop.f32.mrb[0].mxu0
    %v1369 = vadd.f32 %v340, %v1368
    %v1370 = vpop.f32.mrb[0].mxu0
    %v1371 = vpop.f32.mrb[0].mxu0
    %v1372 = vadd.f32 %v340, %v1371
    %v1373 = vpop.f32.mrb[0].mxu0
    %1374 = vmatprep.mubr.bf16.mxu0 0
    %1375 = vmatmul.mubr.bf16.gmra.mrb[0].mxu0 %v877
    %v1376 = vpop.f32.mrb[0].mxu0
    %v1377 = vadd.f32 %v340, %v1376
    %v1378 = vpop.f32.mrb[0].mxu0
    %v1379 = vpop.f32.mrb[0].mxu0
    %v1380 = vadd.f32 %v340, %v1379
    %v1381 = vpop.f32.mrb[0].mxu0
    %1382 = vmatprep.mubr.bf16.mxu0 0
    %1383 = vmatmul.mubr.bf16.gmra.mrb[0].mxu0 %v878
    %v1384 = vpop.f32.mrb[0].mxu0
    %v1385 = vadd.f32 %v340, %v1384
    %v1386 = vpop.f32.mrb[0].mxu0
    %v1387 = vpop.f32.mrb[0].mxu0
    %v1388 = vadd.f32 %v340, %v1387
    %v1389 = vpop.f32.mrb[0].mxu0
    %1390 = vmatprep.mubr.bf16.mxu0 0
    %1391 = vmatmul.mubr.bf16.gmra.mrb[0].mxu0 %v879
    %v1392 = vpop.f32.mrb[0].mxu0
    %v1393 = vadd.f32 %v340, %v1392
    %v1394 = vpop.f32.mrb[0].mxu0
    %v1395 = vpop.f32.mrb[0].mxu0
    %v1396 = vadd.f32 %v340, %v1395
    %v1397 = vpop.f32.mrb[0].mxu0
    %1398 = vmatprep.mubr.bf16.mxu0 0
    %1399 = vmatmul.mubr.bf16.gmra.mrb[0].mxu0 %v880
    %v1400 = vpop.f32.mrb[0].mxu0
    %v1401 = vadd.f32 %v340, %v1400
    %v1402 = vpop.f32.mrb[0].mxu0
    %v1403 = vpop.f32.mrb[0].mxu0
    %v1404 = vadd.f32 %v340, %v1403
    %v1405 = vpop.f32.mrb[0].mxu0
    %1406 = vmatprep.mubr.bf16.mxu0 0
    %1407 = vmatmul.mubr.bf16.gmra.mrb[0].mxu0 %v881
    %v1408 = vpop.f32.mrb[0].mxu0
    %v1409 = vadd.f32 %v340, %v1408
    %v1410 = vpop.f32.mrb[0].mxu0
    %v1411 = vpop.f32.mrb[0].mxu0
    %v1412 = vadd.f32 %v340, %v1411
    %v1413 = vpop.f32.mrb[0].mxu0
    %1414 = vmatprep.mubr.bf16.mxu0 0
    %1415 = vmatmul.mubr.bf16.gmra.mrb[0].mxu0 %v882
    %v1416 = vpop.f32.mrb[0].mxu0
    %v1417 = vadd.f32 %v340, %v1416
    %v1418 = vpop.f32.mrb[0].mxu0
    %v1419 = vpop.f32.mrb[0].mxu0
    %v1420 = vadd.f32 %v340, %v1419
    %v1421 = vpop.f32.mrb[0].mxu0
    %1422 = vmatprep.mubr.bf16.mxu0 0
    %1423 = vmatmul.mubr.bf16.gmra.mrb[0].mxu0 %v883
    %v1424 = vpop.f32.mrb[0].mxu0
    %v1425 = vadd.f32 %v340, %v1424
    %v1426 = vpop.f32.mrb[0].mxu0
    %v1427 = vpop.f32.mrb[0].mxu0
    %v1428 = vadd.f32 %v340, %v1427
    %v1429 = vpop.f32.mrb[0].mxu0
    %1430 = vmatprep.mubr.bf16.mxu0 0
    %1431 = vmatmul.mubr.bf16.gmra.mrb[0].mxu0 %v884
    %v1432 = vpop.f32.mrb[0].mxu0
    %v1433 = vadd.f32 %v340, %v1432
    %v1434 = vpop.f32.mrb[0].mxu0
    %v1435 = vpop.f32.mrb[0].mxu0
    %v1436 = vadd.f32 %v340, %v1435
    %v1437 = vpop.f32.mrb[0].mxu0
    %1438 = vmatprep.mubr.bf16.mxu0 0
    %1439 = vmatmul.mubr.bf16.gmra.mrb[0].mxu0 %v885
    %v1440 = vpop.f32.mrb[0].mxu0
    %v1441 = vadd.f32 %v340, %v1440
    %v1442 = vpop.f32.mrb[0].mxu0
    %v1443 = vpop.f32.mrb[0].mxu0
    %v1444 = vadd.f32 %v340, %v1443
    %v1445 = vpop.f32.mrb[0].mxu0
    %1446 = vmatprep.mubr.bf16.mxu0 0
    %1447 = vmatmul.mubr.bf16.gmra.mrb[0].mxu0 %v886
    %v1448 = vpop.f32.mrb[0].mxu0
    %v1449 = vadd.f32 %v340, %v1448
    %v1450 = vpop.f32.mrb[0].mxu0
    %v1451 = vpop.f32.mrb[0].mxu0
    %v1452 = vadd.f32 %v340, %v1451
    %v1453 = vpop.f32.mrb[0].mxu0
    %1454 = vmatprep.mubr.bf16.mxu0 0
    %1455 = vmatmul.mubr.bf16.gmra.mrb[0].mxu0 %v887
    %v1456 = vpop.f32.mrb[0].mxu0
    %v1457 = vadd.f32 %v340, %v1456
    %v1458 = vpop.f32.mrb[0].mxu0
    %v1459 = vpop.f32.mrb[0].mxu0
    %v1460 = vadd.f32 %v340, %v1459
    %v1461 = vpop.f32.mrb[0].mxu0
    %1462 = vmatprep.mubr.bf16.mxu0 0
    %1463 = vmatmul.mubr.bf16.gmra.mrb[0].mxu0 %v888
    %v1464 = vpop.f32.mrb[0].mxu0
    %v1465 = vadd.f32 %v340, %v1464
    %v1466 = vpop.f32.mrb[0].mxu0
    %v1467 = vpop.f32.mrb[0].mxu0
    %v1468 = vadd.f32 %v340, %v1467
    %v1469 = vpop.f32.mrb[0].mxu0
    %1470 = vmatprep.mubr.bf16.mxu0 0
    %1471 = vmatmul.mubr.bf16.gmra.mrb[0].mxu0 %v889
    %v1472 = vpop.f32.mrb[0].mxu0
    %v1473 = vadd.f32 %v340, %v1472
    %v1474 = vpop.f32.mrb[0].mxu0
    %v1475 = vpop.f32.mrb[0].mxu0
    %v1476 = vadd.f32 %v340, %v1475
    %v1477 = vpop.f32.mrb[0].mxu0
    %1478 = vmatprep.mubr.bf16.mxu0 0
    %1479 = vmatmul.mubr.bf16.gmra.mrb[0].mxu0 %v890
    %v1480 = vpop.f32.mrb[0].mxu0
    %v1481 = vadd.f32 %v340, %v1480
    %v1482 = vpop.f32.mrb[0].mxu0
    %v1483 = vpop.f32.mrb[0].mxu0
    %v1484 = vadd.f32 %v340, %v1483
    %v1485 = vpop.f32.mrb[0].mxu0
    %1486 = vmatprep.mubr.bf16.mxu0 0
    %1487 = vmatmul.mubr.bf16.gmra.mrb[0].mxu0 %v891
    %v1488 = vpop.f32.mrb[0].mxu0
    %v1489 = vadd.f32 %v340, %v1488
    %v1490 = vpop.f32.mrb[0].mxu0
    %v1491 = vpop.f32.mrb[0].mxu0
    %v1492 = vadd.f32 %v340, %v1491
    %v1493 = vpop.f32.mrb[0].mxu0
    %1494 = vmatprep.mubr.bf16.mxu0 0
    %1495 = vmatmul.mubr.bf16.gmra.mrb[0].mxu0 %v892
    %v1496 = vpop.f32.mrb[0].mxu0
    %v1497 = vadd.f32 %v340, %v1496
    %v1498 = vpop.f32.mrb[0].mxu0
    %v1499 = vpop.f32.mrb[0].mxu0
    %v1500 = vadd.f32 %v340, %v1499
    %v1501 = vpop.f32.mrb[0].mxu0
    %1502 = vmatprep.mubr.bf16.mxu0 0
    %1503 = vmatmul.mubr.bf16.gmra.mrb[0].mxu0 %v893
    %v1504 = vpop.f32.mrb[0].mxu0
    %v1505 = vadd.f32 %v340, %v1504
    %v1506 = vpop.f32.mrb[0].mxu0
    %v1507 = vpop.f32.mrb[0].mxu0
    %v1508 = vadd.f32 %v340, %v1507
    %v1509 = vpop.f32.mrb[0].mxu0
    %1510 = vmatprep.mubr.bf16.mxu0 0
    %1511 = vmatmul.mubr.bf16.gmra.mrb[0].mxu0 %v894
    %v1512 = vpop.f32.mrb[0].mxu0
    %v1513 = vadd.f32 %v340, %v1512
    %v1514 = vpop.f32.mrb[0].mxu0
    %v1515 = vpop.f32.mrb[0].mxu0
    %v1516 = vadd.f32 %v340, %v1515
    %v1517 = vpop.f32.mrb[0].mxu0
    %1518 = vmatprep.mubr.bf16.mxu0 0
    %1519 = vmatmul.mubr.bf16.gmra.mrb[0].mxu0 %v895
    %v1520 = vpop.f32.mrb[0].mxu0
    %v1521 = vadd.f32 %v340, %v1520
    %v1522 = vpop.f32.mrb[0].mxu0
    %v1523 = vpop.f32.mrb[0].mxu0
    %v1524 = vadd.f32 %v340, %v1523
    %v1525 = vpop.f32.mrb[0].mxu0
    %1526 = vmatprep.mubr.bf16.mxu0 0
    %1527 = vmatmul.mubr.bf16.gmra.mrb[0].mxu0 %v896
    %v1528 = vpop.f32.mrb[0].mxu0
    %v1529 = vadd.f32 %v340, %v1528
    %v1530 = vpop.f32.mrb[0].mxu0
    %v1531 = vpop.f32.mrb[0].mxu0
    %v1532 = vadd.f32 %v340, %v1531
    %v1533 = vpop.f32.mrb[0].mxu0
    %1534 = vmatprep.mubr.bf16.mxu0 0
    %1535 = vmatmul.mubr.bf16.gmra.mrb[0].mxu0 %v897
    %v1536 = vpop.f32.mrb[0].mxu0
    %v1537 = vadd.f32 %v340, %v1536
    %v1538 = vpop.f32.mrb[0].mxu0
    %v1539 = vpop.f32.mrb[0].mxu0
    %v1540 = vadd.f32 %v340, %v1539
    %v1541 = vpop.f32.mrb[0].mxu0
    %1542 = vmatprep.mubr.bf16.mxu0 0
    %1543 = vmatmul.mubr.bf16.gmra.mrb[0].mxu0 %v898
    %v1544 = vpop.f32.mrb[0].mxu0
    %v1545 = vadd.f32 %v340, %v1544
    %v1546 = vpop.f32.mrb[0].mxu0
    %v1547 = vpop.f32.mrb[0].mxu0
    %v1548 = vadd.f32 %v340, %v1547
    %v1549 = vpop.f32.mrb[0].mxu0
    %1550 = vmatprep.mubr.bf16.mxu0 0
    %1551 = vmatmul.mubr.bf16.gmra.mrb[0].mxu0 %v899
    %v1552 = vpop.f32.mrb[0].mxu0
    %v1553 = vadd.f32 %v340, %v1552
    %v1554 = vpop.f32.mrb[0].mxu0
    %v1555 = vpop.f32.mrb[0].mxu0
    %v1556 = vadd.f32 %v340, %v1555
    %v1557 = vpop.f32.mrb[0].mxu0
    %1558 = vmatprep.mubr.bf16.mxu0 0
    %1559 = vmatmul.mubr.bf16.gmra.mrb[0].mxu0 %v900
    %v1560 = vpop.f32.mrb[0].mxu0
    %v1561 = vadd.f32 %v340, %v1560
    %v1562 = vpop.f32.mrb[0].mxu0
    %v1563 = vpop.f32.mrb[0].mxu0
    %v1564 = vadd.f32 %v340, %v1563
    %v1565 = vpop.f32.mrb[0].mxu0
    %1566 = vmatprep.mubr.bf16.mxu0 0
    %1567 = vmatmul.mubr.bf16.gmra.mrb[0].mxu0 %v901
    %v1568 = vpop.f32.mrb[0].mxu0
    %v1569 = vadd.f32 %v340, %v1568
    %v1570 = vpop.f32.mrb[0].mxu0
    %v1571 = vpop.f32.mrb[0].mxu0
    %v1572 = vadd.f32 %v340, %v1571
    %v1573 = vpop.f32.mrb[0].mxu0
    %1574 = vmatprep.mubr.bf16.mxu0 0
    %1575 = vmatmul.mubr.bf16.gmra.mrb[0].mxu0 %v902
    %v1576 = vpop.f32.mrb[0].mxu0
    %v1577 = vadd.f32 %v340, %v1576
    %v1578 = vpop.f32.mrb[0].mxu0
    %v1579 = vpop.f32.mrb[0].mxu0
    %v1580 = vadd.f32 %v340, %v1579
    %v1581 = vpop.f32.mrb[0].mxu0
    %1582 = vmatprep.mubr.bf16.mxu0 0
    %1583 = vmatmul.mubr.bf16.gmra.mrb[0].mxu0 %v903
    %v1584 = vpop.f32.mrb[0].mxu0
    %v1585 = vadd.f32 %v340, %v1584
    %v1586 = vpop.f32.mrb[0].mxu0
    %v1587 = vpop.f32.mrb[0].mxu0
    %v1588 = vadd.f32 %v340, %v1587
    %v1589 = vpop.f32.mrb[0].mxu0
    %1590 = vmatprep.mubr.bf16.mxu0 0
    %1591 = vmatmul.mubr.bf16.gmra.mrb[0].mxu0 %v904
    %v1592 = vpop.f32.mrb[0].mxu0
    %v1593 = vadd.f32 %v340, %v1592
    %v1594 = vpop.f32.mrb[0].mxu0
    %v1595 = vpop.f32.mrb[0].mxu0
    %v1596 = vadd.f32 %v340, %v1595
    %v1597 = vpop.f32.mrb[0].mxu0
    %1598 = vmatprep.mubr.bf16.mxu0 0
    %1599 = vmatmul.mubr.bf16.gmra.mrb[0].mxu0 %v905
    %v1600 = vpop.f32.mrb[0].mxu0
    %v1601 = vadd.f32 %v340, %v1600
    %v1602 = vpop.f32.mrb[0].mxu0
    %v1603 = vpop.f32.mrb[0].mxu0
    %v1604 = vadd.f32 %v340, %v1603
    %v1605 = vpop.f32.mrb[0].mxu0
    %1606 = vmatprep.mubr.bf16.mxu0 0
    %1607 = vmatmul.mubr.bf16.gmra.mrb[0].mxu0 %v906
    %v1608 = vpop.f32.mrb[0].mxu0
    %v1609 = vadd.f32 %v340, %v1608
    %v1610 = vpop.f32.mrb[0].mxu0
    %v1611 = vpop.f32.mrb[0].mxu0
    %v1612 = vadd.f32 %v340, %v1611
    %v1613 = vpop.f32.mrb[0].mxu0
    %1614 = vmatprep.mubr.bf16.mxu0 0
    %1615 = vmatmul.mubr.bf16.gmra.mrb[0].mxu0 %v907
    %v1616 = vpop.f32.mrb[0].mxu0
    %v1617 = vadd.f32 %v340, %v1616
    %v1618 = vpop.f32.mrb[0].mxu0
    %v1619 = vpop.f32.mrb[0].mxu0
    %v1620 = vadd.f32 %v340, %v1619
    %v1621 = vpop.f32.mrb[0].mxu0
    %1622 = vmatprep.mubr.bf16.mxu0 0
    %1623 = vmatmul.mubr.bf16.gmra.mrb[0].mxu0 %v908
    %v1624 = vpop.f32.mrb[0].mxu0
    %v1625 = vadd.f32 %v340, %v1624
    %v1626 = vpop.f32.mrb[0].mxu0
    %v1627 = vpop.f32.mrb[0].mxu0
    %v1628 = vadd.f32 %v340, %v1627
    %v1629 = vpop.f32.mrb[0].mxu0
    %1630 = vmatprep.mubr.bf16.mxu0 0
    %1631 = vmatmul.mubr.bf16.gmra.mrb[0].mxu0 %v909
    %v1632 = vpop.f32.mrb[0].mxu0
    %v1633 = vadd.f32 %v340, %v1632
    %v1634 = vpop.f32.mrb[0].mxu0
    %v1635 = vpop.f32.mrb[0].mxu0
    %v1636 = vadd.f32 %v340, %v1635
    %v1637 = vpop.f32.mrb[0].mxu0
    %1638 = vmatprep.mubr.bf16.mxu0 0
    %1639 = vmatmul.mubr.bf16.gmra.mrb[0].mxu0 %v910
    %v1640 = vpop.f32.mrb[0].mxu0
    %v1641 = vadd.f32 %v340, %v1640
    %v1642 = vpop.f32.mrb[0].mxu0
    %v1643 = vpop.f32.mrb[0].mxu0
    %v1644 = vadd.f32 %v340, %v1643
    %v1645 = vpop.f32.mrb[0].mxu0
    %1646 = vmatprep.mubr.bf16.mxu0 0
    %1647 = vmatmul.mubr.bf16.gmra.mrb[0].mxu0 %v911
    %v1648 = vpop.f32.mrb[0].mxu0
    %v1649 = vadd.f32 %v340, %v1648
    %v1650 = vpop.f32.mrb[0].mxu0
    %v1651 = vpop.f32.mrb[0].mxu0
    %v1652 = vadd.f32 %v340, %v1651
    %v1653 = vpop.f32.mrb[0].mxu0
    %1654 = vmatprep.mubr.bf16.mxu0 0
    %1655 = vmatmul.mubr.bf16.gmra.mrb[0].mxu0 %v912
    %v1656 = vpop.f32.mrb[0].mxu0
    %v1657 = vadd.f32 %v340, %v1656
    %v1658 = vpop.f32.mrb[0].mxu0
    %v1659 = vpop.f32.mrb[0].mxu0
    %v1660 = vadd.f32 %v340, %v1659
    %v1661 = vpop.f32.mrb[0].mxu0
    %1662 = vmatprep.mubr.bf16.mxu0 0
    %1663 = vmatmul.mubr.bf16.gmra.mrb[0].mxu0 %v913
    %v1664 = vpop.f32.mrb[0].mxu0
    %v1665 = vadd.f32 %v340, %v1664
    %v1666 = vpop.f32.mrb[0].mxu0
    %v1667 = vpop.f32.mrb[0].mxu0
    %v1668 = vadd.f32 %v340, %v1667
    %v1669 = vpop.f32.mrb[0].mxu0
    %1670 = vmatprep.mubr.bf16.mxu0 0
    %1671 = vmatmul.mubr.bf16.gmra.mrb[0].mxu0 %v914
    %v1672 = vpop.f32.mrb[0].mxu0
    %v1673 = vadd.f32 %v340, %v1672
    %v1674 = vpop.f32.mrb[0].mxu0
    %v1675 = vpop.f32.mrb[0].mxu0
    %v1676 = vadd.f32 %v340, %v1675
    %v1677 = vpop.f32.mrb[0].mxu0
    %1678 = vmatprep.mubr.bf16.mxu0 0
    %1679 = vmatmul.mubr.bf16.gmra.mrb[0].mxu0 %v915
    %v1680 = vpop.f32.mrb[0].mxu0
    %v1681 = vadd.f32 %v340, %v1680
    %v1682 = vpop.f32.mrb[0].mxu0
    %v1683 = vpop.f32.mrb[0].mxu0
    %v1684 = vadd.f32 %v340, %v1683
    %v1685 = vpop.f32.mrb[0].mxu0
    %1686 = vmatprep.mubr.bf16.mxu0 0
    %1687 = vmatmul.mubr.bf16.gmra.mrb[0].mxu0 %v916
    %v1688 = vpop.f32.mrb[0].mxu0
    %v1689 = vadd.f32 %v340, %v1688
    %v1690 = vpop.f32.mrb[0].mxu0
    %v1691 = vpop.f32.mrb[0].mxu0
    %v1692 = vadd.f32 %v340, %v1691
    %v1693 = vpop.f32.mrb[0].mxu0
    %1694 = vmatprep.mubr.bf16.mxu0 0
    %1695 = vmatmul.mubr.bf16.gmra.mrb[0].mxu0 %v917
    %v1696 = vpop.f32.mrb[0].mxu0
    %v1697 = vadd.f32 %v340, %v1696
    %v1698 = vpop.f32.mrb[0].mxu0
    %v1699 = vpop.f32.mrb[0].mxu0
    %v1700 = vadd.f32 %v340, %v1699
    %v1701 = vpop.f32.mrb[0].mxu0
    %1702 = vmatprep.mubr.bf16.mxu0 0
    %1703 = vmatmul.mubr.bf16.gmra.mrb[0].mxu0 %v918
    %v1704 = vpop.f32.mrb[0].mxu0
    %v1705 = vadd.f32 %v340, %v1704
    %v1706 = vpop.f32.mrb[0].mxu0
    %v1707 = vpop.f32.mrb[0].mxu0
    %v1708 = vadd.f32 %v340, %v1707
    %v1709 = vpop.f32.mrb[0].mxu0
    %1710 = vmatprep.mubr.bf16.mxu0 0
    %1711 = vmatmul.mubr.bf16.gmra.mrb[0].mxu0 %v919
    %v1712 = vpop.f32.mrb[0].mxu0
    %v1713 = vadd.f32 %v340, %v1712
    %v1714 = vpop.f32.mrb[0].mxu0
    %v1715 = vpop.f32.mrb[0].mxu0
    %v1716 = vadd.f32 %v340, %v1715
    %v1717 = vpop.f32.mrb[0].mxu0
    %1718 = vmatprep.mubr.bf16.mxu0 0
    %1719 = vmatmul.mubr.bf16.gmra.mrb[0].mxu0 %v920
    %v1720 = vpop.f32.mrb[0].mxu0
    %v1721 = vadd.f32 %v340, %v1720
    %v1722 = vpop.f32.mrb[0].mxu0
    %v1723 = vpop.f32.mrb[0].mxu0
    %v1724 = vadd.f32 %v340, %v1723
    %v1725 = vpop.f32.mrb[0].mxu0
    %1726 = vmatprep.mubr.bf16.mxu0 0
    %1727 = vmatmul.mubr.bf16.gmra.mrb[0].mxu0 %v921
    %v1728 = vpop.f32.mrb[0].mxu0
    %v1729 = vadd.f32 %v340, %v1728
    %v1730 = vpop.f32.mrb[0].mxu0
    %v1731 = vpop.f32.mrb[0].mxu0
    %v1732 = vadd.f32 %v340, %v1731
    %v1733 = vpop.f32.mrb[0].mxu0
    %1734 = vmatprep.mubr.bf16.mxu0 0
    %1735 = vmatmul.mubr.bf16.gmra.mrb[0].mxu0 %v922
    %v1736 = vpop.f32.mrb[0].mxu0
    %v1737 = vadd.f32 %v340, %v1736
    %v1738 = vpop.f32.mrb[0].mxu0
    %v1739 = vpop.f32.mrb[0].mxu0
    %v1740 = vadd.f32 %v340, %v1739
    %v1741 = vpop.f32.mrb[0].mxu0
    %1742 = vmatprep.mubr.bf16.mxu0 0
    %1743 = vmatmul.mubr.bf16.gmra.mrb[0].mxu0 %v923
    %v1744 = vpop.f32.mrb[0].mxu0
    %v1745 = vadd.f32 %v340, %v1744
    %v1746 = vpop.f32.mrb[0].mxu0
    %v1747 = vpop.f32.mrb[0].mxu0
    %v1748 = vadd.f32 %v340, %v1747
    %v1749 = vpop.f32.mrb[0].mxu0
    %1750 = vmatprep.mubr.bf16.mxu0 0
    %1751 = vmatmul.mubr.bf16.gmra.mrb[0].mxu0 %v924
    %v1752 = vpop.f32.mrb[0].mxu0
    %v1753 = vadd.f32 %v340, %v1752
    %v1754 = vpop.f32.mrb[0].mxu0
    %v1755 = vpop.f32.mrb[0].mxu0
    %v1756 = vadd.f32 %v340, %v1755
    %v1757 = vpop.f32.mrb[0].mxu0
    %1758 = vmatprep.mubr.bf16.mxu0 0
    %1759 = vmatmul.mubr.bf16.gmra.mrb[0].mxu0 %v925
    %v1760 = vpop.f32.mrb[0].mxu0
    %v1761 = vadd.f32 %v340, %v1760
    %v1762 = vpop.f32.mrb[0].mxu0
    %v1763 = vpop.f32.mrb[0].mxu0
    %v1764 = vadd.f32 %v340, %v1763
    %v1765 = vpop.f32.mrb[0].mxu0
    %1766 = vmatprep.mubr.bf16.mxu0 0
    %1767 = vmatmul.mubr.bf16.gmra.mrb[0].mxu0 %v926
    %v1768 = vpop.f32.mrb[0].mxu0
    %v1769 = vadd.f32 %v340, %v1768
    %v1770 = vpop.f32.mrb[0].mxu0
    %v1771 = vpop.f32.mrb[0].mxu0
    %v1772 = vadd.f32 %v340, %v1771
    %v1773 = vpop.f32.mrb[0].mxu0
    %1774 = vmatprep.mubr.bf16.mxu0 0
    %1775 = vmatmul.mubr.bf16.gmra.mrb[0].mxu0 %v927
    %v1776 = vpop.f32.mrb[0].mxu0
    %v1777 = vadd.f32 %v340, %v1776
    %v1778 = vpop.f32.mrb[0].mxu0
    %v1779 = vpop.f32.mrb[0].mxu0
    %v1780 = vadd.f32 %v340, %v1779
    %v1781 = vpop.f32.mrb[0].mxu0
    %1782 = vmatprep.mubr.bf16.mxu0 0
    %1783 = vmatmul.mubr.bf16.gmra.mrb[0].mxu0 %v928
    %v1784 = vpop.f32.mrb[0].mxu0
    %v1785 = vadd.f32 %v340, %v1784
    %v1786 = vpop.f32.mrb[0].mxu0
    %v1787 = vpop.f32.mrb[0].mxu0
    %v1788 = vadd.f32 %v340, %v1787
    %v1789 = vpop.f32.mrb[0].mxu0
    %1790 = vmatprep.mubr.bf16.mxu0 0
    %1791 = vmatmul.mubr.bf16.gmra.mrb[0].mxu0 %v929
    %v1792 = vpop.f32.mrb[0].mxu0
    %v1793 = vadd.f32 %v340, %v1792
    %v1794 = vpop.f32.mrb[0].mxu0
    %v1795 = vpop.f32.mrb[0].mxu0
    %v1796 = vadd.f32 %v340, %v1795
    %v1797 = vpop.f32.mrb[0].mxu0
    %1798 = vmatprep.mubr.bf16.mxu0 0
    %1799 = vmatmul.mubr.bf16.gmra.mrb[0].mxu0 %v930
    %v1800 = vpop.f32.mrb[0].mxu0
    %v1801 = vadd.f32 %v340, %v1800
    %v1802 = vpop.f32.mrb[0].mxu0
    %v1803 = vpop.f32.mrb[0].mxu0
    %v1804 = vadd.f32 %v340, %v1803
    %v1805 = vpop.f32.mrb[0].mxu0
    %1806 = vmatprep.mubr.bf16.mxu0 0
    %1807 = vmatmul.mubr.bf16.gmra.mrb[0].mxu0 %v931
    %v1808 = vpop.f32.mrb[0].mxu0
    %v1809 = vadd.f32 %v340, %v1808
    %v1810 = vpop.f32.mrb[0].mxu0
    %v1811 = vpop.f32.mrb[0].mxu0
    %v1812 = vadd.f32 %v340, %v1811
    %v1813 = vpop.f32.mrb[0].mxu0
    %1814 = vmatprep.mubr.bf16.mxu0 0
    %1815 = vmatmul.mubr.bf16.gmra.mrb[0].mxu0 %v932
    %v1816 = vpop.f32.mrb[0].mxu0
    %v1817 = vadd.f32 %v340, %v1816
    %v1818 = vpop.f32.mrb[0].mxu0
    %v1819 = vpop.f32.mrb[0].mxu0
    %v1820 = vadd.f32 %v340, %v1819
    %v1821 = vpop.f32.mrb[0].mxu0
    %1822 = vmatprep.mubr.bf16.mxu0 0
    %1823 = vmatmul.mubr.bf16.gmra.mrb[0].mxu0 %v933
    %v1824 = vpop.f32.mrb[0].mxu0
    %v1825 = vadd.f32 %v340, %v1824
    %v1826 = vpop.f32.mrb[0].mxu0
    %v1827 = vpop.f32.mrb[0].mxu0
    %v1828 = vadd.f32 %v340, %v1827
    %v1829 = vpop.f32.mrb[0].mxu0
    %1830 = vmatprep.mubr.bf16.mxu0 0
    %1831 = vmatmul.mubr.bf16.gmra.mrb[0].mxu0 %v934
    %v1832 = vpop.f32.mrb[0].mxu0
    %v1833 = vadd.f32 %v340, %v1832
    %v1834 = vpop.f32.mrb[0].mxu0
    %v1835 = vpop.f32.mrb[0].mxu0
    %v1836 = vadd.f32 %v340, %v1835
    %v1837 = vpop.f32.mrb[0].mxu0
    %1838 = vmatprep.mubr.bf16.mxu0 0
    %1839 = vmatmul.mubr.bf16.gmra.mrb[0].mxu0 %v935
    %v1840 = vpop.f32.mrb[0].mxu0
    %v1841 = vadd.f32 %v340, %v1840
    %v1842 = vpop.f32.mrb[0].mxu0
    %v1843 = vpop.f32.mrb[0].mxu0
    %v1844 = vadd.f32 %v340, %v1843
    %v1845 = vpop.f32.mrb[0].mxu0
    %1846 = vmatprep.mubr.bf16.mxu0 0
    %1847 = vmatmul.mubr.bf16.gmra.mrb[0].mxu0 %v936
    %v1848 = vpop.f32.mrb[0].mxu0
    %v1849 = vadd.f32 %v340, %v1848
    %v1850 = vpop.f32.mrb[0].mxu0
    %v1851 = vpop.f32.mrb[0].mxu0
    %v1852 = vadd.f32 %v340, %v1851
    %v1853 = vpop.f32.mrb[0].mxu0
    %1854 = vmatprep.mubr.bf16.mxu0 0
    %1855 = vmatmul.mubr.bf16.gmra.mrb[0].mxu0 %v937
    %v1856 = vpop.f32.mrb[0].mxu0
    %v1857 = vadd.f32 %v340, %v1856
    %v1858 = vpop.f32.mrb[0].mxu0
    %v1859 = vpop.f32.mrb[0].mxu0
    %v1860 = vadd.f32 %v340, %v1859
    %v1861 = vpop.f32.mrb[0].mxu0
    %1862 = vmatprep.mubr.bf16.mxu0 0
    %1863 = vmatmul.mubr.bf16.gmra.mrb[0].mxu0 %v938
    %v1864 = vpop.f32.mrb[0].mxu0
    %v1865 = vadd.f32 %v340, %v1864
    %v1866 = vpop.f32.mrb[0].mxu0
    %v1867 = vpop.f32.mrb[0].mxu0
    %v1868 = vadd.f32 %v340, %v1867
    %v1869 = vpop.f32.mrb[0].mxu0
    %1870 = vmatprep.mubr.bf16.mxu0 0
    %1871 = vmatmul.mubr.bf16.gmra.mrb[0].mxu0 %v939
    %v1872 = vpop.f32.mrb[0].mxu0
    %v1873 = vadd.f32 %v340, %v1872
    %v1874 = vpop.f32.mrb[0].mxu0
    %v1875 = vpop.f32.mrb[0].mxu0
    %v1876 = vadd.f32 %v340, %v1875
    %v1877 = vpop.f32.mrb[0].mxu0
    %1878 = vmatprep.mubr.bf16.mxu0 0
    %1879 = vmatmul.mubr.bf16.gmra.mrb[0].mxu0 %v940
    %v1880 = vpop.f32.mrb[0].mxu0
    %v1881 = vadd.f32 %v340, %v1880
    %v1882 = vpop.f32.mrb[0].mxu0
    %v1883 = vpop.f32.mrb[0].mxu0
    %v1884 = vadd.f32 %v340, %v1883
    %v1885 = vpop.f32.mrb[0].mxu0
    %1886 = vmatprep.mubr.bf16.mxu0 0
    %1887 = vmatmul.mubr.bf16.gmra.mrb[0].mxu0 %v941
    %v1888 = vpop.f32.mrb[0].mxu0
    %v1889 = vadd.f32 %v340, %v1888
    %v1890 = vpop.f32.mrb[0].mxu0
    %v1891 = vpop.f32.mrb[0].mxu0
    %v1892 = vadd.f32 %v340, %v1891
    %v1893 = vpop.f32.mrb[0].mxu0
    %1894 = vmatprep.mubr.bf16.mxu0 0
    %1895 = vmatmul.mubr.bf16.gmra.mrb[0].mxu0 %v942
    %v1896 = vpop.f32.mrb[0].mxu0
    %v1897 = vadd.f32 %v340, %v1896
    %v1898 = vpop.f32.mrb[0].mxu0
    %v1899 = vpop.f32.mrb[0].mxu0
    %v1900 = vadd.f32 %v340, %v1899
    %v1901 = vpop.f32.mrb[0].mxu0
    %1902 = vmatprep.mubr.bf16.mxu0 0
    %1903 = vmatmul.mubr.bf16.gmra.mrb[0].mxu0 %v943
    %v1904 = vpop.f32.mrb[0].mxu0
    %v1905 = vadd.f32 %v340, %v1904
    %v1906 = vpop.f32.mrb[0].mxu0
    %v1907 = vpop.f32.mrb[0].mxu0
    %v1908 = vadd.f32 %v340, %v1907
    %v1909 = vpop.f32.mrb[0].mxu0
    %1910 = vmatprep.mubr.bf16.mxu0 0
    %1911 = vmatmul.mubr.bf16.gmra.mrb[0].mxu0 %v944
    %v1912 = vpop.f32.mrb[0].mxu0
    %v1913 = vadd.f32 %v340, %v1912
    %v1914 = vpop.f32.mrb[0].mxu0
    %v1915 = vpop.f32.mrb[0].mxu0
    %v1916 = vadd.f32 %v340, %v1915
    %v1917 = vpop.f32.mrb[0].mxu0
    %1918 = vmatprep.mubr.bf16.mxu0 0
    %1919 = vmatmul.mubr.bf16.gmra.mrb[0].mxu0 %v945
    %v1920 = vpop.f32.mrb[0].mxu0
    %v1921 = vadd.f32 %v340, %v1920
    %v1922 = vpop.f32.mrb[0].mxu0
    %v1923 = vpop.f32.mrb[0].mxu0
    %v1924 = vadd.f32 %v340, %v1923
    %v1925 = vpop.f32.mrb[0].mxu0
    %1926 = vmatprep.mubr.bf16.mxu0 0
    %1927 = vmatmul.mubr.bf16.gmra.mrb[0].mxu0 %v946
    %v1928 = vpop.f32.mrb[0].mxu0
    %v1929 = vadd.f32 %v340, %v1928
    %v1930 = vpop.f32.mrb[0].mxu0
    %v1931 = vpop.f32.mrb[0].mxu0
    %v1932 = vadd.f32 %v340, %v1931
    %v1933 = vpop.f32.mrb[0].mxu0
    %1934 = vmatprep.mubr.bf16.mxu0 0
    %1935 = vmatmul.mubr.bf16.gmra.mrb[0].mxu0 %v947
    %v1936 = vpop.f32.mrb[0].mxu0
    %v1937 = vadd.f32 %v340, %v1936
    %v1938 = vpop.f32.mrb[0].mxu0
    %v1939 = vpop.f32.mrb[0].mxu0
    %v1940 = vadd.f32 %v340, %v1939
    %v1941 = vpop.f32.mrb[0].mxu0
    %1942 = vmatprep.mubr.bf16.mxu0 0
    %1943 = vmatmul.mubr.bf16.gmra.mrb[0].mxu0 %v948
    %v1944 = vpop.f32.mrb[0].mxu0
    %v1945 = vadd.f32 %v340, %v1944
    %v1946 = vpop.f32.mrb[0].mxu0
    %v1947 = vpop.f32.mrb[0].mxu0
    %v1948 = vadd.f32 %v340, %v1947
    %v1949 = vpop.f32.mrb[0].mxu0
    %1950 = vmatprep.mubr.bf16.mxu0 0
    %1951 = vmatmul.mubr.bf16.gmra.mrb[0].mxu0 %v949
    %v1952 = vpop.f32.mrb[0].mxu0
    %v1953 = vadd.f32 %v340, %v1952
    %v1954 = vpop.f32.mrb[0].mxu0
    %v1955 = vpop.f32.mrb[0].mxu0
    %v1956 = vadd.f32 %v340, %v1955
    %v1957 = vpop.f32.mrb[0].mxu0
    %1958 = vmatprep.mubr.bf16.mxu0 0
    %1959 = vmatmul.mubr.bf16.gmra.mrb[0].mxu0 %v950
    %v1960 = vpop.f32.mrb[0].mxu0
    %v1961 = vadd.f32 %v340, %v1960
    %v1962 = vpop.f32.mrb[0].mxu0
    %v1963 = vpop.f32.mrb[0].mxu0
    %v1964 = vadd.f32 %v340, %v1963
    %v1965 = vpop.f32.mrb[0].mxu0
    %1966 = vmatprep.mubr.bf16.mxu0 0
    %1967 = vmatmul.mubr.bf16.gmra.mrb[0].mxu0 %v951
    %v1968 = vpop.f32.mrb[0].mxu0
    %v1969 = vadd.f32 %v340, %v1968
    %v1970 = vpop.f32.mrb[0].mxu0
    %v1971 = vpop.f32.mrb[0].mxu0
    %v1972 = vadd.f32 %v340, %v1971
    %v1973 = vpop.f32.mrb[0].mxu0
    %1974 = vmatprep.mubr.bf16.mxu0 0
    %1975 = vmatmul.mubr.bf16.gmra.mrb[0].mxu0 %v952
    %v1976 = vpop.f32.mrb[0].mxu0
    %v1977 = vadd.f32 %v340, %v1976
    %v1978 = vpop.f32.mrb[0].mxu0
    %v1979 = vpop.f32.mrb[0].mxu0
    %v1980 = vadd.f32 %v340, %v1979
    %v1981 = vpop.f32.mrb[0].mxu0
    %1982 = vmatprep.mubr.bf16.mxu0 0
    %1983 = vmatmul.mubr.bf16.gmra.mrb[0].mxu0 %v953
    %v1984 = vpop.f32.mrb[0].mxu0
    %v1985 = vadd.f32 %v340, %v1984
    %v1986 = vpop.f32.mrb[0].mxu0
    %v1987 = vpop.f32.mrb[0].mxu0
    %v1988 = vadd.f32 %v340, %v1987
    %v1989 = vpop.f32.mrb[0].mxu0
    %1990 = vmatprep.mubr.bf16.mxu0 0
    %1991 = vmatmul.mubr.bf16.gmra.mrb[0].mxu0 %v954
    %v1992 = vpop.f32.mrb[0].mxu0
    %v1993 = vadd.f32 %v340, %v1992
    %v1994 = vpop.f32.mrb[0].mxu0
    %v1995 = vpop.f32.mrb[0].mxu0
    %v1996 = vadd.f32 %v340, %v1995
    %v1997 = vpop.f32.mrb[0].mxu0
    %1998 = vmatprep.mubr.bf16.mxu0 0
    %1999 = vmatmul.mubr.bf16.gmra.mrb[0].mxu0 %v955
    %v2000 = vpop.f32.mrb[0].mxu0
    %v2001 = vadd.f32 %v340, %v2000
    %v2002 = vpop.f32.mrb[0].mxu0
    %v2003 = vpop.f32.mrb[0].mxu0
    %v2004 = vadd.f32 %v340, %v2003
    %v2005 = vpop.f32.mrb[0].mxu0
    %2006 = vmatprep.mubr.bf16.mxu0 0
    %2007 = vmatmul.mubr.bf16.gmra.mrb[0].mxu0 %v956
    %v2008 = vpop.f32.mrb[0].mxu0
    %v2009 = vadd.f32 %v340, %v2008
    %v2010 = vpop.f32.mrb[0].mxu0
    %v2011 = vpop.f32.mrb[0].mxu0
    %v2012 = vadd.f32 %v340, %v2011
    %v2013 = vpop.f32.mrb[0].mxu0
    %2014 = vmatprep.mubr.bf16.mxu0 0
    %2015 = vmatmul.mubr.bf16.gmra.mrb[0].mxu0 %v957
    %v2016 = vpop.f32.mrb[0].mxu0
    %v2017 = vadd.f32 %v340, %v2016
    %v2018 = vpop.f32.mrb[0].mxu0
    %v2019 = vpop.f32.mrb[0].mxu0
    %v2020 = vadd.f32 %v340, %v2019
    %v2021 = vpop.f32.mrb[0].mxu0
    %2022 = vmatprep.mubr.bf16.mxu0 0
    %2023 = vmatmul.mubr.bf16.gmra.mrb[0].mxu0 %v958
    %v2024 = vpop.f32.mrb[0].mxu0
    %v2025 = vadd.f32 %v340, %v2024
    %v2026 = vpop.f32.mrb[0].mxu0
    %v2027 = vpop.f32.mrb[0].mxu0
    %v2028 = vadd.f32 %v340, %v2027
    %v2029 = vpop.f32.mrb[0].mxu0
    %2030 = vmatprep.mubr.bf16.mxu0 0
    %2031 = vmatmul.mubr.bf16.gmra.mrb[0].mxu0 %v959
    %v2032 = vpop.f32.mrb[0].mxu0
    %v2033 = vadd.f32 %v340, %v2032
    %v2034 = vpop.f32.mrb[0].mxu0
    %v2035 = vpop.f32.mrb[0].mxu0
    %v2036 = vadd.f32 %v340, %v2035
    %v2037 = vpop.f32.mrb[0].mxu0
    %2038 = vmatprep.mubr.bf16.mxu0 0
    %2039 = vmatmul.mubr.bf16.gmra.mrb[0].mxu0 %v960
    %v2040 = vpop.f32.mrb[0].mxu0
    %v2041 = vadd.f32 %v340, %v2040
    %v2042 = vpop.f32.mrb[0].mxu0
    %v2043 = vpop.f32.mrb[0].mxu0
    %v2044 = vadd.f32 %v340, %v2043
    %v2045 = vpop.f32.mrb[0].mxu0
    %2046 = vmatprep.mubr.bf16.mxu0 0
    %2047 = vmatmul.mubr.bf16.gmra.mrb[0].mxu0 %v961
    %v2048 = vpop.f32.mrb[0].mxu0
    %v2049 = vadd.f32 %v340, %v2048
    %v2050 = vpop.f32.mrb[0].mxu0
    %v2051 = vpop.f32.mrb[0].mxu0
    %v2052 = vadd.f32 %v340, %v2051
    %v2053 = vpop.f32.mrb[0].mxu0
    %2054 = vmatprep.mubr.bf16.mxu0 0
    %2055 = vmatmul.mubr.bf16.gmra.mrb[0].mxu0 %v962
    %v2056 = vpop.f32.mrb[0].mxu0
    %v2057 = vadd.f32 %v340, %v2056
    %v2058 = vpop.f32.mrb[0].mxu0
    %v2059 = vpop.f32.mrb[0].mxu0
    %v2060 = vadd.f32 %v340, %v2059
    %v2061 = vpop.f32.mrb[0].mxu0
    %2062 = vmatprep.mubr.bf16.mxu0 0
    %2063 = vmatmul.mubr.bf16.gmra.mrb[0].mxu0 %v963
    %v2064 = vpop.f32.mrb[0].mxu0
    %v2065 = vadd.f32 %v340, %v2064
    %v2066 = vpop.f32.mrb[0].mxu0
    %v2067 = vpop.f32.mrb[0].mxu0
    %v2068 = vadd.f32 %v340, %v2067
    %v2069 = vpop.f32.mrb[0].mxu0
    %2070 = vmatprep.mubr.bf16.mxu0 0
    %2071 = vmatmul.mubr.bf16.gmra.mrb[0].mxu0 %v964
    %v2072 = vpop.f32.mrb[0].mxu0
    %v2073 = vadd.f32 %v340, %v2072
    %v2074 = vpop.f32.mrb[0].mxu0
    %v2075 = vpop.f32.mrb[0].mxu0
    %v2076 = vadd.f32 %v340, %v2075
    %v2077 = vpop.f32.mrb[0].mxu0
    %2078 = vmatprep.mubr.bf16.mxu0 0
    %2079 = vmatmul.mubr.bf16.gmra.mrb[0].mxu0 %v965
    %v2080 = vpop.f32.mrb[0].mxu0
    %v2081 = vadd.f32 %v340, %v2080
    %v2082 = vpop.f32.mrb[0].mxu0
    %v2083 = vpop.f32.mrb[0].mxu0
    %v2084 = vadd.f32 %v340, %v2083
    %v2085 = vpop.f32.mrb[0].mxu0
    %2086 = vmatprep.mubr.bf16.mxu0 0
    %2087 = vmatmul.mubr.bf16.gmra.mrb[0].mxu0 %v966
    %v2088 = vpop.f32.mrb[0].mxu0
    %v2089 = vadd.f32 %v340, %v2088
    %v2090 = vpop.f32.mrb[0].mxu0
    %v2091 = vpop.f32.mrb[0].mxu0
    %v2092 = vadd.f32 %v340, %v2091
    %v2093 = vpop.f32.mrb[0].mxu0
    %2094 = vmatprep.mubr.bf16.mxu0 0
    %2095 = vmatmul.mubr.bf16.gmra.mrb[0].mxu0 %v967
    %v2096 = vpop.f32.mrb[0].mxu0
    %v2097 = vadd.f32 %v340, %v2096
    %v2098 = vpop.f32.mrb[0].mxu0
    %v2099 = vpop.f32.mrb[0].mxu0
    %v2100 = vadd.f32 %v340, %v2099
    %v2101 = vpop.f32.mrb[0].mxu0
    %2102 = vmatprep.mubr.bf16.mxu0 0
    %2103 = vmatmul.mubr.bf16.gmra.mrb[0].mxu0 %v968
    %v2104 = vpop.f32.mrb[0].mxu0
    %v2105 = vadd.f32 %v340, %v2104
    %v2106 = vpop.f32.mrb[0].mxu0
    %v2107 = vpop.f32.mrb[0].mxu0
    %v2108 = vadd.f32 %v340, %v2107
    %v2109 = vpop.f32.mrb[0].mxu0
    %2110 = vmatprep.mubr.bf16.mxu0 0
    %2111 = vmatmul.mubr.bf16.gmra.mrb[0].mxu0 %v969
    %v2112 = vpop.f32.mrb[0].mxu0
    %v2113 = vadd.f32 %v340, %v2112
    %v2114 = vpop.f32.mrb[0].mxu0
    %v2115 = vpop.f32.mrb[0].mxu0
    %v2116 = vadd.f32 %v340, %v2115
    %v2117 = vpop.f32.mrb[0].mxu0
    %2118 = vmatprep.mubr.bf16.mxu0 0
    %2119 = vmatmul.mubr.bf16.gmra.mrb[0].mxu0 %v970
    %v2120 = vpop.f32.mrb[0].mxu0
    %v2121 = vadd.f32 %v340, %v2120
    %v2122 = vpop.f32.mrb[0].mxu0
    %v2123 = vpop.f32.mrb[0].mxu0
    %v2124 = vadd.f32 %v340, %v2123
    %v2125 = vpop.f32.mrb[0].mxu0
    %2126 = vmatprep.mubr.bf16.mxu0 0
    %2127 = vmatmul.mubr.bf16.gmra.mrb[0].mxu0 %v971
    %v2128 = vpop.f32.mrb[0].mxu0
    %v2129 = vadd.f32 %v340, %v2128
    %v2130 = vpop.f32.mrb[0].mxu0
    %v2131 = vpop.f32.mrb[0].mxu0
    %v2132 = vadd.f32 %v340, %v2131
    %v2133 = vpop.f32.mrb[0].mxu0
    %2134 = vmatprep.mubr.bf16.mxu0 0
    %2135 = vmatmul.mubr.bf16.gmra.mrb[0].mxu0 %v972
    %v2136 = vpop.f32.mrb[0].mxu0
    %v2137 = vadd.f32 %v340, %v2136
    %v2138 = vpop.f32.mrb[0].mxu0
    %v2139 = vpop.f32.mrb[0].mxu0
    %v2140 = vadd.f32 %v340, %v2139
    %v2141 = vpop.f32.mrb[0].mxu0
    %2142 = vmatprep.mubr.bf16.mxu0 0
    %2143 = vmatmul.mubr.bf16.gmra.mrb[0].mxu0 %v973
    %v2144 = vpop.f32.mrb[0].mxu0
    %v2145 = vadd.f32 %v340, %v2144
    %v2146 = vpop.f32.mrb[0].mxu0
    %v2147 = vpop.f32.mrb[0].mxu0
    %v2148 = vadd.f32 %v340, %v2147
    %v2149 = vpop.f32.mrb[0].mxu0
    %2150 = vmatprep.mubr.bf16.mxu0 0
    %2151 = vmatmul.mubr.bf16.gmra.mrb[0].mxu0 %v974
    %v2152 = vpop.f32.mrb[0].mxu0
    %v2153 = vadd.f32 %v340, %v2152
    %v2154 = vpop.f32.mrb[0].mxu0
    %v2155 = vpop.f32.mrb[0].mxu0
    %v2156 = vadd.f32 %v340, %v2155
    %v2157 = vpop.f32.mrb[0].mxu0
    %2158 = vmatprep.mubr.bf16.mxu0 0
    %2159 = vmatmul.mubr.bf16.gmra.mrb[0].mxu0 %v975
    %v2160 = vpop.f32.mrb[0].mxu0
    %v2161 = vadd.f32 %v340, %v2160
    %v2162 = vpop.f32.mrb[0].mxu0
    %v2163 = vpop.f32.mrb[0].mxu0
    %v2164 = vadd.f32 %v340, %v2163
    %v2165 = vpop.f32.mrb[0].mxu0
    %2166 = vmatprep.mubr.bf16.mxu0 0
    %2167 = vmatmul.mubr.bf16.gmra.mrb[0].mxu0 %v976
    %v2168 = vpop.f32.mrb[0].mxu0
    %v2169 = vadd.f32 %v340, %v2168
    %v2170 = vpop.f32.mrb[0].mxu0
    %v2171 = vpop.f32.mrb[0].mxu0
    %v2172 = vadd.f32 %v340, %v2171
    %v2173 = vpop.f32.mrb[0].mxu0
    %2174 = vmatprep.mubr.bf16.mxu0 0
    %2175 = vmatmul.mubr.bf16.gmra.mrb[0].mxu0 %v977
    %v2176 = vpop.f32.mrb[0].mxu0
    %v2177 = vadd.f32 %v340, %v2176
    %v2178 = vpop.f32.mrb[0].mxu0
    %v2179 = vpop.f32.mrb[0].mxu0
    %v2180 = vadd.f32 %v340, %v2179
    %v2181 = vpop.f32.mrb[0].mxu0
    %2182 = vmatprep.mubr.bf16.mxu0 0
    %2183 = vmatmul.mubr.bf16.gmra.mrb[0].mxu0 %v978
    %v2184 = vpop.f32.mrb[0].mxu0
    %v2185 = vadd.f32 %v340, %v2184
    %v2186 = vpop.f32.mrb[0].mxu0
    %v2187 = vpop.f32.mrb[0].mxu0
    %v2188 = vadd.f32 %v340, %v2187
    %v2189 = vpop.f32.mrb[0].mxu0
    %2190 = vmatprep.mubr.bf16.mxu0 0
    %2191 = vmatmul.mubr.bf16.gmra.mrb[0].mxu0 %v979
    %v2192 = vpop.f32.mrb[0].mxu0
    %v2193 = vadd.f32 %v340, %v2192
    %v2194 = vpop.f32.mrb[0].mxu0
    %v2195 = vpop.f32.mrb[0].mxu0
    %v2196 = vadd.f32 %v340, %v2195
    %v2197 = vpop.f32.mrb[0].mxu0
    %2198 = vmatprep.mubr.bf16.mxu0 0
    %2199 = vmatmul.mubr.bf16.gmra.mrb[0].mxu0 %v980
    %v2200 = vpop.f32.mrb[0].mxu0
    %v2201 = vadd.f32 %v340, %v2200
    %v2202 = vpop.f32.mrb[0].mxu0
    %v2203 = vpop.f32.mrb[0].mxu0
    %v2204 = vadd.f32 %v340, %v2203
    %v2205 = vpop.f32.mrb[0].mxu0
    %2206 = vmatprep.mubr.bf16.mxu0 0
    %2207 = vmatmul.mubr.bf16.gmra.mrb[0].mxu0 %v981
    %v2208 = vpop.f32.mrb[0].mxu0
    %v2209 = vadd.f32 %v340, %v2208
    %v2210 = vpop.f32.mrb[0].mxu0
    %v2211 = vpop.f32.mrb[0].mxu0
    %v2212 = vadd.f32 %v340, %v2211
    %v2213 = vpop.f32.mrb[0].mxu0
    %2214 = vdwg.mxu0
    %v2215 = vmax.f32 %v1193, 0.0
    %v2216 = vmax.f32 %v1196, 0.0
    %v2217 = vmax.f32 %v1201, 0.0
    %v2218 = vmax.f32 %v1204, 0.0
    %v2219 = vmax.f32 %v1209, 0.0
    %v2220 = vmax.f32 %v1212, 0.0
    %v2221 = vmax.f32 %v1217, 0.0
    %v2222 = vmax.f32 %v1220, 0.0
    %v2223 = vmax.f32 %v1225, 0.0
    %v2224 = vmax.f32 %v1228, 0.0
    %v2225 = vmax.f32 %v1233, 0.0
    %v2226 = vmax.f32 %v1236, 0.0
    %v2227 = vmax.f32 %v1241, 0.0
    %v2228 = vmax.f32 %v1244, 0.0
    %v2229 = vmax.f32 %v1249, 0.0
    %v2230 = vmax.f32 %v1252, 0.0
    %v2231 = vmax.f32 %v1257, 0.0
    %v2232 = vmax.f32 %v1260, 0.0
    %v2233 = vmax.f32 %v1265, 0.0
    %v2234 = vmax.f32 %v1268, 0.0
    %v2235 = vmax.f32 %v1273, 0.0
    %v2236 = vmax.f32 %v1276, 0.0
    %v2237 = vmax.f32 %v1281, 0.0
    %v2238 = vmax.f32 %v1284, 0.0
    %v2239 = vmax.f32 %v1289, 0.0
    %v2240 = vmax.f32 %v1292, 0.0
    %v2241 = vmax.f32 %v1297, 0.0
    %v2242 = vmax.f32 %v1300, 0.0
    %v2243 = vmax.f32 %v1305, 0.0
    %v2244 = vmax.f32 %v1308, 0.0
    %v2245 = vmax.f32 %v1313, 0.0
    %v2246 = vmax.f32 %v1316, 0.0
    %v2247 = vmax.f32 %v1321, 0.0
    %v2248 = vmax.f32 %v1324, 0.0
    %v2249 = vmax.f32 %v1329, 0.0
    %v2250 = vmax.f32 %v1332, 0.0
    %v2251 = vmax.f32 %v1337, 0.0
    %v2252 = vmax.f32 %v1340, 0.0
    %v2253 = vmax.f32 %v1345, 0.0
    %v2254 = vmax.f32 %v1348, 0.0
    %v2255 = vmax.f32 %v1353, 0.0
    %v2256 = vmax.f32 %v1356, 0.0
    %v2257 = vmax.f32 %v1361, 0.0
    %v2258 = vmax.f32 %v1364, 0.0
    %v2259 = vmax.f32 %v1369, 0.0
    %v2260 = vmax.f32 %v1372, 0.0
    %v2261 = vmax.f32 %v1377, 0.0
    %v2262 = vmax.f32 %v1380, 0.0
    %v2263 = vmax.f32 %v1385, 0.0
    %v2264 = vmax.f32 %v1388, 0.0
    %v2265 = vmax.f32 %v1393, 0.0
    %v2266 = vmax.f32 %v1396, 0.0
    %v2267 = vmax.f32 %v1401, 0.0
    %v2268 = vmax.f32 %v1404, 0.0
    %v2269 = vmax.f32 %v1409, 0.0
    %v2270 = vmax.f32 %v1412, 0.0
    %v2271 = vmax.f32 %v1417, 0.0
    %v2272 = vmax.f32 %v1420, 0.0
    %v2273 = vmax.f32 %v1425, 0.0
    %v2274 = vmax.f32 %v1428, 0.0
    %v2275 = vmax.f32 %v1433, 0.0
    %v2276 = vmax.f32 %v1436, 0.0
    %v2277 = vmax.f32 %v1441, 0.0
    %v2278 = vmax.f32 %v1444, 0.0
    %v2279 = vmax.f32 %v1449, 0.0
    %v2280 = vmax.f32 %v1452, 0.0
    %v2281 = vmax.f32 %v1457, 0.0
    %v2282 = vmax.f32 %v1460, 0.0
    %v2283 = vmax.f32 %v1465, 0.0
    %v2284 = vmax.f32 %v1468, 0.0
    %v2285 = vmax.f32 %v1473, 0.0
    %v2286 = vmax.f32 %v1476, 0.0
    %v2287 = vmax.f32 %v1481, 0.0
    %v2288 = vmax.f32 %v1484, 0.0
    %v2289 = vmax.f32 %v1489, 0.0
    %v2290 = vmax.f32 %v1492, 0.0
    %v2291 = vmax.f32 %v1497, 0.0
    %v2292 = vmax.f32 %v1500, 0.0
    %v2293 = vmax.f32 %v1505, 0.0
    %v2294 = vmax.f32 %v1508, 0.0
    %v2295 = vmax.f32 %v1513, 0.0
    %v2296 = vmax.f32 %v1516, 0.0
    %v2297 = vmax.f32 %v1521, 0.0
    %v2298 = vmax.f32 %v1524, 0.0
    %v2299 = vmax.f32 %v1529, 0.0
    %v2300 = vmax.f32 %v1532, 0.0
    %v2301 = vmax.f32 %v1537, 0.0
    %v2302 = vmax.f32 %v1540, 0.0
    %v2303 = vmax.f32 %v1545, 0.0
    %v2304 = vmax.f32 %v1548, 0.0
    %v2305 = vmax.f32 %v1553, 0.0
    %v2306 = vmax.f32 %v1556, 0.0
    %v2307 = vmax.f32 %v1561, 0.0
    %v2308 = vmax.f32 %v1564, 0.0
    %v2309 = vmax.f32 %v1569, 0.0
    %v2310 = vmax.f32 %v1572, 0.0
    %v2311 = vmax.f32 %v1577, 0.0
    %v2312 = vmax.f32 %v1580, 0.0
    %v2313 = vmax.f32 %v1585, 0.0
    %v2314 = vmax.f32 %v1588, 0.0
    %v2315 = vmax.f32 %v1593, 0.0
    %v2316 = vmax.f32 %v1596, 0.0
    %v2317 = vmax.f32 %v1601, 0.0
    %v2318 = vmax.f32 %v1604, 0.0
    %v2319 = vmax.f32 %v1609, 0.0
    %v2320 = vmax.f32 %v1612, 0.0
    %v2321 = vmax.f32 %v1617, 0.0
    %v2322 = vmax.f32 %v1620, 0.0
    %v2323 = vmax.f32 %v1625, 0.0
    %v2324 = vmax.f32 %v1628, 0.0
    %v2325 = vmax.f32 %v1633, 0.0
    %v2326 = vmax.f32 %v1636, 0.0
    %v2327 = vmax.f32 %v1641, 0.0
    %v2328 = vmax.f32 %v1644, 0.0
    %v2329 = vmax.f32 %v1649, 0.0
    %v2330 = vmax.f32 %v1652, 0.0
    %v2331 = vmax.f32 %v1657, 0.0
    %v2332 = vmax.f32 %v1660, 0.0
    %v2333 = vmax.f32 %v1665, 0.0
    %v2334 = vmax.f32 %v1668, 0.0
    %v2335 = vmax.f32 %v1673, 0.0
    %v2336 = vmax.f32 %v1676, 0.0
    %v2337 = vmax.f32 %v1681, 0.0
    %v2338 = vmax.f32 %v1684, 0.0
    %v2339 = vmax.f32 %v1689, 0.0
    %v2340 = vmax.f32 %v1692, 0.0
    %v2341 = vmax.f32 %v1697, 0.0
    %v2342 = vmax.f32 %v1700, 0.0
    %v2343 = vmax.f32 %v1705, 0.0
    %v2344 = vmax.f32 %v1708, 0.0
    %v2345 = vmax.f32 %v1713, 0.0
    %v2346 = vmax.f32 %v1716, 0.0
    %v2347 = vmax.f32 %v1721, 0.0
    %v2348 = vmax.f32 %v1724, 0.0
    %v2349 = vmax.f32 %v1729, 0.0
    %v2350 = vmax.f32 %v1732, 0.0
    %v2351 = vmax.f32 %v1737, 0.0
    %v2352 = vmax.f32 %v1740, 0.0
    %v2353 = vmax.f32 %v1745, 0.0
    %v2354 = vmax.f32 %v1748, 0.0
    %v2355 = vmax.f32 %v1753, 0.0
    %v2356 = vmax.f32 %v1756, 0.0
    %v2357 = vmax.f32 %v1761, 0.0
    %v2358 = vmax.f32 %v1764, 0.0
    %v2359 = vmax.f32 %v1769, 0.0
    %v2360 = vmax.f32 %v1772, 0.0
    %v2361 = vmax.f32 %v1777, 0.0
    %v2362 = vmax.f32 %v1780, 0.0
    %v2363 = vmax.f32 %v1785, 0.0
    %v2364 = vmax.f32 %v1788, 0.0
    %v2365 = vmax.f32 %v1793, 0.0
    %v2366 = vmax.f32 %v1796, 0.0
    %v2367 = vmax.f32 %v1801, 0.0
    %v2368 = vmax.f32 %v1804, 0.0
    %v2369 = vmax.f32 %v1809, 0.0
    %v2370 = vmax.f32 %v1812, 0.0
    %v2371 = vmax.f32 %v1817, 0.0
    %v2372 = vmax.f32 %v1820, 0.0
    %v2373 = vmax.f32 %v1825, 0.0
    %v2374 = vmax.f32 %v1828, 0.0
    %v2375 = vmax.f32 %v1833, 0.0
    %v2376 = vmax.f32 %v1836, 0.0
    %v2377 = vmax.f32 %v1841, 0.0
    %v2378 = vmax.f32 %v1844, 0.0
    %v2379 = vmax.f32 %v1849, 0.0
    %v2380 = vmax.f32 %v1852, 0.0
    %v2381 = vmax.f32 %v1857, 0.0
    %v2382 = vmax.f32 %v1860, 0.0
    %v2383 = vmax.f32 %v1865, 0.0
    %v2384 = vmax.f32 %v1868, 0.0
    %v2385 = vmax.f32 %v1873, 0.0
    %v2386 = vmax.f32 %v1876, 0.0
    %v2387 = vmax.f32 %v1881, 0.0
    %v2388 = vmax.f32 %v1884, 0.0
    %v2389 = vmax.f32 %v1889, 0.0
    %v2390 = vmax.f32 %v1892, 0.0
    %v2391 = vmax.f32 %v1897, 0.0
    %v2392 = vmax.f32 %v1900, 0.0
    %v2393 = vmax.f32 %v1905, 0.0
    %v2394 = vmax.f32 %v1908, 0.0
    %v2395 = vmax.f32 %v1913, 0.0
    %v2396 = vmax.f32 %v1916, 0.0
    %v2397 = vmax.f32 %v1921, 0.0
    %v2398 = vmax.f32 %v1924, 0.0
    %v2399 = vmax.f32 %v1929, 0.0
    %v2400 = vmax.f32 %v1932, 0.0
    %v2401 = vmax.f32 %v1937, 0.0
    %v2402 = vmax.f32 %v1940, 0.0
    %v2403 = vmax.f32 %v1945, 0.0
    %v2404 = vmax.f32 %v1948, 0.0
    %v2405 = vmax.f32 %v1953, 0.0
    %v2406 = vmax.f32 %v1956, 0.0
    %v2407 = vmax.f32 %v1961, 0.0
    %v2408 = vmax.f32 %v1964, 0.0
    %v2409 = vmax.f32 %v1969, 0.0
    %v2410 = vmax.f32 %v1972, 0.0
    %v2411 = vmax.f32 %v1977, 0.0
    %v2412 = vmax.f32 %v1980, 0.0
    %v2413 = vmax.f32 %v1985, 0.0
    %v2414 = vmax.f32 %v1988, 0.0
    %v2415 = vmax.f32 %v1993, 0.0
    %v2416 = vmax.f32 %v1996, 0.0
    %v2417 = vmax.f32 %v2001, 0.0
    %v2418 = vmax.f32 %v2004, 0.0
    %v2419 = vmax.f32 %v2009, 0.0
    %v2420 = vmax.f32 %v2012, 0.0
    %v2421 = vmax.f32 %v2017, 0.0
    %v2422 = vmax.f32 %v2020, 0.0
    %v2423 = vmax.f32 %v2025, 0.0
    %v2424 = vmax.f32 %v2028, 0.0
    %v2425 = vmax.f32 %v2033, 0.0
    %v2426 = vmax.f32 %v2036, 0.0
    %v2427 = vmax.f32 %v2041, 0.0
    %v2428 = vmax.f32 %v2044, 0.0
    %v2429 = vmax.f32 %v2049, 0.0
    %v2430 = vmax.f32 %v2052, 0.0
    %v2431 = vmax.f32 %v2057, 0.0
    %v2432 = vmax.f32 %v2060, 0.0
    %v2433 = vmax.f32 %v2065, 0.0
    %v2434 = vmax.f32 %v2068, 0.0
    %v2435 = vmax.f32 %v2073, 0.0
    %v2436 = vmax.f32 %v2076, 0.0
    %v2437 = vmax.f32 %v2081, 0.0
    %v2438 = vmax.f32 %v2084, 0.0
    %v2439 = vmax.f32 %v2089, 0.0
    %v2440 = vmax.f32 %v2092, 0.0
    %v2441 = vmax.f32 %v2097, 0.0
    %v2442 = vmax.f32 %v2100, 0.0
    %v2443 = vmax.f32 %v2105, 0.0
    %v2444 = vmax.f32 %v2108, 0.0
    %v2445 = vmax.f32 %v2113, 0.0
    %v2446 = vmax.f32 %v2116, 0.0
    %v2447 = vmax.f32 %v2121, 0.0
    %v2448 = vmax.f32 %v2124, 0.0
    %v2449 = vmax.f32 %v2129, 0.0
    %v2450 = vmax.f32 %v2132, 0.0
    %v2451 = vmax.f32 %v2137, 0.0
    %v2452 = vmax.f32 %v2140, 0.0
    %v2453 = vmax.f32 %v2145, 0.0
    %v2454 = vmax.f32 %v2148, 0.0
    %v2455 = vmax.f32 %v2153, 0.0
    %v2456 = vmax.f32 %v2156, 0.0
    %v2457 = vmax.f32 %v2161, 0.0
    %v2458 = vmax.f32 %v2164, 0.0
    %v2459 = vmax.f32 %v2169, 0.0
    %v2460 = vmax.f32 %v2172, 0.0
    %v2461 = vmax.f32 %v2177, 0.0
    %v2462 = vmax.f32 %v2180, 0.0
    %v2463 = vmax.f32 %v2185, 0.0
    %v2464 = vmax.f32 %v2188, 0.0
    %v2465 = vmax.f32 %v2193, 0.0
    %v2466 = vmax.f32 %v2196, 0.0
    %v2467 = vmax.f32 %v2201, 0.0
    %v2468 = vmax.f32 %v2204, 0.0
    %v2469 = vmax.f32 %v2209, 0.0
    %v2470 = vmax.f32 %v2212, 0.0
    %v2471 = vmin.f32 %v2215, 6.0
    %v2472 = vmin.f32 %v2216, 6.0
    %v2473 = vmin.f32 %v2217, 6.0
    %v2474 = vmin.f32 %v2218, 6.0
    %v2475 = vmin.f32 %v2219, 6.0
    %v2476 = vmin.f32 %v2220, 6.0
    %v2477 = vmin.f32 %v2221, 6.0
    %v2478 = vmin.f32 %v2222, 6.0
    %v2479 = vmin.f32 %v2223, 6.0
    %v2480 = vmin.f32 %v2224, 6.0
    %v2481 = vmin.f32 %v2225, 6.0
    %v2482 = vmin.f32 %v2226, 6.0
    %v2483 = vmin.f32 %v2227, 6.0
    %v2484 = vmin.f32 %v2228, 6.0
    %v2485 = vmin.f32 %v2229, 6.0
    %v2486 = vmin.f32 %v2230, 6.0
    %v2487 = vmin.f32 %v2231, 6.0
    %v2488 = vmin.f32 %v2232, 6.0
    %v2489 = vmin.f32 %v2233, 6.0
    %v2490 = vmin.f32 %v2234, 6.0
    %v2491 = vmin.f32 %v2235, 6.0
    %v2492 = vmin.f32 %v2236, 6.0
    %v2493 = vmin.f32 %v2237, 6.0
    %v2494 = vmin.f32 %v2238, 6.0
    %v2495 = vmin.f32 %v2239, 6.0
    %v2496 = vmin.f32 %v2240, 6.0
    %v2497 = vmin.f32 %v2241, 6.0
    %v2498 = vmin.f32 %v2242, 6.0
    %v2499 = vmin.f32 %v2243, 6.0
    %v2500 = vmin.f32 %v2244, 6.0
    %v2501 = vmin.f32 %v2245, 6.0
    %v2502 = vmin.f32 %v2246, 6.0
    %v2503 = vmin.f32 %v2247, 6.0
    %v2504 = vmin.f32 %v2248, 6.0
    %v2505 = vmin.f32 %v2249, 6.0
    %v2506 = vmin.f32 %v2250, 6.0
    %v2507 = vmin.f32 %v2251, 6.0
    %v2508 = vmin.f32 %v2252, 6.0
    %v2509 = vmin.f32 %v2253, 6.0
    %v2510 = vmin.f32 %v2254, 6.0
    %v2511 = vmin.f32 %v2255, 6.0
    %v2512 = vmin.f32 %v2256, 6.0
    %v2513 = vmin.f32 %v2257, 6.0
    %v2514 = vmin.f32 %v2258, 6.0
    %v2515 = vmin.f32 %v2259, 6.0
    %v2516 = vmin.f32 %v2260, 6.0
    %v2517 = vmin.f32 %v2261, 6.0
    %v2518 = vmin.f32 %v2262, 6.0
    %v2519 = vmin.f32 %v2263, 6.0
    %v2520 = vmin.f32 %v2264, 6.0
    %v2521 = vmin.f32 %v2265, 6.0
    %v2522 = vmin.f32 %v2266, 6.0
    %v2523 = vmin.f32 %v2267, 6.0
    %v2524 = vmin.f32 %v2268, 6.0
    %v2525 = vmin.f32 %v2269, 6.0
    %v2526 = vmin.f32 %v2270, 6.0
    %v2527 = vmin.f32 %v2271, 6.0
    %v2528 = vmin.f32 %v2272, 6.0
    %v2529 = vmin.f32 %v2273, 6.0
    %v2530 = vmin.f32 %v2274, 6.0
    %v2531 = vmin.f32 %v2275, 6.0
    %v2532 = vmin.f32 %v2276, 6.0
    %v2533 = vmin.f32 %v2277, 6.0
    %v2534 = vmin.f32 %v2278, 6.0
    %v2535 = vmin.f32 %v2279, 6.0
    %v2536 = vmin.f32 %v2280, 6.0
    %v2537 = vmin.f32 %v2281, 6.0
    %v2538 = vmin.f32 %v2282, 6.0
    %v2539 = vmin.f32 %v2283, 6.0
    %v2540 = vmin.f32 %v2284, 6.0
    %v2541 = vmin.f32 %v2285, 6.0
    %v2542 = vmin.f32 %v2286, 6.0
    %v2543 = vmin.f32 %v2287, 6.0
    %v2544 = vmin.f32 %v2288, 6.0
    %v2545 = vmin.f32 %v2289, 6.0
    %v2546 = vmin.f32 %v2290, 6.0
    %v2547 = vmin.f32 %v2291, 6.0
    %v2548 = vmin.f32 %v2292, 6.0
    %v2549 = vmin.f32 %v2293, 6.0
    %v2550 = vmin.f32 %v2294, 6.0
    %v2551 = vmin.f32 %v2295, 6.0
    %v2552 = vmin.f32 %v2296, 6.0
    %v2553 = vmin.f32 %v2297, 6.0
    %v2554 = vmin.f32 %v2298, 6.0
    %v2555 = vmin.f32 %v2299, 6.0
    %v2556 = vmin.f32 %v2300, 6.0
    %v2557 = vmin.f32 %v2301, 6.0
    %v2558 = vmin.f32 %v2302, 6.0
    %v2559 = vmin.f32 %v2303, 6.0
    %v2560 = vmin.f32 %v2304, 6.0
    %v2561 = vmin.f32 %v2305, 6.0
    %v2562 = vmin.f32 %v2306, 6.0
    %v2563 = vmin.f32 %v2307, 6.0
    %v2564 = vmin.f32 %v2308, 6.0
    %v2565 = vmin.f32 %v2309, 6.0
    %v2566 = vmin.f32 %v2310, 6.0
    %v2567 = vmin.f32 %v2311, 6.0
    %v2568 = vmin.f32 %v2312, 6.0
    %v2569 = vmin.f32 %v2313, 6.0
    %v2570 = vmin.f32 %v2314, 6.0
    %v2571 = vmin.f32 %v2315, 6.0
    %v2572 = vmin.f32 %v2316, 6.0
    %v2573 = vmin.f32 %v2317, 6.0
    %v2574 = vmin.f32 %v2318, 6.0
    %v2575 = vmin.f32 %v2319, 6.0
    %v2576 = vmin.f32 %v2320, 6.0
    %v2577 = vmin.f32 %v2321, 6.0
    %v2578 = vmin.f32 %v2322, 6.0
    %v2579 = vmin.f32 %v2323, 6.0
    %v2580 = vmin.f32 %v2324, 6.0
    %v2581 = vmin.f32 %v2325, 6.0
    %v2582 = vmin.f32 %v2326, 6.0
    %v2583 = vmin.f32 %v2327, 6.0
    %v2584 = vmin.f32 %v2328, 6.0
    %v2585 = vmin.f32 %v2329, 6.0
    %v2586 = vmin.f32 %v2330, 6.0
    %v2587 = vmin.f32 %v2331, 6.0
    %v2588 = vmin.f32 %v2332, 6.0
    %v2589 = vmin.f32 %v2333, 6.0
    %v2590 = vmin.f32 %v2334, 6.0
    %v2591 = vmin.f32 %v2335, 6.0
    %v2592 = vmin.f32 %v2336, 6.0
    %v2593 = vmin.f32 %v2337, 6.0
    %v2594 = vmin.f32 %v2338, 6.0
    %v2595 = vmin.f32 %v2339, 6.0
    %v2596 = vmin.f32 %v2340, 6.0
    %v2597 = vmin.f32 %v2341, 6.0
    %v2598 = vmin.f32 %v2342, 6.0
    %v2599 = vmin.f32 %v2343, 6.0
    %v2600 = vmin.f32 %v2344, 6.0
    %v2601 = vmin.f32 %v2345, 6.0
    %v2602 = vmin.f32 %v2346, 6.0
    %v2603 = vmin.f32 %v2347, 6.0
    %v2604 = vmin.f32 %v2348, 6.0
    %v2605 = vmin.f32 %v2349, 6.0
    %v2606 = vmin.f32 %v2350, 6.0
    %v2607 = vmin.f32 %v2351, 6.0
    %v2608 = vmin.f32 %v2352, 6.0
    %v2609 = vmin.f32 %v2353, 6.0
    %v2610 = vmin.f32 %v2354, 6.0
    %v2611 = vmin.f32 %v2355, 6.0
    %v2612 = vmin.f32 %v2356, 6.0
    %v2613 = vmin.f32 %v2357, 6.0
    %v2614 = vmin.f32 %v2358, 6.0
    %v2615 = vmin.f32 %v2359, 6.0
    %v2616 = vmin.f32 %v2360, 6.0
    %v2617 = vmin.f32 %v2361, 6.0
    %v2618 = vmin.f32 %v2362, 6.0
    %v2619 = vmin.f32 %v2363, 6.0
    %v2620 = vmin.f32 %v2364, 6.0
    %v2621 = vmin.f32 %v2365, 6.0
    %v2622 = vmin.f32 %v2366, 6.0
    %v2623 = vmin.f32 %v2367, 6.0
    %v2624 = vmin.f32 %v2368, 6.0
    %v2625 = vmin.f32 %v2369, 6.0
    %v2626 = vmin.f32 %v2370, 6.0
    %v2627 = vmin.f32 %v2371, 6.0
    %v2628 = vmin.f32 %v2372, 6.0
    %v2629 = vmin.f32 %v2373, 6.0
    %v2630 = vmin.f32 %v2374, 6.0
    %v2631 = vmin.f32 %v2375, 6.0
    %v2632 = vmin.f32 %v2376, 6.0
    %v2633 = vmin.f32 %v2377, 6.0
    %v2634 = vmin.f32 %v2378, 6.0
    %v2635 = vmin.f32 %v2379, 6.0
    %v2636 = vmin.f32 %v2380, 6.0
    %v2637 = vmin.f32 %v2381, 6.0
    %v2638 = vmin.f32 %v2382, 6.0
    %v2639 = vmin.f32 %v2383, 6.0
    %v2640 = vmin.f32 %v2384, 6.0
    %v2641 = vmin.f32 %v2385, 6.0
    %v2642 = vmin.f32 %v2386, 6.0
    %v2643 = vmin.f32 %v2387, 6.0
    %v2644 = vmin.f32 %v2388, 6.0
    %v2645 = vmin.f32 %v2389, 6.0
    %v2646 = vmin.f32 %v2390, 6.0
    %v2647 = vmin.f32 %v2391, 6.0
    %v2648 = vmin.f32 %v2392, 6.0
    %v2649 = vmin.f32 %v2393, 6.0
    %v2650 = vmin.f32 %v2394, 6.0
    %v2651 = vmin.f32 %v2395, 6.0
    %v2652 = vmin.f32 %v2396, 6.0
    %v2653 = vmin.f32 %v2397, 6.0
    %v2654 = vmin.f32 %v2398, 6.0
    %v2655 = vmin.f32 %v2399, 6.0
    %v2656 = vmin.f32 %v2400, 6.0
    %v2657 = vmin.f32 %v2401, 6.0
    %v2658 = vmin.f32 %v2402, 6.0
    %v2659 = vmin.f32 %v2403, 6.0
    %v2660 = vmin.f32 %v2404, 6.0
    %v2661 = vmin.f32 %v2405, 6.0
    %v2662 = vmin.f32 %v2406, 6.0
    %v2663 = vmin.f32 %v2407, 6.0
    %v2664 = vmin.f32 %v2408, 6.0
    %v2665 = vmin.f32 %v2409, 6.0
    %v2666 = vmin.f32 %v2410, 6.0
    %v2667 = vmin.f32 %v2411, 6.0
    %v2668 = vmin.f32 %v2412, 6.0
    %v2669 = vmin.f32 %v2413, 6.0
    %v2670 = vmin.f32 %v2414, 6.0
    %v2671 = vmin.f32 %v2415, 6.0
    %v2672 = vmin.f32 %v2416, 6.0
    %v2673 = vmin.f32 %v2417, 6.0
    %v2674 = vmin.f32 %v2418, 6.0
    %v2675 = vmin.f32 %v2419, 6.0
    %v2676 = vmin.f32 %v2420, 6.0
    %v2677 = vmin.f32 %v2421, 6.0
    %v2678 = vmin.f32 %v2422, 6.0
    %v2679 = vmin.f32 %v2423, 6.0
    %v2680 = vmin.f32 %v2424, 6.0
    %v2681 = vmin.f32 %v2425, 6.0
    %v2682 = vmin.f32 %v2426, 6.0
    %v2683 = vmin.f32 %v2427, 6.0
    %v2684 = vmin.f32 %v2428, 6.0
    %v2685 = vmin.f32 %v2429, 6.0
    %v2686 = vmin.f32 %v2430, 6.0
    %v2687 = vmin.f32 %v2431, 6.0
    %v2688 = vmin.f32 %v2432, 6.0
    %v2689 = vmin.f32 %v2433, 6.0
    %v2690 = vmin.f32 %v2434, 6.0
    %v2691 = vmin.f32 %v2435, 6.0
    %v2692 = vmin.f32 %v2436, 6.0
    %v2693 = vmin.f32 %v2437, 6.0
    %v2694 = vmin.f32 %v2438, 6.0
    %v2695 = vmin.f32 %v2439, 6.0
    %v2696 = vmin.f32 %v2440, 6.0
    %v2697 = vmin.f32 %v2441, 6.0
    %v2698 = vmin.f32 %v2442, 6.0
    %v2699 = vmin.f32 %v2443, 6.0
    %v2700 = vmin.f32 %v2444, 6.0
    %v2701 = vmin.f32 %v2445, 6.0
    %v2702 = vmin.f32 %v2446, 6.0
    %v2703 = vmin.f32 %v2447, 6.0
    %v2704 = vmin.f32 %v2448, 6.0
    %v2705 = vmin.f32 %v2449, 6.0
    %v2706 = vmin.f32 %v2450, 6.0
    %v2707 = vmin.f32 %v2451, 6.0
    %v2708 = vmin.f32 %v2452, 6.0
    %v2709 = vmin.f32 %v2453, 6.0
    %v2710 = vmin.f32 %v2454, 6.0
    %v2711 = vmin.f32 %v2455, 6.0
    %v2712 = vmin.f32 %v2456, 6.0
    %v2713 = vmin.f32 %v2457, 6.0
    %v2714 = vmin.f32 %v2458, 6.0
    %v2715 = vmin.f32 %v2459, 6.0
    %v2716 = vmin.f32 %v2460, 6.0
    %v2717 = vmin.f32 %v2461, 6.0
    %v2718 = vmin.f32 %v2462, 6.0
    %v2719 = vmin.f32 %v2463, 6.0
    %v2720 = vmin.f32 %v2464, 6.0
    %v2721 = vmin.f32 %v2465, 6.0
    %v2722 = vmin.f32 %v2466, 6.0
    %v2723 = vmin.f32 %v2467, 6.0
    %v2724 = vmin.f32 %v2468, 6.0
    %v2725 = vmin.f32 %v2469, 6.0
    %v2726 = vmin.f32 %v2470, 6.0
    %v2727 = vadd.f32 %v2471, %v2472
    %v2728 = vadd.f32 %v2727, %v2473
    %v2729 = vadd.f32 %v2728, %v2474
    %v2730 = vadd.f32 %v2729, %v2475
    %v2731 = vadd.f32 %v2730, %v2476
    %v2732 = vadd.f32 %v2731, %v2477
    %v2733 = vadd.f32 %v2732, %v2478
    %v2734 = vadd.f32 %v2733, %v2479
    %v2735 = vadd.f32 %v2734, %v2480
    %v2736 = vadd.f32 %v2735, %v2481
    %v2737 = vadd.f32 %v2736, %v2482
    %v2738 = vadd.f32 %v2737, %v2483
    %v2739 = vadd.f32 %v2738, %v2484
    %v2740 = vadd.f32 %v2739, %v2485
    %v2741 = vadd.f32 %v2740, %v2486
    %v2742 = vadd.f32 %v2741, %v2487
    %v2743 = vadd.f32 %v2742, %v2488
    %v2744 = vadd.f32 %v2743, %v2489
    %v2745 = vadd.f32 %v2744, %v2490
    %v2746 = vadd.f32 %v2745, %v2491
    %v2747 = vadd.f32 %v2746, %v2492
    %v2748 = vadd.f32 %v2747, %v2493
    %v2749 = vadd.f32 %v2748, %v2494
    %v2750 = vadd.f32 %v2749, %v2495
    %v2751 = vadd.f32 %v2750, %v2496
    %v2752 = vadd.f32 %v2751, %v2497
    %v2753 = vadd.f32 %v2752, %v2498
    %v2754 = vadd.f32 %v2753, %v2499
    %v2755 = vadd.f32 %v2754, %v2500
    %v2756 = vadd.f32 %v2755, %v2501
    %v2757 = vadd.f32 %v2756, %v2502
    %v2758 = vrot.slane %v2757, 4
    %v2759 = vadd.f32 %v2757, %v2758
    %v2760 = vrot.slane %v2759, 2
    %v2761 = vadd.f32 %v2759, %v2760
    %v2762 = vrot.slane %v2761, 1
    %v2763 = vadd.f32 %v2761, %v2762
    %v2764 = vadd.f32 %v2503, %v2504
    %v2765 = vadd.f32 %v2764, %v2505
    %v2766 = vadd.f32 %v2765, %v2506
    %v2767 = vadd.f32 %v2766, %v2507
    %v2768 = vadd.f32 %v2767, %v2508
    %v2769 = vadd.f32 %v2768, %v2509
    %v2770 = vadd.f32 %v2769, %v2510
    %v2771 = vadd.f32 %v2770, %v2511
    %v2772 = vadd.f32 %v2771, %v2512
    %v2773 = vadd.f32 %v2772, %v2513
    %v2774 = vadd.f32 %v2773, %v2514
    %v2775 = vadd.f32 %v2774, %v2515
    %v2776 = vadd.f32 %v2775, %v2516
    %v2777 = vadd.f32 %v2776, %v2517
    %v2778 = vadd.f32 %v2777, %v2518
    %v2779 = vadd.f32 %v2778, %v2519
    %v2780 = vadd.f32 %v2779, %v2520
    %v2781 = vadd.f32 %v2780, %v2521
    %v2782 = vadd.f32 %v2781, %v2522
    %v2783 = vadd.f32 %v2782, %v2523
    %v2784 = vadd.f32 %v2783, %v2524
    %v2785 = vadd.f32 %v2784, %v2525
    %v2786 = vadd.f32 %v2785, %v2526
    %v2787 = vadd.f32 %v2786, %v2527
    %v2788 = vadd.f32 %v2787, %v2528
    %v2789 = vadd.f32 %v2788, %v2529
    %v2790 = vadd.f32 %v2789, %v2530
    %v2791 = vadd.f32 %v2790, %v2531
    %v2792 = vadd.f32 %v2791, %v2532
    %v2793 = vadd.f32 %v2792, %v2533
    %v2794 = vadd.f32 %v2793, %v2534
    %v2795 = vrot.slane %v2794, 4
    %v2796 = vadd.f32 %v2794, %v2795
    %v2797 = vrot.slane %v2796, 2
    %v2798 = vadd.f32 %v2796, %v2797
    %v2799 = vrot.slane %v2798, 1
    %v2800 = vadd.f32 %v2798, %v2799
    %v2801 = vadd.f32 %v2535, %v2536
    %v2802 = vadd.f32 %v2801, %v2537
    %v2803 = vadd.f32 %v2802, %v2538
    %v2804 = vadd.f32 %v2803, %v2539
    %v2805 = vadd.f32 %v2804, %v2540
    %v2806 = vadd.f32 %v2805, %v2541
    %v2807 = vadd.f32 %v2806, %v2542
    %v2808 = vadd.f32 %v2807, %v2543
    %v2809 = vadd.f32 %v2808, %v2544
    %v2810 = vadd.f32 %v2809, %v2545
    %v2811 = vadd.f32 %v2810, %v2546
    %v2812 = vadd.f32 %v2811, %v2547
    %v2813 = vadd.f32 %v2812, %v2548
    %v2814 = vadd.f32 %v2813, %v2549
    %v2815 = vadd.f32 %v2814, %v2550
    %v2816 = vadd.f32 %v2815, %v2551
    %v2817 = vadd.f32 %v2816, %v2552
    %v2818 = vadd.f32 %v2817, %v2553
    %v2819 = vadd.f32 %v2818, %v2554
    %v2820 = vadd.f32 %v2819, %v2555
    %v2821 = vadd.f32 %v2820, %v2556
    %v2822 = vadd.f32 %v2821, %v2557
    %v2823 = vadd.f32 %v2822, %v2558
    %v2824 = vadd.f32 %v2823, %v2559
    %v2825 = vadd.f32 %v2824, %v2560
    %v2826 = vadd.f32 %v2825, %v2561
    %v2827 = vadd.f32 %v2826, %v2562
    %v2828 = vadd.f32 %v2827, %v2563
    %v2829 = vadd.f32 %v2828, %v2564
    %v2830 = vadd.f32 %v2829, %v2565
    %v2831 = vadd.f32 %v2830, %v2566
    %v2832 = vrot.slane %v2831, 4
    %v2833 = vadd.f32 %v2831, %v2832
    %v2834 = vrot.slane %v2833, 2
    %v2835 = vadd.f32 %v2833, %v2834
    %v2836 = vrot.slane %v2835, 1
    %v2837 = vadd.f32 %v2835, %v2836
    %v2838 = vadd.f32 %v2567, %v2568
    %v2839 = vadd.f32 %v2838, %v2569
    %v2840 = vadd.f32 %v2839, %v2570
    %v2841 = vadd.f32 %v2840, %v2571
    %v2842 = vadd.f32 %v2841, %v2572
    %v2843 = vadd.f32 %v2842, %v2573
    %v2844 = vadd.f32 %v2843, %v2574
    %v2845 = vadd.f32 %v2844, %v2575
    %v2846 = vadd.f32 %v2845, %v2576
    %v2847 = vadd.f32 %v2846, %v2577
    %v2848 = vadd.f32 %v2847, %v2578
    %v2849 = vadd.f32 %v2848, %v2579
    %v2850 = vadd.f32 %v2849, %v2580
    %v2851 = vadd.f32 %v2850, %v2581
    %v2852 = vadd.f32 %v2851, %v2582
    %v2853 = vadd.f32 %v2852, %v2583
    %v2854 = vadd.f32 %v2853, %v2584
    %v2855 = vadd.f32 %v2854, %v2585
    %v2856 = vadd.f32 %v2855, %v2586
    %v2857 = vadd.f32 %v2856, %v2587
    %v2858 = vadd.f32 %v2857, %v2588
    %v2859 = vadd.f32 %v2858, %v2589
    %v2860 = vadd.f32 %v2859, %v2590
    %v2861 = vadd.f32 %v2860, %v2591
    %v2862 = vadd.f32 %v2861, %v2592
    %v2863 = vadd.f32 %v2862, %v2593
    %v2864 = vadd.f32 %v2863, %v2594
    %v2865 = vadd.f32 %v2864, %v2595
    %v2866 = vadd.f32 %v2865, %v2596
    %v2867 = vadd.f32 %v2866, %v2597
    %v2868 = vadd.f32 %v2867, %v2598
    %v2869 = vrot.slane %v2868, 4
    %v2870 = vadd.f32 %v2868, %v2869
    %v2871 = vrot.slane %v2870, 2
    %v2872 = vadd.f32 %v2870, %v2871
    %v2873 = vrot.slane %v2872, 1
    %v2874 = vadd.f32 %v2872, %v2873
    %v2875 = vadd.f32 %v2599, %v2600
    %v2876 = vadd.f32 %v2875, %v2601
    %v2877 = vadd.f32 %v2876, %v2602
    %v2878 = vadd.f32 %v2877, %v2603
    %v2879 = vadd.f32 %v2878, %v2604
    %v2880 = vadd.f32 %v2879, %v2605
    %v2881 = vadd.f32 %v2880, %v2606
    %v2882 = vadd.f32 %v2881, %v2607
    %v2883 = vadd.f32 %v2882, %v2608
    %v2884 = vadd.f32 %v2883, %v2609
    %v2885 = vadd.f32 %v2884, %v2610
    %v2886 = vadd.f32 %v2885, %v2611
    %v2887 = vadd.f32 %v2886, %v2612
    %v2888 = vadd.f32 %v2887, %v2613
    %v2889 = vadd.f32 %v2888, %v2614
    %v2890 = vadd.f32 %v2889, %v2615
    %v2891 = vadd.f32 %v2890, %v2616
    %v2892 = vadd.f32 %v2891, %v2617
    %v2893 = vadd.f32 %v2892, %v2618
    %v2894 = vadd.f32 %v2893, %v2619
    %v2895 = vadd.f32 %v2894, %v2620
    %v2896 = vadd.f32 %v2895, %v2621
    %v2897 = vadd.f32 %v2896, %v2622
    %v2898 = vadd.f32 %v2897, %v2623
    %v2899 = vadd.f32 %v2898, %v2624
    %v2900 = vadd.f32 %v2899, %v2625
    %v2901 = vadd.f32 %v2900, %v2626
    %v2902 = vadd.f32 %v2901, %v2627
    %v2903 = vadd.f32 %v2902, %v2628
    %v2904 = vadd.f32 %v2903, %v2629
    %v2905 = vadd.f32 %v2904, %v2630
    %v2906 = vrot.slane %v2905, 4
    %v2907 = vadd.f32 %v2905, %v2906
    %v2908 = vrot.slane %v2907, 2
    %v2909 = vadd.f32 %v2907, %v2908
    %v2910 = vrot.slane %v2909, 1
    %v2911 = vadd.f32 %v2909, %v2910
    %v2912 = vadd.f32 %v2631, %v2632
    %v2913 = vadd.f32 %v2912, %v2633
    %v2914 = vadd.f32 %v2913, %v2634
    %v2915 = vadd.f32 %v2914, %v2635
    %v2916 = vadd.f32 %v2915, %v2636
    %v2917 = vadd.f32 %v2916, %v2637
    %v2918 = vadd.f32 %v2917, %v2638
    %v2919 = vadd.f32 %v2918, %v2639
    %v2920 = vadd.f32 %v2919, %v2640
    %v2921 = vadd.f32 %v2920, %v2641
    %v2922 = vadd.f32 %v2921, %v2642
    %v2923 = vadd.f32 %v2922, %v2643
    %v2924 = vadd.f32 %v2923, %v2644
    %v2925 = vadd.f32 %v2924, %v2645
    %v2926 = vadd.f32 %v2925, %v2646
    %v2927 = vadd.f32 %v2926, %v2647
    %v2928 = vadd.f32 %v2927, %v2648
    %v2929 = vadd.f32 %v2928, %v2649
    %v2930 = vadd.f32 %v2929, %v2650
    %v2931 = vadd.f32 %v2930, %v2651
    %v2932 = vadd.f32 %v2931, %v2652
    %v2933 = vadd.f32 %v2932, %v2653
    %v2934 = vadd.f32 %v2933, %v2654
    %v2935 = vadd.f32 %v2934, %v2655
    %v2936 = vadd.f32 %v2935, %v2656
    %v2937 = vadd.f32 %v2936, %v2657
    %v2938 = vadd.f32 %v2937, %v2658
    %v2939 = vadd.f32 %v2938, %v2659
    %v2940 = vadd.f32 %v2939, %v2660
    %v2941 = vadd.f32 %v2940, %v2661
    %v2942 = vadd.f32 %v2941, %v2662
    %v2943 = vrot.slane %v2942, 4
    %v2944 = vadd.f32 %v2942, %v2943
    %v2945 = vrot.slane %v2944, 2
    %v2946 = vadd.f32 %v2944, %v2945
    %v2947 = vrot.slane %v2946, 1
    %v2948 = vadd.f32 %v2946, %v2947
    %v2949 = vadd.f32 %v2663, %v2664
    %v2950 = vadd.f32 %v2949, %v2665
    %v2951 = vadd.f32 %v2950, %v2666
    %v2952 = vadd.f32 %v2951, %v2667
    %v2953 = vadd.f32 %v2952, %v2668
    %v2954 = vadd.f32 %v2953, %v2669
    %v2955 = vadd.f32 %v2954, %v2670
    %v2956 = vadd.f32 %v2955, %v2671
    %v2957 = vadd.f32 %v2956, %v2672
    %v2958 = vadd.f32 %v2957, %v2673
    %v2959 = vadd.f32 %v2958, %v2674
    %v2960 = vadd.f32 %v2959, %v2675
    %v2961 = vadd.f32 %v2960, %v2676
    %v2962 = vadd.f32 %v2961, %v2677
    %v2963 = vadd.f32 %v2962, %v2678
    %v2964 = vadd.f32 %v2963, %v2679
    %v2965 = vadd.f32 %v2964, %v2680
    %v2966 = vadd.f32 %v2965, %v2681
    %v2967 = vadd.f32 %v2966, %v2682
    %v2968 = vadd.f32 %v2967, %v2683
    %v2969 = vadd.f32 %v2968, %v2684
    %v2970 = vadd.f32 %v2969, %v2685
    %v2971 = vadd.f32 %v2970, %v2686
    %v2972 = vadd.f32 %v2971, %v2687
    %v2973 = vadd.f32 %v2972, %v2688
    %v2974 = vadd.f32 %v2973, %v2689
    %v2975 = vadd.f32 %v2974, %v2690
    %v2976 = vadd.f32 %v2975, %v2691
    %v2977 = vadd.f32 %v2976, %v2692
    %v2978 = vadd.f32 %v2977, %v2693
    %v2979 = vadd.f32 %v2978, %v2694
    %v2980 = vrot.slane %v2979, 4
    %v2981 = vadd.f32 %v2979, %v2980
    %v2982 = vrot.slane %v2981, 2
    %v2983 = vadd.f32 %v2981, %v2982
    %v2984 = vrot.slane %v2983, 1
    %v2985 = vadd.f32 %v2983, %v2984
    %v2986 = vadd.f32 %v2695, %v2696
    %v2987 = vadd.f32 %v2986, %v2697
    %v2988 = vadd.f32 %v2987, %v2698
    %v2989 = vadd.f32 %v2988, %v2699
    %v2990 = vadd.f32 %v2989, %v2700
    %v2991 = vadd.f32 %v2990, %v2701
    %v2992 = vadd.f32 %v2991, %v2702
    %v2993 = vadd.f32 %v2992, %v2703
    %v2994 = vadd.f32 %v2993, %v2704
    %v2995 = vadd.f32 %v2994, %v2705
    %v2996 = vadd.f32 %v2995, %v2706
    %v2997 = vadd.f32 %v2996, %v2707
    %v2998 = vadd.f32 %v2997, %v2708
    %v2999 = vadd.f32 %v2998, %v2709
    %v3000 = vadd.f32 %v2999, %v2710
    %v3001 = vadd.f32 %v3000, %v2711
    %v3002 = vadd.f32 %v3001, %v2712
    %v3003 = vadd.f32 %v3002, %v2713
    %v3004 = vadd.f32 %v3003, %v2714
    %v3005 = vadd.f32 %v3004, %v2715
    %v3006 = vadd.f32 %v3005, %v2716
    %v3007 = vadd.f32 %v3006, %v2717
    %v3008 = vadd.f32 %v3007, %v2718
    %v3009 = vadd.f32 %v3008, %v2719
    %v3010 = vadd.f32 %v3009, %v2720
    %v3011 = vadd.f32 %v3010, %v2721
    %v3012 = vadd.f32 %v3011, %v2722
    %v3013 = vadd.f32 %v3012, %v2723
    %v3014 = vadd.f32 %v3013, %v2724
    %v3015 = vadd.f32 %v3014, %v2725
    %v3016 = vadd.f32 %v3015, %v2726
    %v3017 = vrot.slane %v3016, 4
    %v3018 = vadd.f32 %v3016, %v3017
    %v3019 = vrot.slane %v3018, 2
    %v3020 = vadd.f32 %v3018, %v3019
    %v3021 = vrot.slane %v3020, 1
    %v3022 = vadd.f32 %v3020, %v3021
    %v3023 = vmul.f32 %v2763, 0.00390625
    %v3024 = vmul.f32 %v2800, 0.00390625
    %v3025 = vmul.f32 %v2837, 0.00390625
    %v3026 = vmul.f32 %v2874, 0.00390625
    %v3027 = vmul.f32 %v2911, 0.00390625
    %v3028 = vmul.f32 %v2948, 0.00390625
    %v3029 = vmul.f32 %v2985, 0.00390625
    %v3030 = vmul.f32 %v3022, 0.00390625
    %v3031 = vpack.c.bf16 %v3023, %v3023
    %v3032 = vpack.c.bf16 %v3024, %v3024
    %v3033 = vpack.c.bf16 %v3025, %v3025
    %v3034 = vpack.c.bf16 %v3026, %v3026
    %v3035 = vpack.c.bf16 %v3027, %v3027
    %v3036 = vpack.c.bf16 %v3028, %v3028
    %v3037 = vpack.c.bf16 %v3029, %v3029
    %v3038 = vpack.c.bf16 %v3030, %v3030
    %v3039 = vld [vmem:[#allocation7] sm:$0xf]
    %v3040 = vld [vmem:[#allocation7 + $0x4] sm:$0xf]
    %v3041 = vld [vmem:[#allocation7 + $0x8] sm:$0xf]
    %v3042 = vld [vmem:[#allocation7 + $0xc] sm:$0xf]
    %v3043 = vld [vmem:[#allocation7 + $0x10] sm:$0xf]
    %v3044 = vld [vmem:[#allocation7 + $0x14] sm:$0xf]
    %v3045 = vld [vmem:[#allocation7 + $0x18] sm:$0xf]
    %v3046 = vld [vmem:[#allocation7 + $0x1c] sm:$0xf]
    %v3047 = vld [vmem:[#allocation7 + $0x20] sm:$0xf]
    %v3048 = vld [vmem:[#allocation7 + $0x24] sm:$0xf]
    %v3049 = vld [vmem:[#allocation7 + $0x28] sm:$0xf]
    %v3050 = vld [vmem:[#allocation7 + $0x2c] sm:$0xf]
    %v3051 = vld [vmem:[#allocation7 + $0x30] sm:$0xf]
    %v3052 = vld [vmem:[#allocation7 + $0x34] sm:$0xf]
    %v3053 = vld [vmem:[#allocation7 + $0x38] sm:$0xf]
    %v3054 = vld [vmem:[#allocation7 + $0x3c] sm:$0xf]
    %v3055 = vld [vmem:[%s4] sm:$0x1]
    %v3057 = vlaneseq
    %v3058 = vshrl.u32 %v3057, 7
    %v3059 = vsub.s32 0, %v3058
    %v3060 = vrot.slane %v3055, %v3059
    %v3070 = vunpack.c.l.b16 %v3031
    %v3071 = vunpack.c.l.b16 %v3032
    %v3072 = vunpack.c.l.b16 %v3033
    %v3073 = vunpack.c.l.b16 %v3034
    %v3074 = vunpack.c.l.b16 %v3035
    %v3075 = vunpack.c.l.b16 %v3036
    %v3076 = vunpack.c.l.b16 %v3037
    %v3077 = vunpack.c.l.b16 %v3038
    %vm3078 = vcmask 1041409
    %v3079 = vsel %vm3078, %v3071, %v3070
    %vm3080 = vcmask 1042434
    %v3081 = vsel %vm3080, %v3072, %v3079
    %vm3082 = vcmask 1043459
    %v3083 = vsel %vm3082, %v3073, %v3081
    %vm3084 = vcmask 1044484
    %v3085 = vsel %vm3084, %v3074, %v3083
    %vm3086 = vcmask 1045509
    %v3087 = vsel %vm3086, %v3075, %v3085
    %vm3088 = vcmask 1046534
    %v3089 = vsel %vm3088, %v3076, %v3087
    %vm3090 = vcmask 1047559
    %v3091 = vsel %vm3090, %v3077, %v3089
    %v3092 = vpack.c.b16 %v3091, %v3091
    %v3110 = vunpack.c.l.b16 %v3039
    %v3111 = vunpack.c.l.b16 %v3040
    %v3112 = vunpack.c.l.b16 %v3041
    %v3113 = vunpack.c.l.b16 %v3042
    %v3114 = vunpack.c.l.b16 %v3043
    %v3115 = vunpack.c.l.b16 %v3044
    %v3116 = vunpack.c.l.b16 %v3045
    %v3117 = vunpack.c.l.b16 %v3046
    %v3118 = vunpack.c.l.b16 %v3047
    %v3119 = vunpack.c.l.b16 %v3048
    %v3120 = vunpack.c.l.b16 %v3049
    %v3121 = vunpack.c.l.b16 %v3050
    %v3122 = vunpack.c.l.b16 %v3051
    %v3123 = vunpack.c.l.b16 %v3052
    %v3124 = vunpack.c.l.b16 %v3053
    %v3125 = vunpack.c.l.b16 %v3054
    %v3126 = vpack.c.b16 %v3111, %v3110
    %v3127 = vpack.c.b16 %v3113, %v3112
    %v3128 = vpack.c.b16 %v3115, %v3114
    %v3129 = vpack.c.b16 %v3117, %v3116
    %v3130 = vpack.c.b16 %v3119, %v3118
    %v3131 = vpack.c.b16 %v3121, %v3120
    %v3132 = vpack.c.b16 %v3123, %v3122
    %v3133 = vpack.c.b16 %v3125, %v3124
    %3142 = vmatprep.subr.bf16.mxu0 0
    %3143 = vmatpush1.bf16.msra.mxu0 %v3126
    %3144 = vmatprep.subr.bf16.mxu0 0
    %3145 = vmatpush1.bf16.msra.mxu0 %v3127
    %3146 = vmatprep.subr.bf16.mxu0 0
    %3147 = vmatpush1.bf16.msra.mxu0 %v3128
    %3148 = vmatprep.subr.bf16.mxu0 0
    %3149 = vmatpush1.bf16.msra.mxu0 %v3129
    %3150 = vmatprep.subr.bf16.mxu0 0
    %3151 = vmatpush1.bf16.msra.mxu0 %v3130
    %3152 = vmatprep.subr.bf16.mxu0 0
    %3153 = vmatpush1.bf16.msra.mxu0 %v3131
    %3154 = vmatprep.subr.bf16.mxu0 0
    %3155 = vmatpush1.bf16.msra.mxu0 %v3132
    %3156 = vmatprep.subr.bf16.mxu0 0
    %3157 = vmatpush1.bf16.msra.mxu0 %v3133
    %3158 = vmatprep.subr.bf16.mxu0 0
    %3159 = vmatpush1.bf16.msra.mxu0 0
    %3160 = vmatprep.subr.bf16.mxu0 0
    %3161 = vmatpush1.bf16.msra.mxu0 0
    %3162 = vmatprep.subr.bf16.mxu0 0
    %3163 = vmatpush1.bf16.msra.mxu0 0
    %3164 = vmatprep.subr.bf16.mxu0 0
    %3165 = vmatpush1.bf16.msra.mxu0 0
    %3166 = vmatprep.subr.bf16.mxu0 0
    %3167 = vmatpush1.bf16.msra.mxu0 0
    %3168 = vmatprep.subr.bf16.mxu0 0
    %3169 = vmatpush1.bf16.msra.mxu0 0
    %3170 = vmatprep.subr.bf16.mxu0 0
    %3171 = vmatpush1.bf16.msra.mxu0 0
    %3172 = vmatprep.subr.bf16.mxu0 0
    %3173 = vmatpush1.bf16.msra.mxu0 0
    %3174 = vmatprep.mubr.bf16.mxu0 0
    %3175 = vmatmul.mubr.bf16.gmra.mrb[0].mxu0 %v3092
    %v3176 = vpop.f32.mrb[0].mxu0
    %v3177 = vadd.f32 %v3060, %v3176
    %v3178 = vpop.f32.mrb[0].mxu0
    %v3179 = vpop.f32.mrb[0].mxu0
    %v3180 = vpop.f32.mrb[0].mxu0
    %3181 = vdwg.mxu0
    %v3182 = vmul.f32 %v3177, %v3177
    %3183 = vadd.xlane.f32.xlu0 %v3182
    %v3184 = vpop.xlane.xlu0 %3183
    %v3185 = vmax.f32 %v3184, 1e-30
    %v3186 = vrsqrt.pop %v3185
    %v3187 = vmul.f32 %v3177, %v3186
    %3188 = vst [vmem:[#allocation8] sm:$0xff] %v3187
    // Predicated region
    $region34: #{tpu_custom_call.1} parent=1 // pred_check
      _
    $region35: #{tpu_custom_call.1} parent=1 // pred_check_branch
      %3190 = sbr.rel (0) target = $region37
    $region36: #{tpu_custom_call.1} parent=1 // pred_region
      %s3192 = ssub.s32 128, 128
      %3193 = vsyncadd [#allocation4], %s3192
      %s3195 = sshll.u32 [#allocation8], 4
      %s3196 = int_to_ptr.vmem [resolvable:$true] %s3195
      %3198 = dma.vmem_to_hbm [thread:$0]  %s3196, 128, %s5, [#allocation4]
    $region37: #{tpu_custom_call.1} parent=1 // pred_fallthru
      _
    // Predicated region
    $region38: #{tpu_custom_call.1} parent=1 // pred_check
      _
    $region39: #{tpu_custom_call.1} parent=1 // pred_check_branch
      %3200 = sbr.rel (0) target = $region41
    $region40: #{tpu_custom_call.1} parent=1 // pred_region
      %3201 = dma.done [#allocation4], 128
    $region41: #{tpu_custom_call.1} parent=1 // pred_fallthru
      _
    %3202 = vsyncpa [#allocation3], 1
    %3203 = vsyncpa [#allocation6], 1
    %3204 = vsyncpa [#allocation4], 1

// kernel: tpu_custom_call.1
$region0: #{tpu_custom_call.1}
  #allocation0 [shape = 'u32[]', space=smem, size = 0x4, offset = 0x4, fixed_abs, tag = 'smem constant byte address 0x4 - core index']
  #allocation1 [shape = 'u32[144,128]{1,0:T(1,128)}', space=vmem, size = 0x12000, scoped, tag = 'internal scratch']
  %s0 = inlined_call_operand.hbm [shape: bf16[2048,128], index: 0, kind: input, shape index: {}]
  %s1 = inlined_call_operand.hbm [shape: bf16[128,128], index: 1, kind: input, shape index: {}]
  %s2 = inlined_call_operand.vmem [shape: f32[1,128], index: 2, kind: input, shape index: {}]
  %s3 = inlined_call_operand.hbm [shape: bf16[128,128], index: 3, kind: input, shape index: {}]
  %s4 = inlined_call_operand.vmem [shape: f32[1,128], index: 4, kind: input, shape index: {}]
  %s5 = inlined_call_operand.hbm [shape: f32[8,128], index: 5, kind: output, shape index: {}]
  %s6 = sld [smem:[#allocation0]]
  $region42: #{tpu_custom_call.1} parent=0
    _
  %s8 = ssub.s32 1, %s6
  %s9 = scalar_select 0, %s8, %s6
  $region1: #{tpu_custom_call.1} parent=0
    #allocation2 [shape = 'u8[524288]{0}', space=vmem, size = 0x80000, scoped, tag = 'input window, operand 0, single buffered']
    #allocation3 [shape = 's32[1]{0}', space=sflag, size = 0x4, scoped, tag = 'scoped memory for tpu_custom_call.1']
    #allocation4 [shape = 's32[1]{0}', space=sflag, size = 0x4, scoped, tag = 'scoped memory for tpu_custom_call.1']
    #allocation5 [shape = 'u8[32768]{0}', space=vmem, size = 0x8000, scoped, tag = 'input window, operand 1, single buffered']
    #allocation6 [shape = 's32[1]{0}', space=sflag, size = 0x4, scoped, tag = 'scoped memory for tpu_custom_call.1']
    #allocation7 [shape = 'u8[32768]{0}', space=vmem, size = 0x8000, scoped, tag = 'input window, operand 3, single buffered']
    #allocation8 [shape = 'u8[4096]{0}', space=vmem, size = 0x1000, scoped, tag = 'output window, operand 0, single buffered']
    %10 = vsyncpa [#allocation3], 0
    %11 = vsyncpa [#allocation6], 0
    %12 = vsyncpa [#allocation4], 0
    // Predicated region
    $region2: #{tpu_custom_call.1} parent=1 // pred_check
      _
    $region3: #{tpu_custom_call.1} parent=1 // pred_check_branch
      %14 = sbr.rel (0) target = $region5
    $region4: #{tpu_custom_call.1} parent=1 // pred_region
      %s16 = ssub.s32 16384, 16384
      %17 = vsyncadd [#allocation3], %s16
      %s18 = sshll.u32 [#allocation2], 4
      %s19 = int_to_ptr.vmem [resolvable:$true] %s18
      %24 = dma.hbm_to_vmem [thread:$0]  %s0, 16384, %s19, [#allocation3], 64, 64, 4
    $region5: #{tpu_custom_call.1} parent=1 // pred_fallthru
      _
    // Predicated region
    $region6: #{tpu_custom_call.1} parent=1 // pred_check
      _
    $region7: #{tpu_custom_call.1} parent=1 // pred_check_branch
      %26 = sbr.rel (0) target = $region9
    $region8: #{tpu_custom_call.1} parent=1 // pred_region
      %s28 = ssub.s32 1024, 1024
      %29 = vsyncadd [#allocation6], %s28
      %s30 = sshll.u32 [#allocation5], 4
      %s31 = int_to_ptr.vmem [resolvable:$true] %s30
      %36 = dma.hbm_to_vmem [thread:$0]  %s1, 1024, %s31, [#allocation6], 64, 64, 4
    $region9: #{tpu_custom_call.1} parent=1 // pred_fallthru
      _
    // Predicated region
    $region10: #{tpu_custom_call.1} parent=1 // pred_check
      _
    $region11: #{tpu_custom_call.1} parent=1 // pred_check_branch
      %38 = sbr.rel (0) target = $region13
    $region12: #{tpu_custom_call.1} parent=1 // pred_region
      _
    $region13: #{tpu_custom_call.1} parent=1 // pred_fallthru
      _
    // Predicated region
    $region14: #{tpu_custom_call.1} parent=1 // pred_check
      _
    $region15: #{tpu_custom_call.1} parent=1 // pred_check_branch
      %40 = sbr.rel (0) target = $region17
    $region16: #{tpu_custom_call.1} parent=1 // pred_region
      %s42 = ssub.s32 1024, 1024
      %43 = vsyncadd [#allocation6], %s42
      %s44 = sshll.u32 [#allocation7], 4
      %s45 = int_to_ptr.vmem [resolvable:$true] %s44
      %50 = dma.hbm_to_vmem [thread:$0]  %s3, 1024, %s45, [#allocation6], 64, 64, 4
    $region17: #{tpu_custom_call.1} parent=1 // pred_fallthru
      _
    // Predicated region
    $region18: #{tpu_custom_call.1} parent=1 // pred_check
      _
    $region19: #{tpu_custom_call.1} parent=1 // pred_check_branch
      %52 = sbr.rel (0) target = $region21
    $region20: #{tpu_custom_call.1} parent=1 // pred_region
      _
    $region21: #{tpu_custom_call.1} parent=1 // pred_fallthru
      _
    // Predicated region
    $region22: #{tpu_custom_call.1} parent=1 // pred_check
      _
    $region23: #{tpu_custom_call.1} parent=1 // pred_check_branch
      %54 = sbr.rel (0) target = $region25
    $region24: #{tpu_custom_call.1} parent=1 // pred_region
      %55 = dma.done [#allocation3], 16384
    $region25: #{tpu_custom_call.1} parent=1 // pred_fallthru
      _
    // Predicated region
    $region26: #{tpu_custom_call.1} parent=1 // pred_check
      _
    $region27: #{tpu_custom_call.1} parent=1 // pred_check_branch
      %57 = sbr.rel (0) target = $region29
    $region28: #{tpu_custom_call.1} parent=1 // pred_region
      %58 = dma.done [#allocation6], 1024
    $region29: #{tpu_custom_call.1} parent=1 // pred_fallthru
      _
    // Predicated region
    $region30: #{tpu_custom_call.1} parent=1 // pred_check
      _
    $region31: #{tpu_custom_call.1} parent=1 // pred_check_branch
      %60 = sbr.rel (0) target = $region33
    $region32: #{tpu_custom_call.1} parent=1 // pred_region
      %61 = dma.done [#allocation6], 1024
    $region33: #{tpu_custom_call.1} parent=1 // pred_fallthru
      _
    %v63 = vld [vmem:[#allocation2] sm:$0xf]
    %v64 = vld [vmem:[#allocation2 + $0x4] sm:$0xf]
    %v65 = vld [vmem:[#allocation2 + $0x8] sm:$0xf]
    %v66 = vld [vmem:[#allocation2 + $0xc] sm:$0xf]
    %v67 = vld [vmem:[#allocation2 + $0x10] sm:$0xf]
    %v68 = vld [vmem:[#allocation2 + $0x14] sm:$0xf]
    %v69 = vld [vmem:[#allocation2 + $0x18] sm:$0xf]
    %v70 = vld [vmem:[#allocation2 + $0x1c] sm:$0xf]
    %v71 = vld [vmem:[#allocation2 + $0x20] sm:$0xf]
    %v72 = vld [vmem:[#allocation2 + $0x24] sm:$0xf]
    %v73 = vld [vmem:[#allocation2 + $0x28] sm:$0xf]
    %v74 = vld [vmem:[#allocation2 + $0x2c] sm:$0xf]
    %v75 = vld [vmem:[#allocation2 + $0x30] sm:$0xf]
    %v76 = vld [vmem:[#allocation2 + $0x34] sm:$0xf]
    %v77 = vld [vmem:[#allocation2 + $0x38] sm:$0xf]
    %v78 = vld [vmem:[#allocation2 + $0x3c] sm:$0xf]
    %v79 = vld [vmem:[#allocation2 + $0x40] sm:$0xf]
    %v80 = vld [vmem:[#allocation2 + $0x44] sm:$0xf]
    %v81 = vld [vmem:[#allocation2 + $0x48] sm:$0xf]
    %v82 = vld [vmem:[#allocation2 + $0x4c] sm:$0xf]
    %v83 = vld [vmem:[#allocation2 + $0x50] sm:$0xf]
    %v84 = vld [vmem:[#allocation2 + $0x54] sm:$0xf]
    %v85 = vld [vmem:[#allocation2 + $0x58] sm:$0xf]
    %v86 = vld [vmem:[#allocation2 + $0x5c] sm:$0xf]
    %v87 = vld [vmem:[#allocation2 + $0x60] sm:$0xf]
    %v88 = vld [vmem:[#allocation2 + $0x64] sm:$0xf]
    %v89 = vld [vmem:[#allocation2 + $0x68] sm:$0xf]
    %v90 = vld [vmem:[#allocation2 + $0x6c] sm:$0xf]
    %v91 = vld [vmem:[#allocation2 + $0x70] sm:$0xf]
    %v92 = vld [vmem:[#allocation2 + $0x74] sm:$0xf]
    %v93 = vld [vmem:[#allocation2 + $0x78] sm:$0xf]
    %v94 = vld [vmem:[#allocation2 + $0x7c] sm:$0xf]
    %v95 = vld [vmem:[#allocation2 + $0x80] sm:$0xf]
    %v96 = vld [vmem:[#allocation2 + $0x84] sm:$0xf]
    %v97 = vld [vmem:[#allocation2 + $0x88] sm:$0xf]
    %v98 = vld [vmem:[#allocation2 + $0x8c] sm:$0xf]
    %v99 = vld [vmem:[#allocation2 + $0x90] sm:$0xf]
    %v100 = vld [vmem:[#allocation2 + $0x94] sm:$0xf]
    %v101 = vld [vmem:[#allocation2 + $0x98] sm:$0xf]
    %v102 = vld [vmem:[#allocation2 + $0x9c] sm:$0xf]
    %v103 = vld [vmem:[#allocation2 + $0xa0] sm:$0xf]
    %v104 = vld [vmem:[#allocation2 + $0xa4] sm:$0xf]
    %v105 = vld [vmem:[#allocation2 + $0xa8] sm:$0xf]
    %v106 = vld [vmem:[#allocation2 + $0xac] sm:$0xf]
    %v107 = vld [vmem:[#allocation2 + $0xb0] sm:$0xf]
    %v108 = vld [vmem:[#allocation2 + $0xb4] sm:$0xf]
    %v109 = vld [vmem:[#allocation2 + $0xb8] sm:$0xf]
    %v110 = vld [vmem:[#allocation2 + $0xbc] sm:$0xf]
    %v111 = vld [vmem:[#allocation2 + $0xc0] sm:$0xf]
    %v112 = vld [vmem:[#allocation2 + $0xc4] sm:$0xf]
    %v113 = vld [vmem:[#allocation2 + $0xc8] sm:$0xf]
    %v114 = vld [vmem:[#allocation2 + $0xcc] sm:$0xf]
    %v115 = vld [vmem:[#allocation2 + $0xd0] sm:$0xf]
    %v116 = vld [vmem:[#allocation2 + $0xd4] sm:$0xf]
    %v117 = vld [vmem:[#allocation2 + $0xd8] sm:$0xf]
    %v118 = vld [vmem:[#allocation2 + $0xdc] sm:$0xf]
    %v119 = vld [vmem:[#allocation2 + $0xe0] sm:$0xf]
    %v120 = vld [vmem:[#allocation2 + $0xe4] sm:$0xf]
    %v121 = vld [vmem:[#allocation2 + $0xe8] sm:$0xf]
    %v122 = vld [vmem:[#allocation2 + $0xec] sm:$0xf]
    %v123 = vld [vmem:[#allocation2 + $0xf0] sm:$0xf]
    %v124 = vld [vmem:[#allocation2 + $0xf4] sm:$0xf]
    %v125 = vld [vmem:[#allocation2 + $0xf8] sm:$0xf]
    %v126 = vld [vmem:[#allocation2 + $0xfc] sm:$0xf]
    %v127 = vld [vmem:[#allocation2 + $0x100] sm:$0xf]
    %v128 = vld [vmem:[#allocation2 + $0x104] sm:$0xf]
    %v129 = vld [vmem:[#allocation2 + $0x108] sm:$0xf]
    %v130 = vld [vmem:[#allocation2 + $0x10c] sm:$0xf]
    %v131 = vld [vmem:[#allocation2 + $0x110] sm:$0xf]
    %v132 = vld [vmem:[#allocation2 + $0x114] sm:$0xf]
    %v133 = vld [vmem:[#allocation2 + $0x118] sm:$0xf]
    %v134 = vld [vmem:[#allocation2 + $0x11c] sm:$0xf]
    %v135 = vld [vmem:[#allocation2 + $0x120] sm:$0xf]
    %v136 = vld [vmem:[#allocation2 + $0x124] sm:$0xf]
    %v137 = vld [vmem:[#allocation2 + $0x128] sm:$0xf]
    %v138 = vld [vmem:[#allocation2 + $0x12c] sm:$0xf]
    %v139 = vld [vmem:[#allocation2 + $0x130] sm:$0xf]
    %v140 = vld [vmem:[#allocation2 + $0x134] sm:$0xf]
    %v141 = vld [vmem:[#allocation2 + $0x138] sm:$0xf]
    %v142 = vld [vmem:[#allocation2 + $0x13c] sm:$0xf]
    %v143 = vld [vmem:[#allocation2 + $0x140] sm:$0xf]
    %v144 = vld [vmem:[#allocation2 + $0x144] sm:$0xf]
    %v145 = vld [vmem:[#allocation2 + $0x148] sm:$0xf]
    %v146 = vld [vmem:[#allocation2 + $0x14c] sm:$0xf]
    %v147 = vld [vmem:[#allocation2 + $0x150] sm:$0xf]
    %v148 = vld [vmem:[#allocation2 + $0x154] sm:$0xf]
    %v149 = vld [vmem:[#allocation2 + $0x158] sm:$0xf]
    %v150 = vld [vmem:[#allocation2 + $0x15c] sm:$0xf]
    %v151 = vld [vmem:[#allocation2 + $0x160] sm:$0xf]
    %v152 = vld [vmem:[#allocation2 + $0x164] sm:$0xf]
    %v153 = vld [vmem:[#allocation2 + $0x168] sm:$0xf]
    %v154 = vld [vmem:[#allocation2 + $0x16c] sm:$0xf]
    %v155 = vld [vmem:[#allocation2 + $0x170] sm:$0xf]
    %v156 = vld [vmem:[#allocation2 + $0x174] sm:$0xf]
    %v157 = vld [vmem:[#allocation2 + $0x178] sm:$0xf]
    %v158 = vld [vmem:[#allocation2 + $0x17c] sm:$0xf]
    %v159 = vld [vmem:[#allocation2 + $0x180] sm:$0xf]
    %v160 = vld [vmem:[#allocation2 + $0x184] sm:$0xf]
    %v161 = vld [vmem:[#allocation2 + $0x188] sm:$0xf]
    %v162 = vld [vmem:[#allocation2 + $0x18c] sm:$0xf]
    %v163 = vld [vmem:[#allocation2 + $0x190] sm:$0xf]
    %v164 = vld [vmem:[#allocation2 + $0x194] sm:$0xf]
    %v165 = vld [vmem:[#allocation2 + $0x198] sm:$0xf]
    %v166 = vld [vmem:[#allocation2 + $0x19c] sm:$0xf]
    %v167 = vld [vmem:[#allocation2 + $0x1a0] sm:$0xf]
    %v168 = vld [vmem:[#allocation2 + $0x1a4] sm:$0xf]
    %v169 = vld [vmem:[#allocation2 + $0x1a8] sm:$0xf]
    %v170 = vld [vmem:[#allocation2 + $0x1ac] sm:$0xf]
    %v171 = vld [vmem:[#allocation2 + $0x1b0] sm:$0xf]
    %v172 = vld [vmem:[#allocation2 + $0x1b4] sm:$0xf]
    %v173 = vld [vmem:[#allocation2 + $0x1b8] sm:$0xf]
    %v174 = vld [vmem:[#allocation2 + $0x1bc] sm:$0xf]
    %v175 = vld [vmem:[#allocation2 + $0x1c0] sm:$0xf]
    %v176 = vld [vmem:[#allocation2 + $0x1c4] sm:$0xf]
    %v177 = vld [vmem:[#allocation2 + $0x1c8] sm:$0xf]
    %v178 = vld [vmem:[#allocation2 + $0x1cc] sm:$0xf]
    %v179 = vld [vmem:[#allocation2 + $0x1d0] sm:$0xf]
    %v180 = vld [vmem:[#allocation2 + $0x1d4] sm:$0xf]
    %v181 = vld [vmem:[#allocation2 + $0x1d8] sm:$0xf]
    %v182 = vld [vmem:[#allocation2 + $0x1dc] sm:$0xf]
    %v183 = vld [vmem:[#allocation2 + $0x1e0] sm:$0xf]
    %v184 = vld [vmem:[#allocation2 + $0x1e4] sm:$0xf]
    %v185 = vld [vmem:[#allocation2 + $0x1e8] sm:$0xf]
    %v186 = vld [vmem:[#allocation2 + $0x1ec] sm:$0xf]
    %v187 = vld [vmem:[#allocation2 + $0x1f0] sm:$0xf]
    %v188 = vld [vmem:[#allocation2 + $0x1f4] sm:$0xf]
    %v189 = vld [vmem:[#allocation2 + $0x1f8] sm:$0xf]
    %v190 = vld [vmem:[#allocation2 + $0x1fc] sm:$0xf]
    %v191 = vld [vmem:[#allocation2 + $0x200] sm:$0xf]
    %v192 = vld [vmem:[#allocation2 + $0x204] sm:$0xf]
    %v193 = vld [vmem:[#allocation2 + $0x208] sm:$0xf]
    %v194 = vld [vmem:[#allocation2 + $0x20c] sm:$0xf]
    %v195 = vld [vmem:[#allocation2 + $0x210] sm:$0xf]
    %v196 = vld [vmem:[#allocation2 + $0x214] sm:$0xf]
    %v197 = vld [vmem:[#allocation2 + $0x218] sm:$0xf]
    %v198 = vld [vmem:[#allocation2 + $0x21c] sm:$0xf]
    %v199 = vld [vmem:[#allocation2 + $0x220] sm:$0xf]
    %v200 = vld [vmem:[#allocation2 + $0x224] sm:$0xf]
    %v201 = vld [vmem:[#allocation2 + $0x228] sm:$0xf]
    %v202 = vld [vmem:[#allocation2 + $0x22c] sm:$0xf]
    %v203 = vld [vmem:[#allocation2 + $0x230] sm:$0xf]
    %v204 = vld [vmem:[#allocation2 + $0x234] sm:$0xf]
    %v205 = vld [vmem:[#allocation2 + $0x238] sm:$0xf]
    %v206 = vld [vmem:[#allocation2 + $0x23c] sm:$0xf]
    %v207 = vld [vmem:[#allocation2 + $0x240] sm:$0xf]
    %v208 = vld [vmem:[#allocation2 + $0x244] sm:$0xf]
    %v209 = vld [vmem:[#allocation2 + $0x248] sm:$0xf]
    %v210 = vld [vmem:[#allocation2 + $0x24c] sm:$0xf]
    %v211 = vld [vmem:[#allocation2 + $0x250] sm:$0xf]
    %v212 = vld [vmem:[#allocation2 + $0x254] sm:$0xf]
    %v213 = vld [vmem:[#allocation2 + $0x258] sm:$0xf]
    %v214 = vld [vmem:[#allocation2 + $0x25c] sm:$0xf]
    %v215 = vld [vmem:[#allocation2 + $0x260] sm:$0xf]
    %v216 = vld [vmem:[#allocation2 + $0x264] sm:$0xf]
    %v217 = vld [vmem:[#allocation2 + $0x268] sm:$0xf]
    %v218 = vld [vmem:[#allocation2 + $0x26c] sm:$0xf]
    %v219 = vld [vmem:[#allocation2 + $0x270] sm:$0xf]
    %v220 = vld [vmem:[#allocation2 + $0x274] sm:$0xf]
    %v221 = vld [vmem:[#allocation2 + $0x278] sm:$0xf]
    %v222 = vld [vmem:[#allocation2 + $0x27c] sm:$0xf]
    %v223 = vld [vmem:[#allocation2 + $0x280] sm:$0xf]
    %v224 = vld [vmem:[#allocation2 + $0x284] sm:$0xf]
    %v225 = vld [vmem:[#allocation2 + $0x288] sm:$0xf]
    %v226 = vld [vmem:[#allocation2 + $0x28c] sm:$0xf]
    %v227 = vld [vmem:[#allocation2 + $0x290] sm:$0xf]
    %v228 = vld [vmem:[#allocation2 + $0x294] sm:$0xf]
    %v229 = vld [vmem:[#allocation2 + $0x298] sm:$0xf]
    %v230 = vld [vmem:[#allocation2 + $0x29c] sm:$0xf]
    %v231 = vld [vmem:[#allocation2 + $0x2a0] sm:$0xf]
    %v232 = vld [vmem:[#allocation2 + $0x2a4] sm:$0xf]
    %v233 = vld [vmem:[#allocation2 + $0x2a8] sm:$0xf]
    %v234 = vld [vmem:[#allocation2 + $0x2ac] sm:$0xf]
    %v235 = vld [vmem:[#allocation2 + $0x2b0] sm:$0xf]
    %v236 = vld [vmem:[#allocation2 + $0x2b4] sm:$0xf]
    %v237 = vld [vmem:[#allocation2 + $0x2b8] sm:$0xf]
    %v238 = vld [vmem:[#allocation2 + $0x2bc] sm:$0xf]
    %v239 = vld [vmem:[#allocation2 + $0x2c0] sm:$0xf]
    %v240 = vld [vmem:[#allocation2 + $0x2c4] sm:$0xf]
    %v241 = vld [vmem:[#allocation2 + $0x2c8] sm:$0xf]
    %v242 = vld [vmem:[#allocation2 + $0x2cc] sm:$0xf]
    %v243 = vld [vmem:[#allocation2 + $0x2d0] sm:$0xf]
    %v244 = vld [vmem:[#allocation2 + $0x2d4] sm:$0xf]
    %v245 = vld [vmem:[#allocation2 + $0x2d8] sm:$0xf]
    %v246 = vld [vmem:[#allocation2 + $0x2dc] sm:$0xf]
    %v247 = vld [vmem:[#allocation2 + $0x2e0] sm:$0xf]
    %v248 = vld [vmem:[#allocation2 + $0x2e4] sm:$0xf]
    %v249 = vld [vmem:[#allocation2 + $0x2e8] sm:$0xf]
    %v250 = vld [vmem:[#allocation2 + $0x2ec] sm:$0xf]
    %v251 = vld [vmem:[#allocation2 + $0x2f0] sm:$0xf]
    %v252 = vld [vmem:[#allocation2 + $0x2f4] sm:$0xf]
    %v253 = vld [vmem:[#allocation2 + $0x2f8] sm:$0xf]
    %v254 = vld [vmem:[#allocation2 + $0x2fc] sm:$0xf]
    %v255 = vld [vmem:[#allocation2 + $0x300] sm:$0xf]
    %v256 = vld [vmem:[#allocation2 + $0x304] sm:$0xf]
    %v257 = vld [vmem:[#allocation2 + $0x308] sm:$0xf]
    %v258 = vld [vmem:[#allocation2 + $0x30c] sm:$0xf]
    %v259 = vld [vmem:[#allocation2 + $0x310] sm:$0xf]
    %v260 = vld [vmem:[#allocation2 + $0x314] sm:$0xf]
    %v261 = vld [vmem:[#allocation2 + $0x318] sm:$0xf]
    %v262 = vld [vmem:[#allocation2 + $0x31c] sm:$0xf]
    %v263 = vld [vmem:[#allocation2 + $0x320] sm:$0xf]
    %v264 = vld [vmem:[#allocation2 + $0x324] sm:$0xf]
    %v265 = vld [vmem:[#allocation2 + $0x328] sm:$0xf]
    %v266 = vld [vmem:[#allocation2 + $0x32c] sm:$0xf]
    %v267 = vld [vmem:[#allocation2 + $0x330] sm:$0xf]
    %v268 = vld [vmem:[#allocation2 + $0x334] sm:$0xf]
    %v269 = vld [vmem:[#allocation2 + $0x338] sm:$0xf]
    %v270 = vld [vmem:[#allocation2 + $0x33c] sm:$0xf]
    %v271 = vld [vmem:[#allocation2 + $0x340] sm:$0xf]
    %v272 = vld [vmem:[#allocation2 + $0x344] sm:$0xf]
    %v273 = vld [vmem:[#allocation2 + $0x348] sm:$0xf]
    %v274 = vld [vmem:[#allocation2 + $0x34c] sm:$0xf]
    %v275 = vld [vmem:[#allocation2 + $0x350] sm:$0xf]
    %v276 = vld [vmem:[#allocation2 + $0x354] sm:$0xf]
    %v277 = vld [vmem:[#allocation2 + $0x358] sm:$0xf]
    %v278 = vld [vmem:[#allocation2 + $0x35c] sm:$0xf]
    %v279 = vld [vmem:[#allocation2 + $0x360] sm:$0xf]
    %v280 = vld [vmem:[#allocation2 + $0x364] sm:$0xf]
    %v281 = vld [vmem:[#allocation2 + $0x368] sm:$0xf]
    %v282 = vld [vmem:[#allocation2 + $0x36c] sm:$0xf]
    %v283 = vld [vmem:[#allocation2 + $0x370] sm:$0xf]
    %v284 = vld [vmem:[#allocation2 + $0x374] sm:$0xf]
    %v285 = vld [vmem:[#allocation2 + $0x378] sm:$0xf]
    %v286 = vld [vmem:[#allocation2 + $0x37c] sm:$0xf]
    %v287 = vld [vmem:[#allocation2 + $0x380] sm:$0xf]
    %v288 = vld [vmem:[#allocation2 + $0x384] sm:$0xf]
    %v289 = vld [vmem:[#allocation2 + $0x388] sm:$0xf]
    %v290 = vld [vmem:[#allocation2 + $0x38c] sm:$0xf]
    %v291 = vld [vmem:[#allocation2 + $0x390] sm:$0xf]
    %v292 = vld [vmem:[#allocation2 + $0x394] sm:$0xf]
    %v293 = vld [vmem:[#allocation2 + $0x398] sm:$0xf]
    %v294 = vld [vmem:[#allocation2 + $0x39c] sm:$0xf]
    %v295 = vld [vmem:[#allocation2 + $0x3a0] sm:$0xf]
    %v296 = vld [vmem:[#allocation2 + $0x3a4] sm:$0xf]
    %v297 = vld [vmem:[#allocation2 + $0x3a8] sm:$0xf]
    %v298 = vld [vmem:[#allocation2 + $0x3ac] sm:$0xf]
    %v299 = vld [vmem:[#allocation2 + $0x3b0] sm:$0xf]
    %v300 = vld [vmem:[#allocation2 + $0x3b4] sm:$0xf]
    %v301 = vld [vmem:[#allocation2 + $0x3b8] sm:$0xf]
    %v302 = vld [vmem:[#allocation2 + $0x3bc] sm:$0xf]
    %v303 = vld [vmem:[#allocation2 + $0x3c0] sm:$0xf]
    %v304 = vld [vmem:[#allocation2 + $0x3c4] sm:$0xf]
    %v305 = vld [vmem:[#allocation2 + $0x3c8] sm:$0xf]
    %v306 = vld [vmem:[#allocation2 + $0x3cc] sm:$0xf]
    %v307 = vld [vmem:[#allocation2 + $0x3d0] sm:$0xf]
    %v308 = vld [vmem:[#allocation2 + $0x3d4] sm:$0xf]
    %v309 = vld [vmem:[#allocation2 + $0x3d8] sm:$0xf]
    %v310 = vld [vmem:[#allocation2 + $0x3dc] sm:$0xf]
    %v311 = vld [vmem:[#allocation2 + $0x3e0] sm:$0xf]
    %v312 = vld [vmem:[#allocation2 + $0x3e4] sm:$0xf]
    %v313 = vld [vmem:[#allocation2 + $0x3e8] sm:$0xf]
    %v314 = vld [vmem:[#allocation2 + $0x3ec] sm:$0xf]
    %v315 = vld [vmem:[#allocation2 + $0x3f0] sm:$0xf]
    %v316 = vld [vmem:[#allocation2 + $0x3f4] sm:$0xf]
    %v317 = vld [vmem:[#allocation2 + $0x3f8] sm:$0xf]
    %v318 = vld [vmem:[#allocation2 + $0x3fc] sm:$0xf]
    %v319 = vld [vmem:[#allocation5] sm:$0xf]
    %v320 = vld [vmem:[#allocation5 + $0x4] sm:$0xf]
    %v321 = vld [vmem:[#allocation5 + $0x8] sm:$0xf]
    %v322 = vld [vmem:[#allocation5 + $0xc] sm:$0xf]
    %v323 = vld [vmem:[#allocation5 + $0x10] sm:$0xf]
    %v324 = vld [vmem:[#allocation5 + $0x14] sm:$0xf]
    %v325 = vld [vmem:[#allocation5 + $0x18] sm:$0xf]
    %v326 = vld [vmem:[#allocation5 + $0x1c] sm:$0xf]
    %v327 = vld [vmem:[#allocation5 + $0x20] sm:$0xf]
    %v328 = vld [vmem:[#allocation5 + $0x24] sm:$0xf]
    %v329 = vld [vmem:[#allocation5 + $0x28] sm:$0xf]
    %v330 = vld [vmem:[#allocation5 + $0x2c] sm:$0xf]
    %v331 = vld [vmem:[#allocation5 + $0x30] sm:$0xf]
    %v332 = vld [vmem:[#allocation5 + $0x34] sm:$0xf]
    %v333 = vld [vmem:[#allocation5 + $0x38] sm:$0xf]
    %v334 = vld [vmem:[#allocation5 + $0x3c] sm:$0xf]
    %v335 = vld [vmem:[%s2] sm:$0x1]
    %v337 = vlaneseq
    %v338 = vshrl.u32 %v337, 7
    %v339 = vsub.s32 0, %v338
    %v340 = vrot.slane %v335, %v339
    %v598 = vunpack.c.l.b16 %v63
    %v599 = vunpack.c.l.b16 %v64
    %v600 = vunpack.c.l.b16 %v65
    %v601 = vunpack.c.l.b16 %v66
    %v602 = vunpack.c.l.b16 %v67
    %v603 = vunpack.c.l.b16 %v68
    %v604 = vunpack.c.l.b16 %v69
    %v605 = vunpack.c.l.b16 %v70
    %v606 = vunpack.c.l.b16 %v71
    %v607 = vunpack.c.l.b16 %v72
    %v608 = vunpack.c.l.b16 %v73
    %v609 = vunpack.c.l.b16 %v74
    %v610 = vunpack.c.l.b16 %v75
    %v611 = vunpack.c.l.b16 %v76
    %v612 = vunpack.c.l.b16 %v77
    %v613 = vunpack.c.l.b16 %v78
    %v614 = vunpack.c.l.b16 %v79
    %v615 = vunpack.c.l.b16 %v80
    %v616 = vunpack.c.l.b16 %v81
    %v617 = vunpack.c.l.b16 %v82
    %v618 = vunpack.c.l.b16 %v83
    %v619 = vunpack.c.l.b16 %v84
    %v620 = vunpack.c.l.b16 %v85
    %v621 = vunpack.c.l.b16 %v86
    %v622 = vunpack.c.l.b16 %v87
    %v623 = vunpack.c.l.b16 %v88
    %v624 = vunpack.c.l.b16 %v89
    %v625 = vunpack.c.l.b16 %v90
    %v626 = vunpack.c.l.b16 %v91
    %v627 = vunpack.c.l.b16 %v92
    %v628 = vunpack.c.l.b16 %v93
    %v629 = vunpack.c.l.b16 %v94
    %v630 = vunpack.c.l.b16 %v95
    %v631 = vunpack.c.l.b16 %v96
    %v632 = vunpack.c.l.b16 %v97
    %v633 = vunpack.c.l.b16 %v98
    %v634 = vunpack.c.l.b16 %v99
    %v635 = vunpack.c.l.b16 %v100
    %v636 = vunpack.c.l.b16 %v101
    %v637 = vunpack.c.l.b16 %v102
    %v638 = vunpack.c.l.b16 %v103
    %v639 = vunpack.c.l.b16 %v104
    %v640 = vunpack.c.l.b16 %v105
    %v641 = vunpack.c.l.b16 %v106
    %v642 = vunpack.c.l.b16 %v107
    %v643 = vunpack.c.l.b16 %v108
    %v644 = vunpack.c.l.b16 %v109
    %v645 = vunpack.c.l.b16 %v110
    %v646 = vunpack.c.l.b16 %v111
    %v647 = vunpack.c.l.b16 %v112
    %v648 = vunpack.c.l.b16 %v113
    %v649 = vunpack.c.l.b16 %v114
    %v650 = vunpack.c.l.b16 %v115
    %v651 = vunpack.c.l.b16 %v116
    %v652 = vunpack.c.l.b16 %v117
    %v653 = vunpack.c.l.b16 %v118
    %v654 = vunpack.c.l.b16 %v119
    %v655 = vunpack.c.l.b16 %v120
    %v656 = vunpack.c.l.b16 %v121
    %v657 = vunpack.c.l.b16 %v122
    %v658 = vunpack.c.l.b16 %v123
    %v659 = vunpack.c.l.b16 %v124
    %v660 = vunpack.c.l.b16 %v125
    %v661 = vunpack.c.l.b16 %v126
    %v662 = vunpack.c.l.b16 %v127
    %v663 = vunpack.c.l.b16 %v128
    %v664 = vunpack.c.l.b16 %v129
    %v665 = vunpack.c.l.b16 %v130
    %v666 = vunpack.c.l.b16 %v131
    %v667 = vunpack.c.l.b16 %v132
    %v668 = vunpack.c.l.b16 %v133
    %v669 = vunpack.c.l.b16 %v134
    %v670 = vunpack.c.l.b16 %v135
    %v671 = vunpack.c.l.b16 %v136
    %v672 = vunpack.c.l.b16 %v137
    %v673 = vunpack.c.l.b16 %v138
    %v674 = vunpack.c.l.b16 %v139
    %v675 = vunpack.c.l.b16 %v140
    %v676 = vunpack.c.l.b16 %v141
    %v677 = vunpack.c.l.b16 %v142
    %v678 = vunpack.c.l.b16 %v143
    %v679 = vunpack.c.l.b16 %v144
    %v680 = vunpack.c.l.b16 %v145
    %v681 = vunpack.c.l.b16 %v146
    %v682 = vunpack.c.l.b16 %v147
    %v683 = vunpack.c.l.b16 %v148
    %v684 = vunpack.c.l.b16 %v149
    %v685 = vunpack.c.l.b16 %v150
    %v686 = vunpack.c.l.b16 %v151
    %v687 = vunpack.c.l.b16 %v152
    %v688 = vunpack.c.l.b16 %v153
    %v689 = vunpack.c.l.b16 %v154
    %v690 = vunpack.c.l.b16 %v155
    %v691 = vunpack.c.l.b16 %v156
    %v692 = vunpack.c.l.b16 %v157
    %v693 = vunpack.c.l.b16 %v158
    %v694 = vunpack.c.l.b16 %v159
    %v695 = vunpack.c.l.b16 %v160
    %v696 = vunpack.c.l.b16 %v161
    %v697 = vunpack.c.l.b16 %v162
    %v698 = vunpack.c.l.b16 %v163
    %v699 = vunpack.c.l.b16 %v164
    %v700 = vunpack.c.l.b16 %v165
    %v701 = vunpack.c.l.b16 %v166
    %v702 = vunpack.c.l.b16 %v167
    %v703 = vunpack.c.l.b16 %v168
    %v704 = vunpack.c.l.b16 %v169
    %v705 = vunpack.c.l.b16 %v170
    %v706 = vunpack.c.l.b16 %v171
    %v707 = vunpack.c.l.b16 %v172
    %v708 = vunpack.c.l.b16 %v173
    %v709 = vunpack.c.l.b16 %v174
    %v710 = vunpack.c.l.b16 %v175
    %v711 = vunpack.c.l.b16 %v176
    %v712 = vunpack.c.l.b16 %v177
    %v713 = vunpack.c.l.b16 %v178
    %v714 = vunpack.c.l.b16 %v179
    %v715 = vunpack.c.l.b16 %v180
    %v716 = vunpack.c.l.b16 %v181
    %v717 = vunpack.c.l.b16 %v182
    %v718 = vunpack.c.l.b16 %v183
    %v719 = vunpack.c.l.b16 %v184
    %v720 = vunpack.c.l.b16 %v185
    %v721 = vunpack.c.l.b16 %v186
    %v722 = vunpack.c.l.b16 %v187
    %v723 = vunpack.c.l.b16 %v188
    %v724 = vunpack.c.l.b16 %v189
    %v725 = vunpack.c.l.b16 %v190
    %v726 = vunpack.c.l.b16 %v191
    %v727 = vunpack.c.l.b16 %v192
    %v728 = vunpack.c.l.b16 %v193
    %v729 = vunpack.c.l.b16 %v194
    %v730 = vunpack.c.l.b16 %v195
    %v731 = vunpack.c.l.b16 %v196
    %v732 = vunpack.c.l.b16 %v197
    %v733 = vunpack.c.l.b16 %v198
    %v734 = vunpack.c.l.b16 %v199
    %v735 = vunpack.c.l.b16 %v200
    %v736 = vunpack.c.l.b16 %v201
    %v737 = vunpack.c.l.b16 %v202
    %v738 = vunpack.c.l.b16 %v203
    %v739 = vunpack.c.l.b16 %v204
    %v740 = vunpack.c.l.b16 %v205
    %v741 = vunpack.c.l.b16 %v206
    %v742 = vunpack.c.l.b16 %v207
    %v743 = vunpack.c.l.b16 %v208
    %v744 = vunpack.c.l.b16 %v209
    %v745 = vunpack.c.l.b16 %v210
    %v746 = vunpack.c.l.b16 %v211
    %v747 = vunpack.c.l.b16 %v212
    %v748 = vunpack.c.l.b16 %v213
    %v749 = vunpack.c.l.b16 %v214
    %v750 = vunpack.c.l.b16 %v215
    %v751 = vunpack.c.l.b16 %v216
    %v752 = vunpack.c.l.b16 %v217
    %v753 = vunpack.c.l.b16 %v218
    %v754 = vunpack.c.l.b16 %v219
    %v755 = vunpack.c.l.b16 %v220
    %v756 = vunpack.c.l.b16 %v221
    %v757 = vunpack.c.l.b16 %v222
    %v758 = vunpack.c.l.b16 %v223
    %v759 = vunpack.c.l.b16 %v224
    %v760 = vunpack.c.l.b16 %v225
    %v761 = vunpack.c.l.b16 %v226
    %v762 = vunpack.c.l.b16 %v227
    %v763 = vunpack.c.l.b16 %v228
    %v764 = vunpack.c.l.b16 %v229
    %v765 = vunpack.c.l.b16 %v230
    %v766 = vunpack.c.l.b16 %v231
    %v767 = vunpack.c.l.b16 %v232
    %v768 = vunpack.c.l.b16 %v233
    %v769 = vunpack.c.l.b16 %v234
    %v770 = vunpack.c.l.b16 %v235
    %v771 = vunpack.c.l.b16 %v236
    %v772 = vunpack.c.l.b16 %v237
    %v773 = vunpack.c.l.b16 %v238
    %v774 = vunpack.c.l.b16 %v239
    %v775 = vunpack.c.l.b16 %v240
    %v776 = vunpack.c.l.b16 %v241
    %v777 = vunpack.c.l.b16 %v242
    %v778 = vunpack.c.l.b16 %v243
    %v779 = vunpack.c.l.b16 %v244
    %v780 = vunpack.c.l.b16 %v245
    %v781 = vunpack.c.l.b16 %v246
    %v782 = vunpack.c.l.b16 %v247
    %v783 = vunpack.c.l.b16 %v248
    %v784 = vunpack.c.l.b16 %v249
    %v785 = vunpack.c.l.b16 %v250
    %v786 = vunpack.c.l.b16 %v251
    %v787 = vunpack.c.l.b16 %v252
    %v788 = vunpack.c.l.b16 %v253
    %v789 = vunpack.c.l.b16 %v254
    %v790 = vunpack.c.l.b16 %v255
    %v791 = vunpack.c.l.b16 %v256
    %v792 = vunpack.c.l.b16 %v257
    %v793 = vunpack.c.l.b16 %v258
    %v794 = vunpack.c.l.b16 %v259
    %v795 = vunpack.c.l.b16 %v260
    %v796 = vunpack.c.l.b16 %v261
    %v797 = vunpack.c.l.b16 %v262
    %v798 = vunpack.c.l.b16 %v263
    %v799 = vunpack.c.l.b16 %v264
    %v800 = vunpack.c.l.b16 %v265
    %v801 = vunpack.c.l.b16 %v266
    %v802 = vunpack.c.l.b16 %v267
    %v803 = vunpack.c.l.b16 %v268
    %v804 = vunpack.c.l.b16 %v269
    %v805 = vunpack.c.l.b16 %v270
    %v806 = vunpack.c.l.b16 %v271
    %v807 = vunpack.c.l.b16 %v272
    %v808 = vunpack.c.l.b16 %v273
    %v809 = vunpack.c.l.b16 %v274
    %v810 = vunpack.c.l.b16 %v275
    %v811 = vunpack.c.l.b16 %v276
    %v812 = vunpack.c.l.b16 %v277
    %v813 = vunpack.c.l.b16 %v278
    %v814 = vunpack.c.l.b16 %v279
    %v815 = vunpack.c.l.b16 %v280
    %v816 = vunpack.c.l.b16 %v281
    %v817 = vunpack.c.l.b16 %v282
    %v818 = vunpack.c.l.b16 %v283
    %v819 = vunpack.c.l.b16 %v284
    %v820 = vunpack.c.l.b16 %v285
    %v821 = vunpack.c.l.b16 %v286
    %v822 = vunpack.c.l.b16 %v287
    %v823 = vunpack.c.l.b16 %v288
    %v824 = vunpack.c.l.b16 %v289
    %v825 = vunpack.c.l.b16 %v290
    %v826 = vunpack.c.l.b16 %v291
    %v827 = vunpack.c.l.b16 %v292
    %v828 = vunpack.c.l.b16 %v293
    %v829 = vunpack.c.l.b16 %v294
    %v830 = vunpack.c.l.b16 %v295
    %v831 = vunpack.c.l.b16 %v296
    %v832 = vunpack.c.l.b16 %v297
    %v833 = vunpack.c.l.b16 %v298
    %v834 = vunpack.c.l.b16 %v299
    %v835 = vunpack.c.l.b16 %v300
    %v836 = vunpack.c.l.b16 %v301
    %v837 = vunpack.c.l.b16 %v302
    %v838 = vunpack.c.l.b16 %v303
    %v839 = vunpack.c.l.b16 %v304
    %v840 = vunpack.c.l.b16 %v305
    %v841 = vunpack.c.l.b16 %v306
    %v842 = vunpack.c.l.b16 %v307
    %v843 = vunpack.c.l.b16 %v308
    %v844 = vunpack.c.l.b16 %v309
    %v845 = vunpack.c.l.b16 %v310
    %v846 = vunpack.c.l.b16 %v311
    %v847 = vunpack.c.l.b16 %v312
    %v848 = vunpack.c.l.b16 %v313
    %v849 = vunpack.c.l.b16 %v314
    %v850 = vunpack.c.l.b16 %v315
    %v851 = vunpack.c.l.b16 %v316
    %v852 = vunpack.c.l.b16 %v317
    %v853 = vunpack.c.l.b16 %v318
    %v854 = vpack.c.b16 %v599, %v598
    %v855 = vpack.c.b16 %v601, %v600
    %v856 = vpack.c.b16 %v603, %v602
    %v857 = vpack.c.b16 %v605, %v604
    %v858 = vpack.c.b16 %v607, %v606
    %v859 = vpack.c.b16 %v609, %v608
    %v860 = vpack.c.b16 %v611, %v610
    %v861 = vpack.c.b16 %v613, %v612
    %v862 = vpack.c.b16 %v615, %v614
    %v863 = vpack.c.b16 %v617, %v616
    %v864 = vpack.c.b16 %v619, %v618
    %v865 = vpack.c.b16 %v621, %v620
    %v866 = vpack.c.b16 %v623, %v622
    %v867 = vpack.c.b16 %v625, %v624
    %v868 = vpack.c.b16 %v627, %v626
    %v869 = vpack.c.b16 %v629, %v628
    %v870 = vpack.c.b16 %v631, %v630
    %v871 = vpack.c.b16 %v633, %v632
    %v872 = vpack.c.b16 %v635, %v634
    %v873 = vpack.c.b16 %v637, %v636
    %v874 = vpack.c.b16 %v639, %v638
    %v875 = vpack.c.b16 %v641, %v640
    %v876 = vpack.c.b16 %v643, %v642
    %v877 = vpack.c.b16 %v645, %v644
    %v878 = vpack.c.b16 %v647, %v646
    %v879 = vpack.c.b16 %v649, %v648
    %v880 = vpack.c.b16 %v651, %v650
    %v881 = vpack.c.b16 %v653, %v652
    %v882 = vpack.c.b16 %v655, %v654
    %v883 = vpack.c.b16 %v657, %v656
    %v884 = vpack.c.b16 %v659, %v658
    %v885 = vpack.c.b16 %v661, %v660
    %v886 = vpack.c.b16 %v663, %v662
    %v887 = vpack.c.b16 %v665, %v664
    %v888 = vpack.c.b16 %v667, %v666
    %v889 = vpack.c.b16 %v669, %v668
    %v890 = vpack.c.b16 %v671, %v670
    %v891 = vpack.c.b16 %v673, %v672
    %v892 = vpack.c.b16 %v675, %v674
    %v893 = vpack.c.b16 %v677, %v676
    %v894 = vpack.c.b16 %v679, %v678
    %v895 = vpack.c.b16 %v681, %v680
    %v896 = vpack.c.b16 %v683, %v682
    %v897 = vpack.c.b16 %v685, %v684
    %v898 = vpack.c.b16 %v687, %v686
    %v899 = vpack.c.b16 %v689, %v688
    %v900 = vpack.c.b16 %v691, %v690
    %v901 = vpack.c.b16 %v693, %v692
    %v902 = vpack.c.b16 %v695, %v694
    %v903 = vpack.c.b16 %v697, %v696
    %v904 = vpack.c.b16 %v699, %v698
    %v905 = vpack.c.b16 %v701, %v700
    %v906 = vpack.c.b16 %v703, %v702
    %v907 = vpack.c.b16 %v705, %v704
    %v908 = vpack.c.b16 %v707, %v706
    %v909 = vpack.c.b16 %v709, %v708
    %v910 = vpack.c.b16 %v711, %v710
    %v911 = vpack.c.b16 %v713, %v712
    %v912 = vpack.c.b16 %v715, %v714
    %v913 = vpack.c.b16 %v717, %v716
    %v914 = vpack.c.b16 %v719, %v718
    %v915 = vpack.c.b16 %v721, %v720
    %v916 = vpack.c.b16 %v723, %v722
    %v917 = vpack.c.b16 %v725, %v724
    %v918 = vpack.c.b16 %v727, %v726
    %v919 = vpack.c.b16 %v729, %v728
    %v920 = vpack.c.b16 %v731, %v730
    %v921 = vpack.c.b16 %v733, %v732
    %v922 = vpack.c.b16 %v735, %v734
    %v923 = vpack.c.b16 %v737, %v736
    %v924 = vpack.c.b16 %v739, %v738
    %v925 = vpack.c.b16 %v741, %v740
    %v926 = vpack.c.b16 %v743, %v742
    %v927 = vpack.c.b16 %v745, %v744
    %v928 = vpack.c.b16 %v747, %v746
    %v929 = vpack.c.b16 %v749, %v748
    %v930 = vpack.c.b16 %v751, %v750
    %v931 = vpack.c.b16 %v753, %v752
    %v932 = vpack.c.b16 %v755, %v754
    %v933 = vpack.c.b16 %v757, %v756
    %v934 = vpack.c.b16 %v759, %v758
    %v935 = vpack.c.b16 %v761, %v760
    %v936 = vpack.c.b16 %v763, %v762
    %v937 = vpack.c.b16 %v765, %v764
    %v938 = vpack.c.b16 %v767, %v766
    %v939 = vpack.c.b16 %v769, %v768
    %v940 = vpack.c.b16 %v771, %v770
    %v941 = vpack.c.b16 %v773, %v772
    %v942 = vpack.c.b16 %v775, %v774
    %v943 = vpack.c.b16 %v777, %v776
    %v944 = vpack.c.b16 %v779, %v778
    %v945 = vpack.c.b16 %v781, %v780
    %v946 = vpack.c.b16 %v783, %v782
    %v947 = vpack.c.b16 %v785, %v784
    %v948 = vpack.c.b16 %v787, %v786
    %v949 = vpack.c.b16 %v789, %v788
    %v950 = vpack.c.b16 %v791, %v790
    %v951 = vpack.c.b16 %v793, %v792
    %v952 = vpack.c.b16 %v795, %v794
    %v953 = vpack.c.b16 %v797, %v796
    %v954 = vpack.c.b16 %v799, %v798
    %v955 = vpack.c.b16 %v801, %v800
    %v956 = vpack.c.b16 %v803, %v802
    %v957 = vpack.c.b16 %v805, %v804
    %v958 = vpack.c.b16 %v807, %v806
    %v959 = vpack.c.b16 %v809, %v808
    %v960 = vpack.c.b16 %v811, %v810
    %v961 = vpack.c.b16 %v813, %v812
    %v962 = vpack.c.b16 %v815, %v814
    %v963 = vpack.c.b16 %v817, %v816
    %v964 = vpack.c.b16 %v819, %v818
    %v965 = vpack.c.b16 %v821, %v820
    %v966 = vpack.c.b16 %v823, %v822
    %v967 = vpack.c.b16 %v825, %v824
    %v968 = vpack.c.b16 %v827, %v826
    %v969 = vpack.c.b16 %v829, %v828
    %v970 = vpack.c.b16 %v831, %v830
    %v971 = vpack.c.b16 %v833, %v832
    %v972 = vpack.c.b16 %v835, %v834
    %v973 = vpack.c.b16 %v837, %v836
    %v974 = vpack.c.b16 %v839, %v838
    %v975 = vpack.c.b16 %v841, %v840
    %v976 = vpack.c.b16 %v843, %v842
    %v977 = vpack.c.b16 %v845, %v844
    %v978 = vpack.c.b16 %v847, %v846
    %v979 = vpack.c.b16 %v849, %v848
    %v980 = vpack.c.b16 %v851, %v850
    %v981 = vpack.c.b16 %v853, %v852
    %v1126 = vunpack.c.l.b16 %v319
    %v1127 = vunpack.c.l.b16 %v320
    %v1128 = vunpack.c.l.b16 %v321
    %v1129 = vunpack.c.l.b16 %v322
    %v1130 = vunpack.c.l.b16 %v323
    %v1131 = vunpack.c.l.b16 %v324
    %v1132 = vunpack.c.l.b16 %v325
    %v1133 = vunpack.c.l.b16 %v326
    %v1134 = vunpack.c.l.b16 %v327
    %v1135 = vunpack.c.l.b16 %v328
    %v1136 = vunpack.c.l.b16 %v329
    %v1137 = vunpack.c.l.b16 %v330
    %v1138 = vunpack.c.l.b16 %v331
    %v1139 = vunpack.c.l.b16 %v332
    %v1140 = vunpack.c.l.b16 %v333
    %v1141 = vunpack.c.l.b16 %v334
    %v1142 = vpack.c.b16 %v1127, %v1126
    %v1143 = vpack.c.b16 %v1129, %v1128
    %v1144 = vpack.c.b16 %v1131, %v1130
    %v1145 = vpack.c.b16 %v1133, %v1132
    %v1146 = vpack.c.b16 %v1135, %v1134
    %v1147 = vpack.c.b16 %v1137, %v1136
    %v1148 = vpack.c.b16 %v1139, %v1138
    %v1149 = vpack.c.b16 %v1141, %v1140
    %1158 = vmatprep.subr.bf16.mxu0 0
    %1159 = vmatpush1.bf16.msra.mxu0 %v1142
    %1160 = vmatprep.subr.bf16.mxu0 0
    %1161 = vmatpush1.bf16.msra.mxu0 %v1143
    %1162 = vmatprep.subr.bf16.mxu0 0
    %1163 = vmatpush1.bf16.msra.mxu0 %v1144
    %1164 = vmatprep.subr.bf16.mxu0 0
    %1165 = vmatpush1.bf16.msra.mxu0 %v1145
    %1166 = vmatprep.subr.bf16.mxu0 0
    %1167 = vmatpush1.bf16.msra.mxu0 %v1146
    %1168 = vmatprep.subr.bf16.mxu0 0
    %1169 = vmatpush1.bf16.msra.mxu0 %v1147
    %1170 = vmatprep.subr.bf16.mxu0 0
    %1171 = vmatpush1.bf16.msra.mxu0 %v1148
    %1172 = vmatprep.subr.bf16.mxu0 0
    %1173 = vmatpush1.bf16.msra.mxu0 %v1149
    %1174 = vmatprep.subr.bf16.mxu0 0
    %1175 = vmatpush1.bf16.msra.mxu0 0
    %1176 = vmatprep.subr.bf16.mxu0 0
    %1177 = vmatpush1.bf16.msra.mxu0 0
    %1178 = vmatprep.subr.bf16.mxu0 0
    %1179 = vmatpush1.bf16.msra.mxu0 0
    %1180 = vmatprep.subr.bf16.mxu0 0
    %1181 = vmatpush1.bf16.msra.mxu0 0
    %1182 = vmatprep.subr.bf16.mxu0 0
    %1183 = vmatpush1.bf16.msra.mxu0 0
    %1184 = vmatprep.subr.bf16.mxu0 0
    %1185 = vmatpush1.bf16.msra.mxu0 0
    %1186 = vmatprep.subr.bf16.mxu0 0
    %1187 = vmatpush1.bf16.msra.mxu0 0
    %1188 = vmatprep.subr.bf16.mxu0 0
    %1189 = vmatpush1.bf16.msra.mxu0 0
    %1190 = vmatprep.mubr.bf16.mxu0 0
    %1191 = vmatmul.mubr.bf16.gmra.mrb[0].mxu0 %v854
    %v1192 = vpop.f32.mrb[0].mxu0
    %v1193 = vadd.f32 %v340, %v1192
    %v1194 = vpop.f32.mrb[0].mxu0
    %v1195 = vpop.f32.mrb[0].mxu0
    %v1196 = vadd.f32 %v340, %v1195
    %v1197 = vpop.f32.mrb[0].mxu0
    %1198 = vmatprep.mubr.bf16.mxu0 0
    %1199 = vmatmul.mubr.bf16.gmra.mrb[0].mxu0 %v855
    %v1200 = vpop.f32.mrb[0].mxu0
    %v1201 = vadd.f32 %v340, %v1200
    %v1202 = vpop.f32.mrb[0].mxu0
    %v1203 = vpop.f32.mrb[0].mxu0
    %v1204 = vadd.f32 %v340, %v1203
    %v1205 = vpop.f32.mrb[0].mxu0
    %1206 = vmatprep.mubr.bf16.mxu0 0
    %1207 = vmatmul.mubr.bf16.gmra.mrb[0].mxu0 %v856
    %v1208 = vpop.f32.mrb[0].mxu0
    %v1209 = vadd.f32 %v340, %v1208
    %v1210 = vpop.f32.mrb[0].mxu0
    %v1211 = vpop.f32.mrb[0].mxu0
    %v1212 = vadd.f32 %v340, %v1211
    %v1213 = vpop.f32.mrb[0].mxu0
    %1214 = vmatprep.mubr.bf16.mxu0 0
    %1215 = vmatmul.mubr.bf16.gmra.mrb[0].mxu0 %v857
    %v1216 = vpop.f32.mrb[0].mxu0
    %v1217 = vadd.f32 %v340, %v1216
    %v1218 = vpop.f32.mrb[0].mxu0
    %v1219 = vpop.f32.mrb[0].mxu0
    %v1220 = vadd.f32 %v340, %v1219
    %v1221 = vpop.f32.mrb[0].mxu0
    %1222 = vmatprep.mubr.bf16.mxu0 0
    %1223 = vmatmul.mubr.bf16.gmra.mrb[0].mxu0 %v858
    %v1224 = vpop.f32.mrb[0].mxu0
    %v1225 = vadd.f32 %v340, %v1224
    %v1226 = vpop.f32.mrb[0].mxu0
    %v1227 = vpop.f32.mrb[0].mxu0
    %v1228 = vadd.f32 %v340, %v1227
    %v1229 = vpop.f32.mrb[0].mxu0
    %1230 = vmatprep.mubr.bf16.mxu0 0
    %1231 = vmatmul.mubr.bf16.gmra.mrb[0].mxu0 %v859
    %v1232 = vpop.f32.mrb[0].mxu0
    %v1233 = vadd.f32 %v340, %v1232
    %v1234 = vpop.f32.mrb[0].mxu0
    %v1235 = vpop.f32.mrb[0].mxu0
    %v1236 = vadd.f32 %v340, %v1235
    %v1237 = vpop.f32.mrb[0].mxu0
    %1238 = vmatprep.mubr.bf16.mxu0 0
    %1239 = vmatmul.mubr.bf16.gmra.mrb[0].mxu0 %v860
    %v1240 = vpop.f32.mrb[0].mxu0
    %v1241 = vadd.f32 %v340, %v1240
    %v1242 = vpop.f32.mrb[0].mxu0
    %v1243 = vpop.f32.mrb[0].mxu0
    %v1244 = vadd.f32 %v340, %v1243
    %v1245 = vpop.f32.mrb[0].mxu0
    %1246 = vmatprep.mubr.bf16.mxu0 0
    %1247 = vmatmul.mubr.bf16.gmra.mrb[0].mxu0 %v861
    %v1248 = vpop.f32.mrb[0].mxu0
    %v1249 = vadd.f32 %v340, %v1248
    %v1250 = vpop.f32.mrb[0].mxu0
    %v1251 = vpop.f32.mrb[0].mxu0
    %v1252 = vadd.f32 %v340, %v1251
    %v1253 = vpop.f32.mrb[0].mxu0
    %1254 = vmatprep.mubr.bf16.mxu0 0
    %1255 = vmatmul.mubr.bf16.gmra.mrb[0].mxu0 %v862
    %v1256 = vpop.f32.mrb[0].mxu0
    %v1257 = vadd.f32 %v340, %v1256
    %v1258 = vpop.f32.mrb[0].mxu0
    %v1259 = vpop.f32.mrb[0].mxu0
    %v1260 = vadd.f32 %v340, %v1259
    %v1261 = vpop.f32.mrb[0].mxu0
    %1262 = vmatprep.mubr.bf16.mxu0 0
    %1263 = vmatmul.mubr.bf16.gmra.mrb[0].mxu0 %v863
    %v1264 = vpop.f32.mrb[0].mxu0
    %v1265 = vadd.f32 %v340, %v1264
    %v1266 = vpop.f32.mrb[0].mxu0
    %v1267 = vpop.f32.mrb[0].mxu0
    %v1268 = vadd.f32 %v340, %v1267
    %v1269 = vpop.f32.mrb[0].mxu0
    %1270 = vmatprep.mubr.bf16.mxu0 0
    %1271 = vmatmul.mubr.bf16.gmra.mrb[0].mxu0 %v864
    %v1272 = vpop.f32.mrb[0].mxu0
    %v1273 = vadd.f32 %v340, %v1272
    %v1274 = vpop.f32.mrb[0].mxu0
    %v1275 = vpop.f32.mrb[0].mxu0
    %v1276 = vadd.f32 %v340, %v1275
    %v1277 = vpop.f32.mrb[0].mxu0
    %1278 = vmatprep.mubr.bf16.mxu0 0
    %1279 = vmatmul.mubr.bf16.gmra.mrb[0].mxu0 %v865
    %v1280 = vpop.f32.mrb[0].mxu0
    %v1281 = vadd.f32 %v340, %v1280
    %v1282 = vpop.f32.mrb[0].mxu0
    %v1283 = vpop.f32.mrb[0].mxu0
    %v1284 = vadd.f32 %v340, %v1283
    %v1285 = vpop.f32.mrb[0].mxu0
    %1286 = vmatprep.mubr.bf16.mxu0 0
    %1287 = vmatmul.mubr.bf16.gmra.mrb[0].mxu0 %v866
    %v1288 = vpop.f32.mrb[0].mxu0
    %v1289 = vadd.f32 %v340, %v1288
    %v1290 = vpop.f32.mrb[0].mxu0
    %v1291 = vpop.f32.mrb[0].mxu0
    %v1292 = vadd.f32 %v340, %v1291
    %v1293 = vpop.f32.mrb[0].mxu0
    %1294 = vmatprep.mubr.bf16.mxu0 0
    %1295 = vmatmul.mubr.bf16.gmra.mrb[0].mxu0 %v867
    %v1296 = vpop.f32.mrb[0].mxu0
    %v1297 = vadd.f32 %v340, %v1296
    %v1298 = vpop.f32.mrb[0].mxu0
    %v1299 = vpop.f32.mrb[0].mxu0
    %v1300 = vadd.f32 %v340, %v1299
    %v1301 = vpop.f32.mrb[0].mxu0
    %1302 = vmatprep.mubr.bf16.mxu0 0
    %1303 = vmatmul.mubr.bf16.gmra.mrb[0].mxu0 %v868
    %v1304 = vpop.f32.mrb[0].mxu0
    %v1305 = vadd.f32 %v340, %v1304
    %v1306 = vpop.f32.mrb[0].mxu0
    %v1307 = vpop.f32.mrb[0].mxu0
    %v1308 = vadd.f32 %v340, %v1307
    %v1309 = vpop.f32.mrb[0].mxu0
    %1310 = vmatprep.mubr.bf16.mxu0 0
    %1311 = vmatmul.mubr.bf16.gmra.mrb[0].mxu0 %v869
    %v1312 = vpop.f32.mrb[0].mxu0
    %v1313 = vadd.f32 %v340, %v1312
    %v1314 = vpop.f32.mrb[0].mxu0
    %v1315 = vpop.f32.mrb[0].mxu0
    %v1316 = vadd.f32 %v340, %v1315
    %v1317 = vpop.f32.mrb[0].mxu0
    %1318 = vmatprep.mubr.bf16.mxu0 0
    %1319 = vmatmul.mubr.bf16.gmra.mrb[0].mxu0 %v870
    %v1320 = vpop.f32.mrb[0].mxu0
    %v1321 = vadd.f32 %v340, %v1320
    %v1322 = vpop.f32.mrb[0].mxu0
    %v1323 = vpop.f32.mrb[0].mxu0
    %v1324 = vadd.f32 %v340, %v1323
    %v1325 = vpop.f32.mrb[0].mxu0
    %1326 = vmatprep.mubr.bf16.mxu0 0
    %1327 = vmatmul.mubr.bf16.gmra.mrb[0].mxu0 %v871
    %v1328 = vpop.f32.mrb[0].mxu0
    %v1329 = vadd.f32 %v340, %v1328
    %v1330 = vpop.f32.mrb[0].mxu0
    %v1331 = vpop.f32.mrb[0].mxu0
    %v1332 = vadd.f32 %v340, %v1331
    %v1333 = vpop.f32.mrb[0].mxu0
    %1334 = vmatprep.mubr.bf16.mxu0 0
    %1335 = vmatmul.mubr.bf16.gmra.mrb[0].mxu0 %v872
    %v1336 = vpop.f32.mrb[0].mxu0
    %v1337 = vadd.f32 %v340, %v1336
    %v1338 = vpop.f32.mrb[0].mxu0
    %v1339 = vpop.f32.mrb[0].mxu0
    %v1340 = vadd.f32 %v340, %v1339
    %v1341 = vpop.f32.mrb[0].mxu0
    %1342 = vmatprep.mubr.bf16.mxu0 0
    %1343 = vmatmul.mubr.bf16.gmra.mrb[0].mxu0 %v873
    %v1344 = vpop.f32.mrb[0].mxu0
    %v1345 = vadd.f32 %v340, %v1344
    %v1346 = vpop.f32.mrb[0].mxu0
    %v1347 = vpop.f32.mrb[0].mxu0
    %v1348 = vadd.f32 %v340, %v1347
    %v1349 = vpop.f32.mrb[0].mxu0
    %1350 = vmatprep.mubr.bf16.mxu0 0
    %1351 = vmatmul.mubr.bf16.gmra.mrb[0].mxu0 %v874
    %v1352 = vpop.f32.mrb[0].mxu0
    %v1353 = vadd.f32 %v340, %v1352
    %v1354 = vpop.f32.mrb[0].mxu0
    %v1355 = vpop.f32.mrb[0].mxu0
    %v1356 = vadd.f32 %v340, %v1355
    %v1357 = vpop.f32.mrb[0].mxu0
    %1358 = vmatprep.mubr.bf16.mxu0 0
    %1359 = vmatmul.mubr.bf16.gmra.mrb[0].mxu0 %v875
    %v1360 = vpop.f32.mrb[0].mxu0
    %v1361 = vadd.f32 %v340, %v1360
    %v1362 = vpop.f32.mrb[0].mxu0
    %v1363 = vpop.f32.mrb[0].mxu0
    %v1364 = vadd.f32 %v340, %v1363
    %v1365 = vpop.f32.mrb[0].mxu0
    %1366 = vmatprep.mubr.bf16.mxu0 0
    %1367 = vmatmul.mubr.bf16.gmra.mrb[0].mxu0 %v876
    %v1368 = vpop.f32.mrb[0].mxu0
    %v1369 = vadd.f32 %v340, %v1368
    %v1370 = vpop.f32.mrb[0].mxu0
    %v1371 = vpop.f32.mrb[0].mxu0
    %v1372 = vadd.f32 %v340, %v1371
    %v1373 = vpop.f32.mrb[0].mxu0
    %1374 = vmatprep.mubr.bf16.mxu0 0
    %1375 = vmatmul.mubr.bf16.gmra.mrb[0].mxu0 %v877
    %v1376 = vpop.f32.mrb[0].mxu0
    %v1377 = vadd.f32 %v340, %v1376
    %v1378 = vpop.f32.mrb[0].mxu0
    %v1379 = vpop.f32.mrb[0].mxu0
    %v1380 = vadd.f32 %v340, %v1379
    %v1381 = vpop.f32.mrb[0].mxu0
    %1382 = vmatprep.mubr.bf16.mxu0 0
    %1383 = vmatmul.mubr.bf16.gmra.mrb[0].mxu0 %v878
    %v1384 = vpop.f32.mrb[0].mxu0
    %v1385 = vadd.f32 %v340, %v1384
    %v1386 = vpop.f32.mrb[0].mxu0
    %v1387 = vpop.f32.mrb[0].mxu0
    %v1388 = vadd.f32 %v340, %v1387
    %v1389 = vpop.f32.mrb[0].mxu0
    %1390 = vmatprep.mubr.bf16.mxu0 0
    %1391 = vmatmul.mubr.bf16.gmra.mrb[0].mxu0 %v879
    %v1392 = vpop.f32.mrb[0].mxu0
    %v1393 = vadd.f32 %v340, %v1392
    %v1394 = vpop.f32.mrb[0].mxu0
    %v1395 = vpop.f32.mrb[0].mxu0
    %v1396 = vadd.f32 %v340, %v1395
    %v1397 = vpop.f32.mrb[0].mxu0
    %1398 = vmatprep.mubr.bf16.mxu0 0
    %1399 = vmatmul.mubr.bf16.gmra.mrb[0].mxu0 %v880
    %v1400 = vpop.f32.mrb[0].mxu0
    %v1401 = vadd.f32 %v340, %v1400
    %v1402 = vpop.f32.mrb[0].mxu0
    %v1403 = vpop.f32.mrb[0].mxu0
    %v1404 = vadd.f32 %v340, %v1403
    %v1405 = vpop.f32.mrb[0].mxu0
    %1406 = vmatprep.mubr.bf16.mxu0 0
    %1407 = vmatmul.mubr.bf16.gmra.mrb[0].mxu0 %v881
    %v1408 = vpop.f32.mrb[0].mxu0
    %v1409 = vadd.f32 %v340, %v1408
    %v1410 = vpop.f32.mrb[0].mxu0
    %v1411 = vpop.f32.mrb[0].mxu0
    %v1412 = vadd.f32 %v340, %v1411
    %v1413 = vpop.f32.mrb[0].mxu0
    %1414 = vmatprep.mubr.bf16.mxu0 0
    %1415 = vmatmul.mubr.bf16.gmra.mrb[0].mxu0 %v882
    %v1416 = vpop.f32.mrb[0].mxu0
    %v1417 = vadd.f32 %v340, %v1416
    %v1418 = vpop.f32.mrb[0].mxu0
    %v1419 = vpop.f32.mrb[0].mxu0
    %v1420 = vadd.f32 %v340, %v1419
    %v1421 = vpop.f32.mrb[0].mxu0
    %1422 = vmatprep.mubr.bf16.mxu0 0
    %1423 = vmatmul.mubr.bf16.gmra.mrb[0].mxu0 %v883
    %v1424 = vpop.f32.mrb[0].mxu0
    %v1425 = vadd.f32 %v340, %v1424
    %v1426 = vpop.f32.mrb[0].mxu0
    %v1427 = vpop.f32.mrb[0].mxu0
    %v1428 = vadd.f32 %v340, %v1427
    %v1429 = vpop.f32.mrb[0].mxu0
    %1430 = vmatprep.mubr.bf16.mxu0 0
    %1431 = vmatmul.mubr.bf16.gmra.mrb[0].mxu0 %v884
    %v1432 = vpop.f32.mrb[0].mxu0
    %v1433 = vadd.f32 %v340, %v1432
    %v1434 = vpop.f32.mrb[0].mxu0
    %v1435 = vpop.f32.mrb[0].mxu0
    %v1436 = vadd.f32 %v340, %v1435
    %v1437 = vpop.f32.mrb[0].mxu0
    %1438 = vmatprep.mubr.bf16.mxu0 0
    %1439 = vmatmul.mubr.bf16.gmra.mrb[0].mxu0 %v885
    %v1440 = vpop.f32.mrb[0].mxu0
    %v1441 = vadd.f32 %v340, %v1440
    %v1442 = vpop.f32.mrb[0].mxu0
    %v1443 = vpop.f32.mrb[0].mxu0
    %v1444 = vadd.f32 %v340, %v1443
    %v1445 = vpop.f32.mrb[0].mxu0
    %1446 = vmatprep.mubr.bf16.mxu0 0
    %1447 = vmatmul.mubr.bf16.gmra.mrb[0].mxu0 %v886
    %v1448 = vpop.f32.mrb[0].mxu0
    %v1449 = vadd.f32 %v340, %v1448
    %v1450 = vpop.f32.mrb[0].mxu0
    %v1451 = vpop.f32.mrb[0].mxu0
    %v1452 = vadd.f32 %v340, %v1451
    %v1453 = vpop.f32.mrb[0].mxu0
    %1454 = vmatprep.mubr.bf16.mxu0 0
    %1455 = vmatmul.mubr.bf16.gmra.mrb[0].mxu0 %v887
    %v1456 = vpop.f32.mrb[0].mxu0
    %v1457 = vadd.f32 %v340, %v1456
    %v1458 = vpop.f32.mrb[0].mxu0
    %v1459 = vpop.f32.mrb[0].mxu0
    %v1460 = vadd.f32 %v340, %v1459
    %v1461 = vpop.f32.mrb[0].mxu0
    %1462 = vmatprep.mubr.bf16.mxu0 0
    %1463 = vmatmul.mubr.bf16.gmra.mrb[0].mxu0 %v888
    %v1464 = vpop.f32.mrb[0].mxu0
    %v1465 = vadd.f32 %v340, %v1464
    %v1466 = vpop.f32.mrb[0].mxu0
    %v1467 = vpop.f32.mrb[0].mxu0
    %v1468 = vadd.f32 %v340, %v1467
    %v1469 = vpop.f32.mrb[0].mxu0
    %1470 = vmatprep.mubr.bf16.mxu0 0
    %1471 = vmatmul.mubr.bf16.gmra.mrb[0].mxu0 %v889
    %v1472 = vpop.f32.mrb[0].mxu0
    %v1473 = vadd.f32 %v340, %v1472
    %v1474 = vpop.f32.mrb[0].mxu0
    %v1475 = vpop.f32.mrb[0].mxu0
    %v1476 = vadd.f32 %v340, %v1475
    %v1477 = vpop.f32.mrb[0].mxu0
    %1478 = vmatprep.mubr.bf16.mxu0 0
    %1479 = vmatmul.mubr.bf16.gmra.mrb[0].mxu0 %v890
    %v1480 = vpop.f32.mrb[0].mxu0
    %v1481 = vadd.f32 %v340, %v1480
    %v1482 = vpop.f32.mrb[0].mxu0
    %v1483 = vpop.f32.mrb[0].mxu0
    %v1484 = vadd.f32 %v340, %v1483
    %v1485 = vpop.f32.mrb[0].mxu0
    %1486 = vmatprep.mubr.bf16.mxu0 0
    %1487 = vmatmul.mubr.bf16.gmra.mrb[0].mxu0 %v891
    %v1488 = vpop.f32.mrb[0].mxu0
    %v1489 = vadd.f32 %v340, %v1488
    %v1490 = vpop.f32.mrb[0].mxu0
    %v1491 = vpop.f32.mrb[0].mxu0
    %v1492 = vadd.f32 %v340, %v1491
    %v1493 = vpop.f32.mrb[0].mxu0
    %1494 = vmatprep.mubr.bf16.mxu0 0
    %1495 = vmatmul.mubr.bf16.gmra.mrb[0].mxu0 %v892
    %v1496 = vpop.f32.mrb[0].mxu0
    %v1497 = vadd.f32 %v340, %v1496
    %v1498 = vpop.f32.mrb[0].mxu0
    %v1499 = vpop.f32.mrb[0].mxu0
    %v1500 = vadd.f32 %v340, %v1499
    %v1501 = vpop.f32.mrb[0].mxu0
    %1502 = vmatprep.mubr.bf16.mxu0 0
    %1503 = vmatmul.mubr.bf16.gmra.mrb[0].mxu0 %v893
    %v1504 = vpop.f32.mrb[0].mxu0
    %v1505 = vadd.f32 %v340, %v1504
    %v1506 = vpop.f32.mrb[0].mxu0
    %v1507 = vpop.f32.mrb[0].mxu0
    %v1508 = vadd.f32 %v340, %v1507
    %v1509 = vpop.f32.mrb[0].mxu0
    %1510 = vmatprep.mubr.bf16.mxu0 0
    %1511 = vmatmul.mubr.bf16.gmra.mrb[0].mxu0 %v894
    %v1512 = vpop.f32.mrb[0].mxu0
    %v1513 = vadd.f32 %v340, %v1512
    %v1514 = vpop.f32.mrb[0].mxu0
    %v1515 = vpop.f32.mrb[0].mxu0
    %v1516 = vadd.f32 %v340, %v1515
    %v1517 = vpop.f32.mrb[0].mxu0
    %1518 = vmatprep.mubr.bf16.mxu0 0
    %1519 = vmatmul.mubr.bf16.gmra.mrb[0].mxu0 %v895
    %v1520 = vpop.f32.mrb[0].mxu0
    %v1521 = vadd.f32 %v340, %v1520
    %v1522 = vpop.f32.mrb[0].mxu0
    %v1523 = vpop.f32.mrb[0].mxu0
    %v1524 = vadd.f32 %v340, %v1523
    %v1525 = vpop.f32.mrb[0].mxu0
    %1526 = vmatprep.mubr.bf16.mxu0 0
    %1527 = vmatmul.mubr.bf16.gmra.mrb[0].mxu0 %v896
    %v1528 = vpop.f32.mrb[0].mxu0
    %v1529 = vadd.f32 %v340, %v1528
    %v1530 = vpop.f32.mrb[0].mxu0
    %v1531 = vpop.f32.mrb[0].mxu0
    %v1532 = vadd.f32 %v340, %v1531
    %v1533 = vpop.f32.mrb[0].mxu0
    %1534 = vmatprep.mubr.bf16.mxu0 0
    %1535 = vmatmul.mubr.bf16.gmra.mrb[0].mxu0 %v897
    %v1536 = vpop.f32.mrb[0].mxu0
    %v1537 = vadd.f32 %v340, %v1536
    %v1538 = vpop.f32.mrb[0].mxu0
    %v1539 = vpop.f32.mrb[0].mxu0
    %v1540 = vadd.f32 %v340, %v1539
    %v1541 = vpop.f32.mrb[0].mxu0
    %1542 = vmatprep.mubr.bf16.mxu0 0
    %1543 = vmatmul.mubr.bf16.gmra.mrb[0].mxu0 %v898
    %v1544 = vpop.f32.mrb[0].mxu0
    %v1545 = vadd.f32 %v340, %v1544
    %v1546 = vpop.f32.mrb[0].mxu0
    %v1547 = vpop.f32.mrb[0].mxu0
    %v1548 = vadd.f32 %v340, %v1547
    %v1549 = vpop.f32.mrb[0].mxu0
    %1550 = vmatprep.mubr.bf16.mxu0 0
    %1551 = vmatmul.mubr.bf16.gmra.mrb[0].mxu0 %v899
    %v1552 = vpop.f32.mrb[0].mxu0
    %v1553 = vadd.f32 %v340, %v1552
    %v1554 = vpop.f32.mrb[0].mxu0
    %v1555 = vpop.f32.mrb[0].mxu0
    %v1556 = vadd.f32 %v340, %v1555
    %v1557 = vpop.f32.mrb[0].mxu0
    %1558 = vmatprep.mubr.bf16.mxu0 0
    %1559 = vmatmul.mubr.bf16.gmra.mrb[0].mxu0 %v900
    %v1560 = vpop.f32.mrb[0].mxu0
    %v1561 = vadd.f32 %v340, %v1560
    %v1562 = vpop.f32.mrb[0].mxu0
    %v1563 = vpop.f32.mrb[0].mxu0
    %v1564 = vadd.f32 %v340, %v1563
    %v1565 = vpop.f32.mrb[0].mxu0
    %1566 = vmatprep.mubr.bf16.mxu0 0
    %1567 = vmatmul.mubr.bf16.gmra.mrb[0].mxu0 %v901
    %v1568 = vpop.f32.mrb[0].mxu0
    %v1569 = vadd.f32 %v340, %v1568
    %v1570 = vpop.f32.mrb[0].mxu0
    %v1571 = vpop.f32.mrb[0].mxu0
    %v1572 = vadd.f32 %v340, %v1571
    %v1573 = vpop.f32.mrb[0].mxu0
    %1574 = vmatprep.mubr.bf16.mxu0 0
    %1575 = vmatmul.mubr.bf16.gmra.mrb[0].mxu0 %v902
    %v1576 = vpop.f32.mrb[0].mxu0
    %v1577 = vadd.f32 %v340, %v1576
    %v1578 = vpop.f32.mrb[0].mxu0
    %v1579 = vpop.f32.mrb[0].mxu0
    %v1580 = vadd.f32 %v340, %v1579
    %v1581 = vpop.f32.mrb[0].mxu0
    %1582 = vmatprep.mubr.bf16.mxu0 0
    %1583 = vmatmul.mubr.bf16.gmra.mrb[0].mxu0 %v903
    %v1584 = vpop.f32.mrb[0].mxu0
    %v1585 = vadd.f32 %v340, %v1584
    %v1586 = vpop.f32.mrb[0].mxu0
    %v1587 = vpop.f32.mrb[0].mxu0
    %v1588 = vadd.f32 %v340, %v1587
    %v1589 = vpop.f32.mrb[0].mxu0
    %1590 = vmatprep.mubr.bf16.mxu0 0
    %1591 = vmatmul.mubr.bf16.gmra.mrb[0].mxu0 %v904
    %v1592 = vpop.f32.mrb[0].mxu0
    %v1593 = vadd.f32 %v340, %v1592
    %v1594 = vpop.f32.mrb[0].mxu0
    %v1595 = vpop.f32.mrb[0].mxu0
    %v1596 = vadd.f32 %v340, %v1595
    %v1597 = vpop.f32.mrb[0].mxu0
    %1598 = vmatprep.mubr.bf16.mxu0 0
    %1599 = vmatmul.mubr.bf16.gmra.mrb[0].mxu0 %v905
    %v1600 = vpop.f32.mrb[0].mxu0
    %v1601 = vadd.f32 %v340, %v1600
    %v1602 = vpop.f32.mrb[0].mxu0
    %v1603 = vpop.f32.mrb[0].mxu0
    %v1604 = vadd.f32 %v340, %v1603
    %v1605 = vpop.f32.mrb[0].mxu0
    %1606 = vmatprep.mubr.bf16.mxu0 0
    %1607 = vmatmul.mubr.bf16.gmra.mrb[0].mxu0 %v906
    %v1608 = vpop.f32.mrb[0].mxu0
    %v1609 = vadd.f32 %v340, %v1608
    %v1610 = vpop.f32.mrb[0].mxu0
    %v1611 = vpop.f32.mrb[0].mxu0
    %v1612 = vadd.f32 %v340, %v1611
    %v1613 = vpop.f32.mrb[0].mxu0
    %1614 = vmatprep.mubr.bf16.mxu0 0
    %1615 = vmatmul.mubr.bf16.gmra.mrb[0].mxu0 %v907
    %v1616 = vpop.f32.mrb[0].mxu0
    %v1617 = vadd.f32 %v340, %v1616
    %v1618 = vpop.f32.mrb[0].mxu0
    %v1619 = vpop.f32.mrb[0].mxu0
    %v1620 = vadd.f32 %v340, %v1619
    %v1621 = vpop.f32.mrb[0].mxu0
    %1622 = vmatprep.mubr.bf16.mxu0 0
    %1623 = vmatmul.mubr.bf16.gmra.mrb[0].mxu0 %v908
    %v1624 = vpop.f32.mrb[0].mxu0
    %v1625 = vadd.f32 %v340, %v1624
    %v1626 = vpop.f32.mrb[0].mxu0
    %v1627 = vpop.f32.mrb[0].mxu0
    %v1628 = vadd.f32 %v340, %v1627
    %v1629 = vpop.f32.mrb[0].mxu0
    %1630 = vmatprep.mubr.bf16.mxu0 0
    %1631 = vmatmul.mubr.bf16.gmra.mrb[0].mxu0 %v909
    %v1632 = vpop.f32.mrb[0].mxu0
    %v1633 = vadd.f32 %v340, %v1632
    %v1634 = vpop.f32.mrb[0].mxu0
    %v1635 = vpop.f32.mrb[0].mxu0
    %v1636 = vadd.f32 %v340, %v1635
    %v1637 = vpop.f32.mrb[0].mxu0
    %1638 = vmatprep.mubr.bf16.mxu0 0
    %1639 = vmatmul.mubr.bf16.gmra.mrb[0].mxu0 %v910
    %v1640 = vpop.f32.mrb[0].mxu0
    %v1641 = vadd.f32 %v340, %v1640
    %v1642 = vpop.f32.mrb[0].mxu0
    %v1643 = vpop.f32.mrb[0].mxu0
    %v1644 = vadd.f32 %v340, %v1643
    %v1645 = vpop.f32.mrb[0].mxu0
    %1646 = vmatprep.mubr.bf16.mxu0 0
    %1647 = vmatmul.mubr.bf16.gmra.mrb[0].mxu0 %v911
    %v1648 = vpop.f32.mrb[0].mxu0
    %v1649 = vadd.f32 %v340, %v1648
    %v1650 = vpop.f32.mrb[0].mxu0
    %v1651 = vpop.f32.mrb[0].mxu0
    %v1652 = vadd.f32 %v340, %v1651
    %v1653 = vpop.f32.mrb[0].mxu0
    %1654 = vmatprep.mubr.bf16.mxu0 0
    %1655 = vmatmul.mubr.bf16.gmra.mrb[0].mxu0 %v912
    %v1656 = vpop.f32.mrb[0].mxu0
    %v1657 = vadd.f32 %v340, %v1656
    %v1658 = vpop.f32.mrb[0].mxu0
    %v1659 = vpop.f32.mrb[0].mxu0
    %v1660 = vadd.f32 %v340, %v1659
    %v1661 = vpop.f32.mrb[0].mxu0
    %1662 = vmatprep.mubr.bf16.mxu0 0
    %1663 = vmatmul.mubr.bf16.gmra.mrb[0].mxu0 %v913
    %v1664 = vpop.f32.mrb[0].mxu0
    %v1665 = vadd.f32 %v340, %v1664
    %v1666 = vpop.f32.mrb[0].mxu0
    %v1667 = vpop.f32.mrb[0].mxu0
    %v1668 = vadd.f32 %v340, %v1667
    %v1669 = vpop.f32.mrb[0].mxu0
    %1670 = vmatprep.mubr.bf16.mxu0 0
    %1671 = vmatmul.mubr.bf16.gmra.mrb[0].mxu0 %v914
    %v1672 = vpop.f32.mrb[0].mxu0
    %v1673 = vadd.f32 %v340, %v1672
    %v1674 = vpop.f32.mrb[0].mxu0
    %v1675 = vpop.f32.mrb[0].mxu0
    %v1676 = vadd.f32 %v340, %v1675
    %v1677 = vpop.f32.mrb[0].mxu0
    %1678 = vmatprep.mubr.bf16.mxu0 0
    %1679 = vmatmul.mubr.bf16.gmra.mrb[0].mxu0 %v915
    %v1680 = vpop.f32.mrb[0].mxu0
    %v1681 = vadd.f32 %v340, %v1680
    %v1682 = vpop.f32.mrb[0].mxu0
    %v1683 = vpop.f32.mrb[0].mxu0
    %v1684 = vadd.f32 %v340, %v1683
    %v1685 = vpop.f32.mrb[0].mxu0
    %1686 = vmatprep.mubr.bf16.mxu0 0
    %1687 = vmatmul.mubr.bf16.gmra.mrb[0].mxu0 %v916
    %v1688 = vpop.f32.mrb[0].mxu0
    %v1689 = vadd.f32 %v340, %v1688
    %v1690 = vpop.f32.mrb[0].mxu0
    %v1691 = vpop.f32.mrb[0].mxu0
    %v1692 = vadd.f32 %v340, %v1691
    %v1693 = vpop.f32.mrb[0].mxu0
    %1694 = vmatprep.mubr.bf16.mxu0 0
    %1695 = vmatmul.mubr.bf16.gmra.mrb[0].mxu0 %v917
    %v1696 = vpop.f32.mrb[0].mxu0
    %v1697 = vadd.f32 %v340, %v1696
    %v1698 = vpop.f32.mrb[0].mxu0
    %v1699 = vpop.f32.mrb[0].mxu0
    %v1700 = vadd.f32 %v340, %v1699
    %v1701 = vpop.f32.mrb[0].mxu0
    %1702 = vmatprep.mubr.bf16.mxu0 0
    %1703 = vmatmul.mubr.bf16.gmra.mrb[0].mxu0 %v918
    %v1704 = vpop.f32.mrb[0].mxu0
    %v1705 = vadd.f32 %v340, %v1704
    %v1706 = vpop.f32.mrb[0].mxu0
    %v1707 = vpop.f32.mrb[0].mxu0
    %v1708 = vadd.f32 %v340, %v1707
    %v1709 = vpop.f32.mrb[0].mxu0
    %1710 = vmatprep.mubr.bf16.mxu0 0
    %1711 = vmatmul.mubr.bf16.gmra.mrb[0].mxu0 %v919
    %v1712 = vpop.f32.mrb[0].mxu0
    %v1713 = vadd.f32 %v340, %v1712
    %v1714 = vpop.f32.mrb[0].mxu0
    %v1715 = vpop.f32.mrb[0].mxu0
    %v1716 = vadd.f32 %v340, %v1715
    %v1717 = vpop.f32.mrb[0].mxu0
    %1718 = vmatprep.mubr.bf16.mxu0 0
    %1719 = vmatmul.mubr.bf16.gmra.mrb[0].mxu0 %v920
    %v1720 = vpop.f32.mrb[0].mxu0
    %v1721 = vadd.f32 %v340, %v1720
    %v1722 = vpop.f32.mrb[0].mxu0
    %v1723 = vpop.f32.mrb[0].mxu0
    %v1724 = vadd.f32 %v340, %v1723
    %v1725 = vpop.f32.mrb[0].mxu0
    %1726 = vmatprep.mubr.bf16.mxu0 0
    %1727 = vmatmul.mubr.bf16.gmra.mrb[0].mxu0 %v921
    %v1728 = vpop.f32.mrb[0].mxu0
    %v1729 = vadd.f32 %v340, %v1728
    %v1730 = vpop.f32.mrb[0].mxu0
    %v1731 = vpop.f32.mrb[0].mxu0
    %v1732 = vadd.f32 %v340, %v1731
    %v1733 = vpop.f32.mrb[0].mxu0
    %1734 = vmatprep.mubr.bf16.mxu0 0
    %1735 = vmatmul.mubr.bf16.gmra.mrb[0].mxu0 %v922
    %v1736 = vpop.f32.mrb[0].mxu0
    %v1737 = vadd.f32 %v340, %v1736
    %v1738 = vpop.f32.mrb[0].mxu0
    %v1739 = vpop.f32.mrb[0].mxu0
    %v1740 = vadd.f32 %v340, %v1739
    %v1741 = vpop.f32.mrb[0].mxu0
    %1742 = vmatprep.mubr.bf16.mxu0 0
    %1743 = vmatmul.mubr.bf16.gmra.mrb[0].mxu0 %v923
    %v1744 = vpop.f32.mrb[0].mxu0
    %v1745 = vadd.f32 %v340, %v1744
    %v1746 = vpop.f32.mrb[0].mxu0
    %v1747 = vpop.f32.mrb[0].mxu0
    %v1748 = vadd.f32 %v340, %v1747
    %v1749 = vpop.f32.mrb[0].mxu0
    %1750 = vmatprep.mubr.bf16.mxu0 0
    %1751 = vmatmul.mubr.bf16.gmra.mrb[0].mxu0 %v924
    %v1752 = vpop.f32.mrb[0].mxu0
    %v1753 = vadd.f32 %v340, %v1752
    %v1754 = vpop.f32.mrb[0].mxu0
    %v1755 = vpop.f32.mrb[0].mxu0
    %v1756 = vadd.f32 %v340, %v1755
    %v1757 = vpop.f32.mrb[0].mxu0
    %1758 = vmatprep.mubr.bf16.mxu0 0
    %1759 = vmatmul.mubr.bf16.gmra.mrb[0].mxu0 %v925
    %v1760 = vpop.f32.mrb[0].mxu0
    %v1761 = vadd.f32 %v340, %v1760
    %v1762 = vpop.f32.mrb[0].mxu0
    %v1763 = vpop.f32.mrb[0].mxu0
    %v1764 = vadd.f32 %v340, %v1763
    %v1765 = vpop.f32.mrb[0].mxu0
    %1766 = vmatprep.mubr.bf16.mxu0 0
    %1767 = vmatmul.mubr.bf16.gmra.mrb[0].mxu0 %v926
    %v1768 = vpop.f32.mrb[0].mxu0
    %v1769 = vadd.f32 %v340, %v1768
    %v1770 = vpop.f32.mrb[0].mxu0
    %v1771 = vpop.f32.mrb[0].mxu0
    %v1772 = vadd.f32 %v340, %v1771
    %v1773 = vpop.f32.mrb[0].mxu0
    %1774 = vmatprep.mubr.bf16.mxu0 0
    %1775 = vmatmul.mubr.bf16.gmra.mrb[0].mxu0 %v927
    %v1776 = vpop.f32.mrb[0].mxu0
    %v1777 = vadd.f32 %v340, %v1776
    %v1778 = vpop.f32.mrb[0].mxu0
    %v1779 = vpop.f32.mrb[0].mxu0
    %v1780 = vadd.f32 %v340, %v1779
    %v1781 = vpop.f32.mrb[0].mxu0
    %1782 = vmatprep.mubr.bf16.mxu0 0
    %1783 = vmatmul.mubr.bf16.gmra.mrb[0].mxu0 %v928
    %v1784 = vpop.f32.mrb[0].mxu0
    %v1785 = vadd.f32 %v340, %v1784
    %v1786 = vpop.f32.mrb[0].mxu0
    %v1787 = vpop.f32.mrb[0].mxu0
    %v1788 = vadd.f32 %v340, %v1787
    %v1789 = vpop.f32.mrb[0].mxu0
    %1790 = vmatprep.mubr.bf16.mxu0 0
    %1791 = vmatmul.mubr.bf16.gmra.mrb[0].mxu0 %v929
    %v1792 = vpop.f32.mrb[0].mxu0
    %v1793 = vadd.f32 %v340, %v1792
    %v1794 = vpop.f32.mrb[0].mxu0
    %v1795 = vpop.f32.mrb[0].mxu0
    %v1796 = vadd.f32 %v340, %v1795
    %v1797 = vpop.f32.mrb[0].mxu0
    %1798 = vmatprep.mubr.bf16.mxu0 0
    %1799 = vmatmul.mubr.bf16.gmra.mrb[0].mxu0 %v930
    %v1800 = vpop.f32.mrb[0].mxu0
    %v1801 = vadd.f32 %v340, %v1800
    %v1802 = vpop.f32.mrb[0].mxu0
    %v1803 = vpop.f32.mrb[0].mxu0
    %v1804 = vadd.f32 %v340, %v1803
    %v1805 = vpop.f32.mrb[0].mxu0
    %1806 = vmatprep.mubr.bf16.mxu0 0
    %1807 = vmatmul.mubr.bf16.gmra.mrb[0].mxu0 %v931
    %v1808 = vpop.f32.mrb[0].mxu0
    %v1809 = vadd.f32 %v340, %v1808
    %v1810 = vpop.f32.mrb[0].mxu0
    %v1811 = vpop.f32.mrb[0].mxu0
    %v1812 = vadd.f32 %v340, %v1811
    %v1813 = vpop.f32.mrb[0].mxu0
    %1814 = vmatprep.mubr.bf16.mxu0 0
    %1815 = vmatmul.mubr.bf16.gmra.mrb[0].mxu0 %v932
    %v1816 = vpop.f32.mrb[0].mxu0
    %v1817 = vadd.f32 %v340, %v1816
    %v1818 = vpop.f32.mrb[0].mxu0
    %v1819 = vpop.f32.mrb[0].mxu0
    %v1820 = vadd.f32 %v340, %v1819
    %v1821 = vpop.f32.mrb[0].mxu0
    %1822 = vmatprep.mubr.bf16.mxu0 0
    %1823 = vmatmul.mubr.bf16.gmra.mrb[0].mxu0 %v933
    %v1824 = vpop.f32.mrb[0].mxu0
    %v1825 = vadd.f32 %v340, %v1824
    %v1826 = vpop.f32.mrb[0].mxu0
    %v1827 = vpop.f32.mrb[0].mxu0
    %v1828 = vadd.f32 %v340, %v1827
    %v1829 = vpop.f32.mrb[0].mxu0
    %1830 = vmatprep.mubr.bf16.mxu0 0
    %1831 = vmatmul.mubr.bf16.gmra.mrb[0].mxu0 %v934
    %v1832 = vpop.f32.mrb[0].mxu0
    %v1833 = vadd.f32 %v340, %v1832
    %v1834 = vpop.f32.mrb[0].mxu0
    %v1835 = vpop.f32.mrb[0].mxu0
    %v1836 = vadd.f32 %v340, %v1835
    %v1837 = vpop.f32.mrb[0].mxu0
    %1838 = vmatprep.mubr.bf16.mxu0 0
    %1839 = vmatmul.mubr.bf16.gmra.mrb[0].mxu0 %v935
    %v1840 = vpop.f32.mrb[0].mxu0
    %v1841 = vadd.f32 %v340, %v1840
    %v1842 = vpop.f32.mrb[0].mxu0
    %v1843 = vpop.f32.mrb[0].mxu0
    %v1844 = vadd.f32 %v340, %v1843
    %v1845 = vpop.f32.mrb[0].mxu0
    %1846 = vmatprep.mubr.bf16.mxu0 0
    %1847 = vmatmul.mubr.bf16.gmra.mrb[0].mxu0 %v936
    %v1848 = vpop.f32.mrb[0].mxu0
    %v1849 = vadd.f32 %v340, %v1848
    %v1850 = vpop.f32.mrb[0].mxu0
    %v1851 = vpop.f32.mrb[0].mxu0
    %v1852 = vadd.f32 %v340, %v1851
    %v1853 = vpop.f32.mrb[0].mxu0
    %1854 = vmatprep.mubr.bf16.mxu0 0
    %1855 = vmatmul.mubr.bf16.gmra.mrb[0].mxu0 %v937
    %v1856 = vpop.f32.mrb[0].mxu0
    %v1857 = vadd.f32 %v340, %v1856
    %v1858 = vpop.f32.mrb[0].mxu0
    %v1859 = vpop.f32.mrb[0].mxu0
    %v1860 = vadd.f32 %v340, %v1859
    %v1861 = vpop.f32.mrb[0].mxu0
    %1862 = vmatprep.mubr.bf16.mxu0 0
    %1863 = vmatmul.mubr.bf16.gmra.mrb[0].mxu0 %v938
    %v1864 = vpop.f32.mrb[0].mxu0
    %v1865 = vadd.f32 %v340, %v1864
    %v1866 = vpop.f32.mrb[0].mxu0
    %v1867 = vpop.f32.mrb[0].mxu0
    %v1868 = vadd.f32 %v340, %v1867
    %v1869 = vpop.f32.mrb[0].mxu0
    %1870 = vmatprep.mubr.bf16.mxu0 0
    %1871 = vmatmul.mubr.bf16.gmra.mrb[0].mxu0 %v939
    %v1872 = vpop.f32.mrb[0].mxu0
    %v1873 = vadd.f32 %v340, %v1872
    %v1874 = vpop.f32.mrb[0].mxu0
    %v1875 = vpop.f32.mrb[0].mxu0
    %v1876 = vadd.f32 %v340, %v1875
    %v1877 = vpop.f32.mrb[0].mxu0
    %1878 = vmatprep.mubr.bf16.mxu0 0
    %1879 = vmatmul.mubr.bf16.gmra.mrb[0].mxu0 %v940
    %v1880 = vpop.f32.mrb[0].mxu0
    %v1881 = vadd.f32 %v340, %v1880
    %v1882 = vpop.f32.mrb[0].mxu0
    %v1883 = vpop.f32.mrb[0].mxu0
    %v1884 = vadd.f32 %v340, %v1883
    %v1885 = vpop.f32.mrb[0].mxu0
    %1886 = vmatprep.mubr.bf16.mxu0 0
    %1887 = vmatmul.mubr.bf16.gmra.mrb[0].mxu0 %v941
    %v1888 = vpop.f32.mrb[0].mxu0
    %v1889 = vadd.f32 %v340, %v1888
    %v1890 = vpop.f32.mrb[0].mxu0
    %v1891 = vpop.f32.mrb[0].mxu0
    %v1892 = vadd.f32 %v340, %v1891
    %v1893 = vpop.f32.mrb[0].mxu0
    %1894 = vmatprep.mubr.bf16.mxu0 0
    %1895 = vmatmul.mubr.bf16.gmra.mrb[0].mxu0 %v942
    %v1896 = vpop.f32.mrb[0].mxu0
    %v1897 = vadd.f32 %v340, %v1896
    %v1898 = vpop.f32.mrb[0].mxu0
    %v1899 = vpop.f32.mrb[0].mxu0
    %v1900 = vadd.f32 %v340, %v1899
    %v1901 = vpop.f32.mrb[0].mxu0
    %1902 = vmatprep.mubr.bf16.mxu0 0
    %1903 = vmatmul.mubr.bf16.gmra.mrb[0].mxu0 %v943
    %v1904 = vpop.f32.mrb[0].mxu0
    %v1905 = vadd.f32 %v340, %v1904
    %v1906 = vpop.f32.mrb[0].mxu0
    %v1907 = vpop.f32.mrb[0].mxu0
    %v1908 = vadd.f32 %v340, %v1907
    %v1909 = vpop.f32.mrb[0].mxu0
    %1910 = vmatprep.mubr.bf16.mxu0 0
    %1911 = vmatmul.mubr.bf16.gmra.mrb[0].mxu0 %v944
    %v1912 = vpop.f32.mrb[0].mxu0
    %v1913 = vadd.f32 %v340, %v1912
    %v1914 = vpop.f32.mrb[0].mxu0
    %v1915 = vpop.f32.mrb[0].mxu0
    %v1916 = vadd.f32 %v340, %v1915
    %v1917 = vpop.f32.mrb[0].mxu0
    %1918 = vmatprep.mubr.bf16.mxu0 0
    %1919 = vmatmul.mubr.bf16.gmra.mrb[0].mxu0 %v945
    %v1920 = vpop.f32.mrb[0].mxu0
    %v1921 = vadd.f32 %v340, %v1920
    %v1922 = vpop.f32.mrb[0].mxu0
    %v1923 = vpop.f32.mrb[0].mxu0
    %v1924 = vadd.f32 %v340, %v1923
    %v1925 = vpop.f32.mrb[0].mxu0
    %1926 = vmatprep.mubr.bf16.mxu0 0
    %1927 = vmatmul.mubr.bf16.gmra.mrb[0].mxu0 %v946
    %v1928 = vpop.f32.mrb[0].mxu0
    %v1929 = vadd.f32 %v340, %v1928
    %v1930 = vpop.f32.mrb[0].mxu0
    %v1931 = vpop.f32.mrb[0].mxu0
    %v1932 = vadd.f32 %v340, %v1931
    %v1933 = vpop.f32.mrb[0].mxu0
    %1934 = vmatprep.mubr.bf16.mxu0 0
    %1935 = vmatmul.mubr.bf16.gmra.mrb[0].mxu0 %v947
    %v1936 = vpop.f32.mrb[0].mxu0
    %v1937 = vadd.f32 %v340, %v1936
    %v1938 = vpop.f32.mrb[0].mxu0
    %v1939 = vpop.f32.mrb[0].mxu0
    %v1940 = vadd.f32 %v340, %v1939
    %v1941 = vpop.f32.mrb[0].mxu0
    %1942 = vmatprep.mubr.bf16.mxu0 0
    %1943 = vmatmul.mubr.bf16.gmra.mrb[0].mxu0 %v948
    %v1944 = vpop.f32.mrb[0].mxu0
    %v1945 = vadd.f32 %v340, %v1944
    %v1946 = vpop.f32.mrb[0].mxu0
    %v1947 = vpop.f32.mrb[0].mxu0
    %v1948 = vadd.f32 %v340, %v1947
    %v1949 = vpop.f32.mrb[0].mxu0
    %1950 = vmatprep.mubr.bf16.mxu0 0
    %1951 = vmatmul.mubr.bf16.gmra.mrb[0].mxu0 %v949
    %v1952 = vpop.f32.mrb[0].mxu0
    %v1953 = vadd.f32 %v340, %v1952
    %v1954 = vpop.f32.mrb[0].mxu0
    %v1955 = vpop.f32.mrb[0].mxu0
    %v1956 = vadd.f32 %v340, %v1955
    %v1957 = vpop.f32.mrb[0].mxu0
    %1958 = vmatprep.mubr.bf16.mxu0 0
    %1959 = vmatmul.mubr.bf16.gmra.mrb[0].mxu0 %v950
    %v1960 = vpop.f32.mrb[0].mxu0
    %v1961 = vadd.f32 %v340, %v1960
    %v1962 = vpop.f32.mrb[0].mxu0
    %v1963 = vpop.f32.mrb[0].mxu0
    %v1964 = vadd.f32 %v340, %v1963
    %v1965 = vpop.f32.mrb[0].mxu0
    %1966 = vmatprep.mubr.bf16.mxu0 0
    %1967 = vmatmul.mubr.bf16.gmra.mrb[0].mxu0 %v951
    %v1968 = vpop.f32.mrb[0].mxu0
    %v1969 = vadd.f32 %v340, %v1968
    %v1970 = vpop.f32.mrb[0].mxu0
    %v1971 = vpop.f32.mrb[0].mxu0
    %v1972 = vadd.f32 %v340, %v1971
    %v1973 = vpop.f32.mrb[0].mxu0
    %1974 = vmatprep.mubr.bf16.mxu0 0
    %1975 = vmatmul.mubr.bf16.gmra.mrb[0].mxu0 %v952
    %v1976 = vpop.f32.mrb[0].mxu0
    %v1977 = vadd.f32 %v340, %v1976
    %v1978 = vpop.f32.mrb[0].mxu0
    %v1979 = vpop.f32.mrb[0].mxu0
    %v1980 = vadd.f32 %v340, %v1979
    %v1981 = vpop.f32.mrb[0].mxu0
    %1982 = vmatprep.mubr.bf16.mxu0 0
    %1983 = vmatmul.mubr.bf16.gmra.mrb[0].mxu0 %v953
    %v1984 = vpop.f32.mrb[0].mxu0
    %v1985 = vadd.f32 %v340, %v1984
    %v1986 = vpop.f32.mrb[0].mxu0
    %v1987 = vpop.f32.mrb[0].mxu0
    %v1988 = vadd.f32 %v340, %v1987
    %v1989 = vpop.f32.mrb[0].mxu0
    %1990 = vmatprep.mubr.bf16.mxu0 0
    %1991 = vmatmul.mubr.bf16.gmra.mrb[0].mxu0 %v954
    %v1992 = vpop.f32.mrb[0].mxu0
    %v1993 = vadd.f32 %v340, %v1992
    %v1994 = vpop.f32.mrb[0].mxu0
    %v1995 = vpop.f32.mrb[0].mxu0
    %v1996 = vadd.f32 %v340, %v1995
    %v1997 = vpop.f32.mrb[0].mxu0
    %1998 = vmatprep.mubr.bf16.mxu0 0
    %1999 = vmatmul.mubr.bf16.gmra.mrb[0].mxu0 %v955
    %v2000 = vpop.f32.mrb[0].mxu0
    %v2001 = vadd.f32 %v340, %v2000
    %v2002 = vpop.f32.mrb[0].mxu0
    %v2003 = vpop.f32.mrb[0].mxu0
    %v2004 = vadd.f32 %v340, %v2003
    %v2005 = vpop.f32.mrb[0].mxu0
    %2006 = vmatprep.mubr.bf16.mxu0 0
    %2007 = vmatmul.mubr.bf16.gmra.mrb[0].mxu0 %v956
    %v2008 = vpop.f32.mrb[0].mxu0
    %v2009 = vadd.f32 %v340, %v2008
    %v2010 = vpop.f32.mrb[0].mxu0
    %v2011 = vpop.f32.mrb[0].mxu0
    %v2012 = vadd.f32 %v340, %v2011
    %v2013 = vpop.f32.mrb[0].mxu0
    %2014 = vmatprep.mubr.bf16.mxu0 0
    %2015 = vmatmul.mubr.bf16.gmra.mrb[0].mxu0 %v957
    %v2016 = vpop.f32.mrb[0].mxu0
    %v2017 = vadd.f32 %v340, %v2016
    %v2018 = vpop.f32.mrb[0].mxu0
    %v2019 = vpop.f32.mrb[0].mxu0
    %v2020 = vadd.f32 %v340, %v2019
    %v2021 = vpop.f32.mrb[0].mxu0
    %2022 = vmatprep.mubr.bf16.mxu0 0
    %2023 = vmatmul.mubr.bf16.gmra.mrb[0].mxu0 %v958
    %v2024 = vpop.f32.mrb[0].mxu0
    %v2025 = vadd.f32 %v340, %v2024
    %v2026 = vpop.f32.mrb[0].mxu0
    %v2027 = vpop.f32.mrb[0].mxu0
    %v2028 = vadd.f32 %v340, %v2027
    %v2029 = vpop.f32.mrb[0].mxu0
    %2030 = vmatprep.mubr.bf16.mxu0 0
    %2031 = vmatmul.mubr.bf16.gmra.mrb[0].mxu0 %v959
    %v2032 = vpop.f32.mrb[0].mxu0
    %v2033 = vadd.f32 %v340, %v2032
    %v2034 = vpop.f32.mrb[0].mxu0
    %v2035 = vpop.f32.mrb[0].mxu0
    %v2036 = vadd.f32 %v340, %v2035
    %v2037 = vpop.f32.mrb[0].mxu0
    %2038 = vmatprep.mubr.bf16.mxu0 0
    %2039 = vmatmul.mubr.bf16.gmra.mrb[0].mxu0 %v960
    %v2040 = vpop.f32.mrb[0].mxu0
    %v2041 = vadd.f32 %v340, %v2040
    %v2042 = vpop.f32.mrb[0].mxu0
    %v2043 = vpop.f32.mrb[0].mxu0
    %v2044 = vadd.f32 %v340, %v2043
    %v2045 = vpop.f32.mrb[0].mxu0
    %2046 = vmatprep.mubr.bf16.mxu0 0
    %2047 = vmatmul.mubr.bf16.gmra.mrb[0].mxu0 %v961
    %v2048 = vpop.f32.mrb[0].mxu0
    %v2049 = vadd.f32 %v340, %v2048
    %v2050 = vpop.f32.mrb[0].mxu0
    %v2051 = vpop.f32.mrb[0].mxu0
    %v2052 = vadd.f32 %v340, %v2051
    %v2053 = vpop.f32.mrb[0].mxu0
    %2054 = vmatprep.mubr.bf16.mxu0 0
    %2055 = vmatmul.mubr.bf16.gmra.mrb[0].mxu0 %v962
    %v2056 = vpop.f32.mrb[0].mxu0
    %v2057 = vadd.f32 %v340, %v2056
    %v2058 = vpop.f32.mrb[0].mxu0
    %v2059 = vpop.f32.mrb[0].mxu0
    %v2060 = vadd.f32 %v340, %v2059
    %v2061 = vpop.f32.mrb[0].mxu0
    %2062 = vmatprep.mubr.bf16.mxu0 0
    %2063 = vmatmul.mubr.bf16.gmra.mrb[0].mxu0 %v963
    %v2064 = vpop.f32.mrb[0].mxu0
    %v2065 = vadd.f32 %v340, %v2064
    %v2066 = vpop.f32.mrb[0].mxu0
    %v2067 = vpop.f32.mrb[0].mxu0
    %v2068 = vadd.f32 %v340, %v2067
    %v2069 = vpop.f32.mrb[0].mxu0
    %2070 = vmatprep.mubr.bf16.mxu0 0
    %2071 = vmatmul.mubr.bf16.gmra.mrb[0].mxu0 %v964
    %v2072 = vpop.f32.mrb[0].mxu0
    %v2073 = vadd.f32 %v340, %v2072
    %v2074 = vpop.f32.mrb[0].mxu0
    %v2075 = vpop.f32.mrb[0].mxu0
    %v2076 = vadd.f32 %v340, %v2075
    %v2077 = vpop.f32.mrb[0].mxu0
    %2078 = vmatprep.mubr.bf16.mxu0 0
    %2079 = vmatmul.mubr.bf16.gmra.mrb[0].mxu0 %v965
    %v2080 = vpop.f32.mrb[0].mxu0
    %v2081 = vadd.f32 %v340, %v2080
    %v2082 = vpop.f32.mrb[0].mxu0
    %v2083 = vpop.f32.mrb[0].mxu0
    %v2084 = vadd.f32 %v340, %v2083
    %v2085 = vpop.f32.mrb[0].mxu0
    %2086 = vmatprep.mubr.bf16.mxu0 0
    %2087 = vmatmul.mubr.bf16.gmra.mrb[0].mxu0 %v966
    %v2088 = vpop.f32.mrb[0].mxu0
    %v2089 = vadd.f32 %v340, %v2088
    %v2090 = vpop.f32.mrb[0].mxu0
    %v2091 = vpop.f32.mrb[0].mxu0
    %v2092 = vadd.f32 %v340, %v2091
    %v2093 = vpop.f32.mrb[0].mxu0
    %2094 = vmatprep.mubr.bf16.mxu0 0
    %2095 = vmatmul.mubr.bf16.gmra.mrb[0].mxu0 %v967
    %v2096 = vpop.f32.mrb[0].mxu0
    %v2097 = vadd.f32 %v340, %v2096
    %v2098 = vpop.f32.mrb[0].mxu0
    %v2099 = vpop.f32.mrb[0].mxu0
    %v2100 = vadd.f32 %v340, %v2099
    %v2101 = vpop.f32.mrb[0].mxu0
    %2102 = vmatprep.mubr.bf16.mxu0 0
    %2103 = vmatmul.mubr.bf16.gmra.mrb[0].mxu0 %v968
    %v2104 = vpop.f32.mrb[0].mxu0
    %v2105 = vadd.f32 %v340, %v2104
    %v2106 = vpop.f32.mrb[0].mxu0
    %v2107 = vpop.f32.mrb[0].mxu0
    %v2108 = vadd.f32 %v340, %v2107
    %v2109 = vpop.f32.mrb[0].mxu0
    %2110 = vmatprep.mubr.bf16.mxu0 0
    %2111 = vmatmul.mubr.bf16.gmra.mrb[0].mxu0 %v969
    %v2112 = vpop.f32.mrb[0].mxu0
    %v2113 = vadd.f32 %v340, %v2112
    %v2114 = vpop.f32.mrb[0].mxu0
    %v2115 = vpop.f32.mrb[0].mxu0
    %v2116 = vadd.f32 %v340, %v2115
    %v2117 = vpop.f32.mrb[0].mxu0
    %2118 = vmatprep.mubr.bf16.mxu0 0
    %2119 = vmatmul.mubr.bf16.gmra.mrb[0].mxu0 %v970
    %v2120 = vpop.f32.mrb[0].mxu0
    %v2121 = vadd.f32 %v340, %v2120
    %v2122 = vpop.f32.mrb[0].mxu0
    %v2123 = vpop.f32.mrb[0].mxu0
    %v2124 = vadd.f32 %v340, %v2123
    %v2125 = vpop.f32.mrb[0].mxu0
    %2126 = vmatprep.mubr.bf16.mxu0 0
    %2127 = vmatmul.mubr.bf16.gmra.mrb[0].mxu0 %v971
    %v2128 = vpop.f32.mrb[0].mxu0
    %v2129 = vadd.f32 %v340, %v2128
    %v2130 = vpop.f32.mrb[0].mxu0
    %v2131 = vpop.f32.mrb[0].mxu0
    %v2132 = vadd.f32 %v340, %v2131
    %v2133 = vpop.f32.mrb[0].mxu0
    %2134 = vmatprep.mubr.bf16.mxu0 0
    %2135 = vmatmul.mubr.bf16.gmra.mrb[0].mxu0 %v972
    %v2136 = vpop.f32.mrb[0].mxu0
    %v2137 = vadd.f32 %v340, %v2136
    %v2138 = vpop.f32.mrb[0].mxu0
    %v2139 = vpop.f32.mrb[0].mxu0
    %v2140 = vadd.f32 %v340, %v2139
    %v2141 = vpop.f32.mrb[0].mxu0
    %2142 = vmatprep.mubr.bf16.mxu0 0
    %2143 = vmatmul.mubr.bf16.gmra.mrb[0].mxu0 %v973
    %v2144 = vpop.f32.mrb[0].mxu0
    %v2145 = vadd.f32 %v340, %v2144
    %v2146 = vpop.f32.mrb[0].mxu0
    %v2147 = vpop.f32.mrb[0].mxu0
    %v2148 = vadd.f32 %v340, %v2147
    %v2149 = vpop.f32.mrb[0].mxu0
    %2150 = vmatprep.mubr.bf16.mxu0 0
    %2151 = vmatmul.mubr.bf16.gmra.mrb[0].mxu0 %v974
    %v2152 = vpop.f32.mrb[0].mxu0
    %v2153 = vadd.f32 %v340, %v2152
    %v2154 = vpop.f32.mrb[0].mxu0
    %v2155 = vpop.f32.mrb[0].mxu0
    %v2156 = vadd.f32 %v340, %v2155
    %v2157 = vpop.f32.mrb[0].mxu0
    %2158 = vmatprep.mubr.bf16.mxu0 0
    %2159 = vmatmul.mubr.bf16.gmra.mrb[0].mxu0 %v975
    %v2160 = vpop.f32.mrb[0].mxu0
    %v2161 = vadd.f32 %v340, %v2160
    %v2162 = vpop.f32.mrb[0].mxu0
    %v2163 = vpop.f32.mrb[0].mxu0
    %v2164 = vadd.f32 %v340, %v2163
    %v2165 = vpop.f32.mrb[0].mxu0
    %2166 = vmatprep.mubr.bf16.mxu0 0
    %2167 = vmatmul.mubr.bf16.gmra.mrb[0].mxu0 %v976
    %v2168 = vpop.f32.mrb[0].mxu0
    %v2169 = vadd.f32 %v340, %v2168
    %v2170 = vpop.f32.mrb[0].mxu0
    %v2171 = vpop.f32.mrb[0].mxu0
    %v2172 = vadd.f32 %v340, %v2171
    %v2173 = vpop.f32.mrb[0].mxu0
    %2174 = vmatprep.mubr.bf16.mxu0 0
    %2175 = vmatmul.mubr.bf16.gmra.mrb[0].mxu0 %v977
    %v2176 = vpop.f32.mrb[0].mxu0
    %v2177 = vadd.f32 %v340, %v2176
    %v2178 = vpop.f32.mrb[0].mxu0
    %v2179 = vpop.f32.mrb[0].mxu0
    %v2180 = vadd.f32 %v340, %v2179
    %v2181 = vpop.f32.mrb[0].mxu0
    %2182 = vmatprep.mubr.bf16.mxu0 0
    %2183 = vmatmul.mubr.bf16.gmra.mrb[0].mxu0 %v978
    %v2184 = vpop.f32.mrb[0].mxu0
    %v2185 = vadd.f32 %v340, %v2184
    %v2186 = vpop.f32.mrb[0].mxu0
    %v2187 = vpop.f32.mrb[0].mxu0
    %v2188 = vadd.f32 %v340, %v2187
    %v2189 = vpop.f32.mrb[0].mxu0
    %2190 = vmatprep.mubr.bf16.mxu0 0
    %2191 = vmatmul.mubr.bf16.gmra.mrb[0].mxu0 %v979
    %v2192 = vpop.f32.mrb[0].mxu0
    %v2193 = vadd.f32 %v340, %v2192
    %v2194 = vpop.f32.mrb[0].mxu0
    %v2195 = vpop.f32.mrb[0].mxu0
    %v2196 = vadd.f32 %v340, %v2195
    %v2197 = vpop.f32.mrb[0].mxu0
    %2198 = vmatprep.mubr.bf16.mxu0 0
    %2199 = vmatmul.mubr.bf16.gmra.mrb[0].mxu0 %v980
    %v2200 = vpop.f32.mrb[0].mxu0
    %v2201 = vadd.f32 %v340, %v2200
    %v2202 = vpop.f32.mrb[0].mxu0
    %v2203 = vpop.f32.mrb[0].mxu0
    %v2204 = vadd.f32 %v340, %v2203
    %v2205 = vpop.f32.mrb[0].mxu0
    %2206 = vmatprep.mubr.bf16.mxu0 0
    %2207 = vmatmul.mubr.bf16.gmra.mrb[0].mxu0 %v981
    %v2208 = vpop.f32.mrb[0].mxu0
    %v2209 = vadd.f32 %v340, %v2208
    %v2210 = vpop.f32.mrb[0].mxu0
    %v2211 = vpop.f32.mrb[0].mxu0
    %v2212 = vadd.f32 %v340, %v2211
    %v2213 = vpop.f32.mrb[0].mxu0
    %2214 = vdwg.mxu0
    %v2215 = vmax.f32 %v1193, 0.0
    %v2216 = vmax.f32 %v1196, 0.0
    %v2217 = vmax.f32 %v1201, 0.0
    %v2218 = vmax.f32 %v1204, 0.0
    %v2219 = vmax.f32 %v1209, 0.0
    %v2220 = vmax.f32 %v1212, 0.0
    %v2221 = vmax.f32 %v1217, 0.0
    %v2222 = vmax.f32 %v1220, 0.0
    %v2223 = vmax.f32 %v1225, 0.0
    %v2224 = vmax.f32 %v1228, 0.0
    %v2225 = vmax.f32 %v1233, 0.0
    %v2226 = vmax.f32 %v1236, 0.0
    %v2227 = vmax.f32 %v1241, 0.0
    %v2228 = vmax.f32 %v1244, 0.0
    %v2229 = vmax.f32 %v1249, 0.0
    %v2230 = vmax.f32 %v1252, 0.0
    %v2231 = vmax.f32 %v1257, 0.0
    %v2232 = vmax.f32 %v1260, 0.0
    %v2233 = vmax.f32 %v1265, 0.0
    %v2234 = vmax.f32 %v1268, 0.0
    %v2235 = vmax.f32 %v1273, 0.0
    %v2236 = vmax.f32 %v1276, 0.0
    %v2237 = vmax.f32 %v1281, 0.0
    %v2238 = vmax.f32 %v1284, 0.0
    %v2239 = vmax.f32 %v1289, 0.0
    %v2240 = vmax.f32 %v1292, 0.0
    %v2241 = vmax.f32 %v1297, 0.0
    %v2242 = vmax.f32 %v1300, 0.0
    %v2243 = vmax.f32 %v1305, 0.0
    %v2244 = vmax.f32 %v1308, 0.0
    %v2245 = vmax.f32 %v1313, 0.0
    %v2246 = vmax.f32 %v1316, 0.0
    %v2247 = vmax.f32 %v1321, 0.0
    %v2248 = vmax.f32 %v1324, 0.0
    %v2249 = vmax.f32 %v1329, 0.0
    %v2250 = vmax.f32 %v1332, 0.0
    %v2251 = vmax.f32 %v1337, 0.0
    %v2252 = vmax.f32 %v1340, 0.0
    %v2253 = vmax.f32 %v1345, 0.0
    %v2254 = vmax.f32 %v1348, 0.0
    %v2255 = vmax.f32 %v1353, 0.0
    %v2256 = vmax.f32 %v1356, 0.0
    %v2257 = vmax.f32 %v1361, 0.0
    %v2258 = vmax.f32 %v1364, 0.0
    %v2259 = vmax.f32 %v1369, 0.0
    %v2260 = vmax.f32 %v1372, 0.0
    %v2261 = vmax.f32 %v1377, 0.0
    %v2262 = vmax.f32 %v1380, 0.0
    %v2263 = vmax.f32 %v1385, 0.0
    %v2264 = vmax.f32 %v1388, 0.0
    %v2265 = vmax.f32 %v1393, 0.0
    %v2266 = vmax.f32 %v1396, 0.0
    %v2267 = vmax.f32 %v1401, 0.0
    %v2268 = vmax.f32 %v1404, 0.0
    %v2269 = vmax.f32 %v1409, 0.0
    %v2270 = vmax.f32 %v1412, 0.0
    %v2271 = vmax.f32 %v1417, 0.0
    %v2272 = vmax.f32 %v1420, 0.0
    %v2273 = vmax.f32 %v1425, 0.0
    %v2274 = vmax.f32 %v1428, 0.0
    %v2275 = vmax.f32 %v1433, 0.0
    %v2276 = vmax.f32 %v1436, 0.0
    %v2277 = vmax.f32 %v1441, 0.0
    %v2278 = vmax.f32 %v1444, 0.0
    %v2279 = vmax.f32 %v1449, 0.0
    %v2280 = vmax.f32 %v1452, 0.0
    %v2281 = vmax.f32 %v1457, 0.0
    %v2282 = vmax.f32 %v1460, 0.0
    %v2283 = vmax.f32 %v1465, 0.0
    %v2284 = vmax.f32 %v1468, 0.0
    %v2285 = vmax.f32 %v1473, 0.0
    %v2286 = vmax.f32 %v1476, 0.0
    %v2287 = vmax.f32 %v1481, 0.0
    %v2288 = vmax.f32 %v1484, 0.0
    %v2289 = vmax.f32 %v1489, 0.0
    %v2290 = vmax.f32 %v1492, 0.0
    %v2291 = vmax.f32 %v1497, 0.0
    %v2292 = vmax.f32 %v1500, 0.0
    %v2293 = vmax.f32 %v1505, 0.0
    %v2294 = vmax.f32 %v1508, 0.0
    %v2295 = vmax.f32 %v1513, 0.0
    %v2296 = vmax.f32 %v1516, 0.0
    %v2297 = vmax.f32 %v1521, 0.0
    %v2298 = vmax.f32 %v1524, 0.0
    %v2299 = vmax.f32 %v1529, 0.0
    %v2300 = vmax.f32 %v1532, 0.0
    %v2301 = vmax.f32 %v1537, 0.0
    %v2302 = vmax.f32 %v1540, 0.0
    %v2303 = vmax.f32 %v1545, 0.0
    %v2304 = vmax.f32 %v1548, 0.0
    %v2305 = vmax.f32 %v1553, 0.0
    %v2306 = vmax.f32 %v1556, 0.0
    %v2307 = vmax.f32 %v1561, 0.0
    %v2308 = vmax.f32 %v1564, 0.0
    %v2309 = vmax.f32 %v1569, 0.0
    %v2310 = vmax.f32 %v1572, 0.0
    %v2311 = vmax.f32 %v1577, 0.0
    %v2312 = vmax.f32 %v1580, 0.0
    %v2313 = vmax.f32 %v1585, 0.0
    %v2314 = vmax.f32 %v1588, 0.0
    %v2315 = vmax.f32 %v1593, 0.0
    %v2316 = vmax.f32 %v1596, 0.0
    %v2317 = vmax.f32 %v1601, 0.0
    %v2318 = vmax.f32 %v1604, 0.0
    %v2319 = vmax.f32 %v1609, 0.0
    %v2320 = vmax.f32 %v1612, 0.0
    %v2321 = vmax.f32 %v1617, 0.0
    %v2322 = vmax.f32 %v1620, 0.0
    %v2323 = vmax.f32 %v1625, 0.0
    %v2324 = vmax.f32 %v1628, 0.0
    %v2325 = vmax.f32 %v1633, 0.0
    %v2326 = vmax.f32 %v1636, 0.0
    %v2327 = vmax.f32 %v1641, 0.0
    %v2328 = vmax.f32 %v1644, 0.0
    %v2329 = vmax.f32 %v1649, 0.0
    %v2330 = vmax.f32 %v1652, 0.0
    %v2331 = vmax.f32 %v1657, 0.0
    %v2332 = vmax.f32 %v1660, 0.0
    %v2333 = vmax.f32 %v1665, 0.0
    %v2334 = vmax.f32 %v1668, 0.0
    %v2335 = vmax.f32 %v1673, 0.0
    %v2336 = vmax.f32 %v1676, 0.0
    %v2337 = vmax.f32 %v1681, 0.0
    %v2338 = vmax.f32 %v1684, 0.0
    %v2339 = vmax.f32 %v1689, 0.0
    %v2340 = vmax.f32 %v1692, 0.0
    %v2341 = vmax.f32 %v1697, 0.0
    %v2342 = vmax.f32 %v1700, 0.0
    %v2343 = vmax.f32 %v1705, 0.0
    %v2344 = vmax.f32 %v1708, 0.0
    %v2345 = vmax.f32 %v1713, 0.0
    %v2346 = vmax.f32 %v1716, 0.0
    %v2347 = vmax.f32 %v1721, 0.0
    %v2348 = vmax.f32 %v1724, 0.0
    %v2349 = vmax.f32 %v1729, 0.0
    %v2350 = vmax.f32 %v1732, 0.0
    %v2351 = vmax.f32 %v1737, 0.0
    %v2352 = vmax.f32 %v1740, 0.0
    %v2353 = vmax.f32 %v1745, 0.0
    %v2354 = vmax.f32 %v1748, 0.0
    %v2355 = vmax.f32 %v1753, 0.0
    %v2356 = vmax.f32 %v1756, 0.0
    %v2357 = vmax.f32 %v1761, 0.0
    %v2358 = vmax.f32 %v1764, 0.0
    %v2359 = vmax.f32 %v1769, 0.0
    %v2360 = vmax.f32 %v1772, 0.0
    %v2361 = vmax.f32 %v1777, 0.0
    %v2362 = vmax.f32 %v1780, 0.0
    %v2363 = vmax.f32 %v1785, 0.0
    %v2364 = vmax.f32 %v1788, 0.0
    %v2365 = vmax.f32 %v1793, 0.0
    %v2366 = vmax.f32 %v1796, 0.0
    %v2367 = vmax.f32 %v1801, 0.0
    %v2368 = vmax.f32 %v1804, 0.0
    %v2369 = vmax.f32 %v1809, 0.0
    %v2370 = vmax.f32 %v1812, 0.0
    %v2371 = vmax.f32 %v1817, 0.0
    %v2372 = vmax.f32 %v1820, 0.0
    %v2373 = vmax.f32 %v1825, 0.0
    %v2374 = vmax.f32 %v1828, 0.0
    %v2375 = vmax.f32 %v1833, 0.0
    %v2376 = vmax.f32 %v1836, 0.0
    %v2377 = vmax.f32 %v1841, 0.0
    %v2378 = vmax.f32 %v1844, 0.0
    %v2379 = vmax.f32 %v1849, 0.0
    %v2380 = vmax.f32 %v1852, 0.0
    %v2381 = vmax.f32 %v1857, 0.0
    %v2382 = vmax.f32 %v1860, 0.0
    %v2383 = vmax.f32 %v1865, 0.0
    %v2384 = vmax.f32 %v1868, 0.0
    %v2385 = vmax.f32 %v1873, 0.0
    %v2386 = vmax.f32 %v1876, 0.0
    %v2387 = vmax.f32 %v1881, 0.0
    %v2388 = vmax.f32 %v1884, 0.0
    %v2389 = vmax.f32 %v1889, 0.0
    %v2390 = vmax.f32 %v1892, 0.0
    %v2391 = vmax.f32 %v1897, 0.0
    %v2392 = vmax.f32 %v1900, 0.0
    %v2393 = vmax.f32 %v1905, 0.0
    %v2394 = vmax.f32 %v1908, 0.0
    %v2395 = vmax.f32 %v1913, 0.0
    %v2396 = vmax.f32 %v1916, 0.0
    %v2397 = vmax.f32 %v1921, 0.0
    %v2398 = vmax.f32 %v1924, 0.0
    %v2399 = vmax.f32 %v1929, 0.0
    %v2400 = vmax.f32 %v1932, 0.0
    %v2401 = vmax.f32 %v1937, 0.0
    %v2402 = vmax.f32 %v1940, 0.0
    %v2403 = vmax.f32 %v1945, 0.0
    %v2404 = vmax.f32 %v1948, 0.0
    %v2405 = vmax.f32 %v1953, 0.0
    %v2406 = vmax.f32 %v1956, 0.0
    %v2407 = vmax.f32 %v1961, 0.0
    %v2408 = vmax.f32 %v1964, 0.0
    %v2409 = vmax.f32 %v1969, 0.0
    %v2410 = vmax.f32 %v1972, 0.0
    %v2411 = vmax.f32 %v1977, 0.0
    %v2412 = vmax.f32 %v1980, 0.0
    %v2413 = vmax.f32 %v1985, 0.0
    %v2414 = vmax.f32 %v1988, 0.0
    %v2415 = vmax.f32 %v1993, 0.0
    %v2416 = vmax.f32 %v1996, 0.0
    %v2417 = vmax.f32 %v2001, 0.0
    %v2418 = vmax.f32 %v2004, 0.0
    %v2419 = vmax.f32 %v2009, 0.0
    %v2420 = vmax.f32 %v2012, 0.0
    %v2421 = vmax.f32 %v2017, 0.0
    %v2422 = vmax.f32 %v2020, 0.0
    %v2423 = vmax.f32 %v2025, 0.0
    %v2424 = vmax.f32 %v2028, 0.0
    %v2425 = vmax.f32 %v2033, 0.0
    %v2426 = vmax.f32 %v2036, 0.0
    %v2427 = vmax.f32 %v2041, 0.0
    %v2428 = vmax.f32 %v2044, 0.0
    %v2429 = vmax.f32 %v2049, 0.0
    %v2430 = vmax.f32 %v2052, 0.0
    %v2431 = vmax.f32 %v2057, 0.0
    %v2432 = vmax.f32 %v2060, 0.0
    %v2433 = vmax.f32 %v2065, 0.0
    %v2434 = vmax.f32 %v2068, 0.0
    %v2435 = vmax.f32 %v2073, 0.0
    %v2436 = vmax.f32 %v2076, 0.0
    %v2437 = vmax.f32 %v2081, 0.0
    %v2438 = vmax.f32 %v2084, 0.0
    %v2439 = vmax.f32 %v2089, 0.0
    %v2440 = vmax.f32 %v2092, 0.0
    %v2441 = vmax.f32 %v2097, 0.0
    %v2442 = vmax.f32 %v2100, 0.0
    %v2443 = vmax.f32 %v2105, 0.0
    %v2444 = vmax.f32 %v2108, 0.0
    %v2445 = vmax.f32 %v2113, 0.0
    %v2446 = vmax.f32 %v2116, 0.0
    %v2447 = vmax.f32 %v2121, 0.0
    %v2448 = vmax.f32 %v2124, 0.0
    %v2449 = vmax.f32 %v2129, 0.0
    %v2450 = vmax.f32 %v2132, 0.0
    %v2451 = vmax.f32 %v2137, 0.0
    %v2452 = vmax.f32 %v2140, 0.0
    %v2453 = vmax.f32 %v2145, 0.0
    %v2454 = vmax.f32 %v2148, 0.0
    %v2455 = vmax.f32 %v2153, 0.0
    %v2456 = vmax.f32 %v2156, 0.0
    %v2457 = vmax.f32 %v2161, 0.0
    %v2458 = vmax.f32 %v2164, 0.0
    %v2459 = vmax.f32 %v2169, 0.0
    %v2460 = vmax.f32 %v2172, 0.0
    %v2461 = vmax.f32 %v2177, 0.0
    %v2462 = vmax.f32 %v2180, 0.0
    %v2463 = vmax.f32 %v2185, 0.0
    %v2464 = vmax.f32 %v2188, 0.0
    %v2465 = vmax.f32 %v2193, 0.0
    %v2466 = vmax.f32 %v2196, 0.0
    %v2467 = vmax.f32 %v2201, 0.0
    %v2468 = vmax.f32 %v2204, 0.0
    %v2469 = vmax.f32 %v2209, 0.0
    %v2470 = vmax.f32 %v2212, 0.0
    %v2471 = vmin.f32 %v2215, 6.0
    %v2472 = vmin.f32 %v2216, 6.0
    %v2473 = vmin.f32 %v2217, 6.0
    %v2474 = vmin.f32 %v2218, 6.0
    %v2475 = vmin.f32 %v2219, 6.0
    %v2476 = vmin.f32 %v2220, 6.0
    %v2477 = vmin.f32 %v2221, 6.0
    %v2478 = vmin.f32 %v2222, 6.0
    %v2479 = vmin.f32 %v2223, 6.0
    %v2480 = vmin.f32 %v2224, 6.0
    %v2481 = vmin.f32 %v2225, 6.0
    %v2482 = vmin.f32 %v2226, 6.0
    %v2483 = vmin.f32 %v2227, 6.0
    %v2484 = vmin.f32 %v2228, 6.0
    %v2485 = vmin.f32 %v2229, 6.0
    %v2486 = vmin.f32 %v2230, 6.0
    %v2487 = vmin.f32 %v2231, 6.0
    %v2488 = vmin.f32 %v2232, 6.0
    %v2489 = vmin.f32 %v2233, 6.0
    %v2490 = vmin.f32 %v2234, 6.0
    %v2491 = vmin.f32 %v2235, 6.0
    %v2492 = vmin.f32 %v2236, 6.0
    %v2493 = vmin.f32 %v2237, 6.0
    %v2494 = vmin.f32 %v2238, 6.0
    %v2495 = vmin.f32 %v2239, 6.0
    %v2496 = vmin.f32 %v2240, 6.0
    %v2497 = vmin.f32 %v2241, 6.0
    %v2498 = vmin.f32 %v2242, 6.0
    %v2499 = vmin.f32 %v2243, 6.0
    %v2500 = vmin.f32 %v2244, 6.0
    %v2501 = vmin.f32 %v2245, 6.0
    %v2502 = vmin.f32 %v2246, 6.0
    %v2503 = vmin.f32 %v2247, 6.0
    %v2504 = vmin.f32 %v2248, 6.0
    %v2505 = vmin.f32 %v2249, 6.0
    %v2506 = vmin.f32 %v2250, 6.0
    %v2507 = vmin.f32 %v2251, 6.0
    %v2508 = vmin.f32 %v2252, 6.0
    %v2509 = vmin.f32 %v2253, 6.0
    %v2510 = vmin.f32 %v2254, 6.0
    %v2511 = vmin.f32 %v2255, 6.0
    %v2512 = vmin.f32 %v2256, 6.0
    %v2513 = vmin.f32 %v2257, 6.0
    %v2514 = vmin.f32 %v2258, 6.0
    %v2515 = vmin.f32 %v2259, 6.0
    %v2516 = vmin.f32 %v2260, 6.0
    %v2517 = vmin.f32 %v2261, 6.0
    %v2518 = vmin.f32 %v2262, 6.0
    %v2519 = vmin.f32 %v2263, 6.0
    %v2520 = vmin.f32 %v2264, 6.0
    %v2521 = vmin.f32 %v2265, 6.0
    %v2522 = vmin.f32 %v2266, 6.0
    %v2523 = vmin.f32 %v2267, 6.0
    %v2524 = vmin.f32 %v2268, 6.0
    %v2525 = vmin.f32 %v2269, 6.0
    %v2526 = vmin.f32 %v2270, 6.0
    %v2527 = vmin.f32 %v2271, 6.0
    %v2528 = vmin.f32 %v2272, 6.0
    %v2529 = vmin.f32 %v2273, 6.0
    %v2530 = vmin.f32 %v2274, 6.0
    %v2531 = vmin.f32 %v2275, 6.0
    %v2532 = vmin.f32 %v2276, 6.0
    %v2533 = vmin.f32 %v2277, 6.0
    %v2534 = vmin.f32 %v2278, 6.0
    %v2535 = vmin.f32 %v2279, 6.0
    %v2536 = vmin.f32 %v2280, 6.0
    %v2537 = vmin.f32 %v2281, 6.0
    %v2538 = vmin.f32 %v2282, 6.0
    %v2539 = vmin.f32 %v2283, 6.0
    %v2540 = vmin.f32 %v2284, 6.0
    %v2541 = vmin.f32 %v2285, 6.0
    %v2542 = vmin.f32 %v2286, 6.0
    %v2543 = vmin.f32 %v2287, 6.0
    %v2544 = vmin.f32 %v2288, 6.0
    %v2545 = vmin.f32 %v2289, 6.0
    %v2546 = vmin.f32 %v2290, 6.0
    %v2547 = vmin.f32 %v2291, 6.0
    %v2548 = vmin.f32 %v2292, 6.0
    %v2549 = vmin.f32 %v2293, 6.0
    %v2550 = vmin.f32 %v2294, 6.0
    %v2551 = vmin.f32 %v2295, 6.0
    %v2552 = vmin.f32 %v2296, 6.0
    %v2553 = vmin.f32 %v2297, 6.0
    %v2554 = vmin.f32 %v2298, 6.0
    %v2555 = vmin.f32 %v2299, 6.0
    %v2556 = vmin.f32 %v2300, 6.0
    %v2557 = vmin.f32 %v2301, 6.0
    %v2558 = vmin.f32 %v2302, 6.0
    %v2559 = vmin.f32 %v2303, 6.0
    %v2560 = vmin.f32 %v2304, 6.0
    %v2561 = vmin.f32 %v2305, 6.0
    %v2562 = vmin.f32 %v2306, 6.0
    %v2563 = vmin.f32 %v2307, 6.0
    %v2564 = vmin.f32 %v2308, 6.0
    %v2565 = vmin.f32 %v2309, 6.0
    %v2566 = vmin.f32 %v2310, 6.0
    %v2567 = vmin.f32 %v2311, 6.0
    %v2568 = vmin.f32 %v2312, 6.0
    %v2569 = vmin.f32 %v2313, 6.0
    %v2570 = vmin.f32 %v2314, 6.0
    %v2571 = vmin.f32 %v2315, 6.0
    %v2572 = vmin.f32 %v2316, 6.0
    %v2573 = vmin.f32 %v2317, 6.0
    %v2574 = vmin.f32 %v2318, 6.0
    %v2575 = vmin.f32 %v2319, 6.0
    %v2576 = vmin.f32 %v2320, 6.0
    %v2577 = vmin.f32 %v2321, 6.0
    %v2578 = vmin.f32 %v2322, 6.0
    %v2579 = vmin.f32 %v2323, 6.0
    %v2580 = vmin.f32 %v2324, 6.0
    %v2581 = vmin.f32 %v2325, 6.0
    %v2582 = vmin.f32 %v2326, 6.0
    %v2583 = vmin.f32 %v2327, 6.0
    %v2584 = vmin.f32 %v2328, 6.0
    %v2585 = vmin.f32 %v2329, 6.0
    %v2586 = vmin.f32 %v2330, 6.0
    %v2587 = vmin.f32 %v2331, 6.0
    %v2588 = vmin.f32 %v2332, 6.0
    %v2589 = vmin.f32 %v2333, 6.0
    %v2590 = vmin.f32 %v2334, 6.0
    %v2591 = vmin.f32 %v2335, 6.0
    %v2592 = vmin.f32 %v2336, 6.0
    %v2593 = vmin.f32 %v2337, 6.0
    %v2594 = vmin.f32 %v2338, 6.0
    %v2595 = vmin.f32 %v2339, 6.0
    %v2596 = vmin.f32 %v2340, 6.0
    %v2597 = vmin.f32 %v2341, 6.0
    %v2598 = vmin.f32 %v2342, 6.0
    %v2599 = vmin.f32 %v2343, 6.0
    %v2600 = vmin.f32 %v2344, 6.0
    %v2601 = vmin.f32 %v2345, 6.0
    %v2602 = vmin.f32 %v2346, 6.0
    %v2603 = vmin.f32 %v2347, 6.0
    %v2604 = vmin.f32 %v2348, 6.0
    %v2605 = vmin.f32 %v2349, 6.0
    %v2606 = vmin.f32 %v2350, 6.0
    %v2607 = vmin.f32 %v2351, 6.0
    %v2608 = vmin.f32 %v2352, 6.0
    %v2609 = vmin.f32 %v2353, 6.0
    %v2610 = vmin.f32 %v2354, 6.0
    %v2611 = vmin.f32 %v2355, 6.0
    %v2612 = vmin.f32 %v2356, 6.0
    %v2613 = vmin.f32 %v2357, 6.0
    %v2614 = vmin.f32 %v2358, 6.0
    %v2615 = vmin.f32 %v2359, 6.0
    %v2616 = vmin.f32 %v2360, 6.0
    %v2617 = vmin.f32 %v2361, 6.0
    %v2618 = vmin.f32 %v2362, 6.0
    %v2619 = vmin.f32 %v2363, 6.0
    %v2620 = vmin.f32 %v2364, 6.0
    %v2621 = vmin.f32 %v2365, 6.0
    %v2622 = vmin.f32 %v2366, 6.0
    %v2623 = vmin.f32 %v2367, 6.0
    %v2624 = vmin.f32 %v2368, 6.0
    %v2625 = vmin.f32 %v2369, 6.0
    %v2626 = vmin.f32 %v2370, 6.0
    %v2627 = vmin.f32 %v2371, 6.0
    %v2628 = vmin.f32 %v2372, 6.0
    %v2629 = vmin.f32 %v2373, 6.0
    %v2630 = vmin.f32 %v2374, 6.0
    %v2631 = vmin.f32 %v2375, 6.0
    %v2632 = vmin.f32 %v2376, 6.0
    %v2633 = vmin.f32 %v2377, 6.0
    %v2634 = vmin.f32 %v2378, 6.0
    %v2635 = vmin.f32 %v2379, 6.0
    %v2636 = vmin.f32 %v2380, 6.0
    %v2637 = vmin.f32 %v2381, 6.0
    %v2638 = vmin.f32 %v2382, 6.0
    %v2639 = vmin.f32 %v2383, 6.0
    %v2640 = vmin.f32 %v2384, 6.0
    %v2641 = vmin.f32 %v2385, 6.0
    %v2642 = vmin.f32 %v2386, 6.0
    %v2643 = vmin.f32 %v2387, 6.0
    %v2644 = vmin.f32 %v2388, 6.0
    %v2645 = vmin.f32 %v2389, 6.0
    %v2646 = vmin.f32 %v2390, 6.0
    %v2647 = vmin.f32 %v2391, 6.0
    %v2648 = vmin.f32 %v2392, 6.0
    %v2649 = vmin.f32 %v2393, 6.0
    %v2650 = vmin.f32 %v2394, 6.0
    %v2651 = vmin.f32 %v2395, 6.0
    %v2652 = vmin.f32 %v2396, 6.0
    %v2653 = vmin.f32 %v2397, 6.0
    %v2654 = vmin.f32 %v2398, 6.0
    %v2655 = vmin.f32 %v2399, 6.0
    %v2656 = vmin.f32 %v2400, 6.0
    %v2657 = vmin.f32 %v2401, 6.0
    %v2658 = vmin.f32 %v2402, 6.0
    %v2659 = vmin.f32 %v2403, 6.0
    %v2660 = vmin.f32 %v2404, 6.0
    %v2661 = vmin.f32 %v2405, 6.0
    %v2662 = vmin.f32 %v2406, 6.0
    %v2663 = vmin.f32 %v2407, 6.0
    %v2664 = vmin.f32 %v2408, 6.0
    %v2665 = vmin.f32 %v2409, 6.0
    %v2666 = vmin.f32 %v2410, 6.0
    %v2667 = vmin.f32 %v2411, 6.0
    %v2668 = vmin.f32 %v2412, 6.0
    %v2669 = vmin.f32 %v2413, 6.0
    %v2670 = vmin.f32 %v2414, 6.0
    %v2671 = vmin.f32 %v2415, 6.0
    %v2672 = vmin.f32 %v2416, 6.0
    %v2673 = vmin.f32 %v2417, 6.0
    %v2674 = vmin.f32 %v2418, 6.0
    %v2675 = vmin.f32 %v2419, 6.0
    %v2676 = vmin.f32 %v2420, 6.0
    %v2677 = vmin.f32 %v2421, 6.0
    %v2678 = vmin.f32 %v2422, 6.0
    %v2679 = vmin.f32 %v2423, 6.0
    %v2680 = vmin.f32 %v2424, 6.0
    %v2681 = vmin.f32 %v2425, 6.0
    %v2682 = vmin.f32 %v2426, 6.0
    %v2683 = vmin.f32 %v2427, 6.0
    %v2684 = vmin.f32 %v2428, 6.0
    %v2685 = vmin.f32 %v2429, 6.0
    %v2686 = vmin.f32 %v2430, 6.0
    %v2687 = vmin.f32 %v2431, 6.0
    %v2688 = vmin.f32 %v2432, 6.0
    %v2689 = vmin.f32 %v2433, 6.0
    %v2690 = vmin.f32 %v2434, 6.0
    %v2691 = vmin.f32 %v2435, 6.0
    %v2692 = vmin.f32 %v2436, 6.0
    %v2693 = vmin.f32 %v2437, 6.0
    %v2694 = vmin.f32 %v2438, 6.0
    %v2695 = vmin.f32 %v2439, 6.0
    %v2696 = vmin.f32 %v2440, 6.0
    %v2697 = vmin.f32 %v2441, 6.0
    %v2698 = vmin.f32 %v2442, 6.0
    %v2699 = vmin.f32 %v2443, 6.0
    %v2700 = vmin.f32 %v2444, 6.0
    %v2701 = vmin.f32 %v2445, 6.0
    %v2702 = vmin.f32 %v2446, 6.0
    %v2703 = vmin.f32 %v2447, 6.0
    %v2704 = vmin.f32 %v2448, 6.0
    %v2705 = vmin.f32 %v2449, 6.0
    %v2706 = vmin.f32 %v2450, 6.0
    %v2707 = vmin.f32 %v2451, 6.0
    %v2708 = vmin.f32 %v2452, 6.0
    %v2709 = vmin.f32 %v2453, 6.0
    %v2710 = vmin.f32 %v2454, 6.0
    %v2711 = vmin.f32 %v2455, 6.0
    %v2712 = vmin.f32 %v2456, 6.0
    %v2713 = vmin.f32 %v2457, 6.0
    %v2714 = vmin.f32 %v2458, 6.0
    %v2715 = vmin.f32 %v2459, 6.0
    %v2716 = vmin.f32 %v2460, 6.0
    %v2717 = vmin.f32 %v2461, 6.0
    %v2718 = vmin.f32 %v2462, 6.0
    %v2719 = vmin.f32 %v2463, 6.0
    %v2720 = vmin.f32 %v2464, 6.0
    %v2721 = vmin.f32 %v2465, 6.0
    %v2722 = vmin.f32 %v2466, 6.0
    %v2723 = vmin.f32 %v2467, 6.0
    %v2724 = vmin.f32 %v2468, 6.0
    %v2725 = vmin.f32 %v2469, 6.0
    %v2726 = vmin.f32 %v2470, 6.0
    %v2727 = vadd.f32 %v2471, %v2472
    %v2728 = vadd.f32 %v2727, %v2473
    %v2729 = vadd.f32 %v2728, %v2474
    %v2730 = vadd.f32 %v2729, %v2475
    %v2731 = vadd.f32 %v2730, %v2476
    %v2732 = vadd.f32 %v2731, %v2477
    %v2733 = vadd.f32 %v2732, %v2478
    %v2734 = vadd.f32 %v2733, %v2479
    %v2735 = vadd.f32 %v2734, %v2480
    %v2736 = vadd.f32 %v2735, %v2481
    %v2737 = vadd.f32 %v2736, %v2482
    %v2738 = vadd.f32 %v2737, %v2483
    %v2739 = vadd.f32 %v2738, %v2484
    %v2740 = vadd.f32 %v2739, %v2485
    %v2741 = vadd.f32 %v2740, %v2486
    %v2742 = vadd.f32 %v2741, %v2487
    %v2743 = vadd.f32 %v2742, %v2488
    %v2744 = vadd.f32 %v2743, %v2489
    %v2745 = vadd.f32 %v2744, %v2490
    %v2746 = vadd.f32 %v2745, %v2491
    %v2747 = vadd.f32 %v2746, %v2492
    %v2748 = vadd.f32 %v2747, %v2493
    %v2749 = vadd.f32 %v2748, %v2494
    %v2750 = vadd.f32 %v2749, %v2495
    %v2751 = vadd.f32 %v2750, %v2496
    %v2752 = vadd.f32 %v2751, %v2497
    %v2753 = vadd.f32 %v2752, %v2498
    %v2754 = vadd.f32 %v2753, %v2499
    %v2755 = vadd.f32 %v2754, %v2500
    %v2756 = vadd.f32 %v2755, %v2501
    %v2757 = vadd.f32 %v2756, %v2502
    %v2758 = vrot.slane %v2757, 4
    %v2759 = vadd.f32 %v2757, %v2758
    %v2760 = vrot.slane %v2759, 2
    %v2761 = vadd.f32 %v2759, %v2760
    %v2762 = vrot.slane %v2761, 1
    %v2763 = vadd.f32 %v2761, %v2762
    %v2764 = vadd.f32 %v2503, %v2504
    %v2765 = vadd.f32 %v2764, %v2505
    %v2766 = vadd.f32 %v2765, %v2506
    %v2767 = vadd.f32 %v2766, %v2507
    %v2768 = vadd.f32 %v2767, %v2508
    %v2769 = vadd.f32 %v2768, %v2509
    %v2770 = vadd.f32 %v2769, %v2510
    %v2771 = vadd.f32 %v2770, %v2511
    %v2772 = vadd.f32 %v2771, %v2512
    %v2773 = vadd.f32 %v2772, %v2513
    %v2774 = vadd.f32 %v2773, %v2514
    %v2775 = vadd.f32 %v2774, %v2515
    %v2776 = vadd.f32 %v2775, %v2516
    %v2777 = vadd.f32 %v2776, %v2517
    %v2778 = vadd.f32 %v2777, %v2518
    %v2779 = vadd.f32 %v2778, %v2519
    %v2780 = vadd.f32 %v2779, %v2520
    %v2781 = vadd.f32 %v2780, %v2521
    %v2782 = vadd.f32 %v2781, %v2522
    %v2783 = vadd.f32 %v2782, %v2523
    %v2784 = vadd.f32 %v2783, %v2524
    %v2785 = vadd.f32 %v2784, %v2525
    %v2786 = vadd.f32 %v2785, %v2526
    %v2787 = vadd.f32 %v2786, %v2527
    %v2788 = vadd.f32 %v2787, %v2528
    %v2789 = vadd.f32 %v2788, %v2529
    %v2790 = vadd.f32 %v2789, %v2530
    %v2791 = vadd.f32 %v2790, %v2531
    %v2792 = vadd.f32 %v2791, %v2532
    %v2793 = vadd.f32 %v2792, %v2533
    %v2794 = vadd.f32 %v2793, %v2534
    %v2795 = vrot.slane %v2794, 4
    %v2796 = vadd.f32 %v2794, %v2795
    %v2797 = vrot.slane %v2796, 2
    %v2798 = vadd.f32 %v2796, %v2797
    %v2799 = vrot.slane %v2798, 1
    %v2800 = vadd.f32 %v2798, %v2799
    %v2801 = vadd.f32 %v2535, %v2536
    %v2802 = vadd.f32 %v2801, %v2537
    %v2803 = vadd.f32 %v2802, %v2538
    %v2804 = vadd.f32 %v2803, %v2539
    %v2805 = vadd.f32 %v2804, %v2540
    %v2806 = vadd.f32 %v2805, %v2541
    %v2807 = vadd.f32 %v2806, %v2542
    %v2808 = vadd.f32 %v2807, %v2543
    %v2809 = vadd.f32 %v2808, %v2544
    %v2810 = vadd.f32 %v2809, %v2545
    %v2811 = vadd.f32 %v2810, %v2546
    %v2812 = vadd.f32 %v2811, %v2547
    %v2813 = vadd.f32 %v2812, %v2548
    %v2814 = vadd.f32 %v2813, %v2549
    %v2815 = vadd.f32 %v2814, %v2550
    %v2816 = vadd.f32 %v2815, %v2551
    %v2817 = vadd.f32 %v2816, %v2552
    %v2818 = vadd.f32 %v2817, %v2553
    %v2819 = vadd.f32 %v2818, %v2554
    %v2820 = vadd.f32 %v2819, %v2555
    %v2821 = vadd.f32 %v2820, %v2556
    %v2822 = vadd.f32 %v2821, %v2557
    %v2823 = vadd.f32 %v2822, %v2558
    %v2824 = vadd.f32 %v2823, %v2559
    %v2825 = vadd.f32 %v2824, %v2560
    %v2826 = vadd.f32 %v2825, %v2561
    %v2827 = vadd.f32 %v2826, %v2562
    %v2828 = vadd.f32 %v2827, %v2563
    %v2829 = vadd.f32 %v2828, %v2564
    %v2830 = vadd.f32 %v2829, %v2565
    %v2831 = vadd.f32 %v2830, %v2566
    %v2832 = vrot.slane %v2831, 4
    %v2833 = vadd.f32 %v2831, %v2832
    %v2834 = vrot.slane %v2833, 2
    %v2835 = vadd.f32 %v2833, %v2834
    %v2836 = vrot.slane %v2835, 1
    %v2837 = vadd.f32 %v2835, %v2836
    %v2838 = vadd.f32 %v2567, %v2568
    %v2839 = vadd.f32 %v2838, %v2569
    %v2840 = vadd.f32 %v2839, %v2570
    %v2841 = vadd.f32 %v2840, %v2571
    %v2842 = vadd.f32 %v2841, %v2572
    %v2843 = vadd.f32 %v2842, %v2573
    %v2844 = vadd.f32 %v2843, %v2574
    %v2845 = vadd.f32 %v2844, %v2575
    %v2846 = vadd.f32 %v2845, %v2576
    %v2847 = vadd.f32 %v2846, %v2577
    %v2848 = vadd.f32 %v2847, %v2578
    %v2849 = vadd.f32 %v2848, %v2579
    %v2850 = vadd.f32 %v2849, %v2580
    %v2851 = vadd.f32 %v2850, %v2581
    %v2852 = vadd.f32 %v2851, %v2582
    %v2853 = vadd.f32 %v2852, %v2583
    %v2854 = vadd.f32 %v2853, %v2584
    %v2855 = vadd.f32 %v2854, %v2585
    %v2856 = vadd.f32 %v2855, %v2586
    %v2857 = vadd.f32 %v2856, %v2587
    %v2858 = vadd.f32 %v2857, %v2588
    %v2859 = vadd.f32 %v2858, %v2589
    %v2860 = vadd.f32 %v2859, %v2590
    %v2861 = vadd.f32 %v2860, %v2591
    %v2862 = vadd.f32 %v2861, %v2592
    %v2863 = vadd.f32 %v2862, %v2593
    %v2864 = vadd.f32 %v2863, %v2594
    %v2865 = vadd.f32 %v2864, %v2595
    %v2866 = vadd.f32 %v2865, %v2596
    %v2867 = vadd.f32 %v2866, %v2597
    %v2868 = vadd.f32 %v2867, %v2598
    %v2869 = vrot.slane %v2868, 4
    %v2870 = vadd.f32 %v2868, %v2869
    %v2871 = vrot.slane %v2870, 2
    %v2872 = vadd.f32 %v2870, %v2871
    %v2873 = vrot.slane %v2872, 1
    %v2874 = vadd.f32 %v2872, %v2873
    %v2875 = vadd.f32 %v2599, %v2600
    %v2876 = vadd.f32 %v2875, %v2601
    %v2877 = vadd.f32 %v2876, %v2602
    %v2878 = vadd.f32 %v2877, %v2603
    %v2879 = vadd.f32 %v2878, %v2604
    %v2880 = vadd.f32 %v2879, %v2605
    %v2881 = vadd.f32 %v2880, %v2606
    %v2882 = vadd.f32 %v2881, %v2607
    %v2883 = vadd.f32 %v2882, %v2608
    %v2884 = vadd.f32 %v2883, %v2609
    %v2885 = vadd.f32 %v2884, %v2610
    %v2886 = vadd.f32 %v2885, %v2611
    %v2887 = vadd.f32 %v2886, %v2612
    %v2888 = vadd.f32 %v2887, %v2613
    %v2889 = vadd.f32 %v2888, %v2614
    %v2890 = vadd.f32 %v2889, %v2615
    %v2891 = vadd.f32 %v2890, %v2616
    %v2892 = vadd.f32 %v2891, %v2617
    %v2893 = vadd.f32 %v2892, %v2618
    %v2894 = vadd.f32 %v2893, %v2619
    %v2895 = vadd.f32 %v2894, %v2620
    %v2896 = vadd.f32 %v2895, %v2621
    %v2897 = vadd.f32 %v2896, %v2622
    %v2898 = vadd.f32 %v2897, %v2623
    %v2899 = vadd.f32 %v2898, %v2624
    %v2900 = vadd.f32 %v2899, %v2625
    %v2901 = vadd.f32 %v2900, %v2626
    %v2902 = vadd.f32 %v2901, %v2627
    %v2903 = vadd.f32 %v2902, %v2628
    %v2904 = vadd.f32 %v2903, %v2629
    %v2905 = vadd.f32 %v2904, %v2630
    %v2906 = vrot.slane %v2905, 4
    %v2907 = vadd.f32 %v2905, %v2906
    %v2908 = vrot.slane %v2907, 2
    %v2909 = vadd.f32 %v2907, %v2908
    %v2910 = vrot.slane %v2909, 1
    %v2911 = vadd.f32 %v2909, %v2910
    %v2912 = vadd.f32 %v2631, %v2632
    %v2913 = vadd.f32 %v2912, %v2633
    %v2914 = vadd.f32 %v2913, %v2634
    %v2915 = vadd.f32 %v2914, %v2635
    %v2916 = vadd.f32 %v2915, %v2636
    %v2917 = vadd.f32 %v2916, %v2637
    %v2918 = vadd.f32 %v2917, %v2638
    %v2919 = vadd.f32 %v2918, %v2639
    %v2920 = vadd.f32 %v2919, %v2640
    %v2921 = vadd.f32 %v2920, %v2641
    %v2922 = vadd.f32 %v2921, %v2642
    %v2923 = vadd.f32 %v2922, %v2643
    %v2924 = vadd.f32 %v2923, %v2644
    %v2925 = vadd.f32 %v2924, %v2645
    %v2926 = vadd.f32 %v2925, %v2646
    %v2927 = vadd.f32 %v2926, %v2647
    %v2928 = vadd.f32 %v2927, %v2648
    %v2929 = vadd.f32 %v2928, %v2649
    %v2930 = vadd.f32 %v2929, %v2650
    %v2931 = vadd.f32 %v2930, %v2651
    %v2932 = vadd.f32 %v2931, %v2652
    %v2933 = vadd.f32 %v2932, %v2653
    %v2934 = vadd.f32 %v2933, %v2654
    %v2935 = vadd.f32 %v2934, %v2655
    %v2936 = vadd.f32 %v2935, %v2656
    %v2937 = vadd.f32 %v2936, %v2657
    %v2938 = vadd.f32 %v2937, %v2658
    %v2939 = vadd.f32 %v2938, %v2659
    %v2940 = vadd.f32 %v2939, %v2660
    %v2941 = vadd.f32 %v2940, %v2661
    %v2942 = vadd.f32 %v2941, %v2662
    %v2943 = vrot.slane %v2942, 4
    %v2944 = vadd.f32 %v2942, %v2943
    %v2945 = vrot.slane %v2944, 2
    %v2946 = vadd.f32 %v2944, %v2945
    %v2947 = vrot.slane %v2946, 1
    %v2948 = vadd.f32 %v2946, %v2947
    %v2949 = vadd.f32 %v2663, %v2664
    %v2950 = vadd.f32 %v2949, %v2665
    %v2951 = vadd.f32 %v2950, %v2666
    %v2952 = vadd.f32 %v2951, %v2667
    %v2953 = vadd.f32 %v2952, %v2668
    %v2954 = vadd.f32 %v2953, %v2669
    %v2955 = vadd.f32 %v2954, %v2670
    %v2956 = vadd.f32 %v2955, %v2671
    %v2957 = vadd.f32 %v2956, %v2672
    %v2958 = vadd.f32 %v2957, %v2673
    %v2959 = vadd.f32 %v2958, %v2674
    %v2960 = vadd.f32 %v2959, %v2675
    %v2961 = vadd.f32 %v2960, %v2676
    %v2962 = vadd.f32 %v2961, %v2677
    %v2963 = vadd.f32 %v2962, %v2678
    %v2964 = vadd.f32 %v2963, %v2679
    %v2965 = vadd.f32 %v2964, %v2680
    %v2966 = vadd.f32 %v2965, %v2681
    %v2967 = vadd.f32 %v2966, %v2682
    %v2968 = vadd.f32 %v2967, %v2683
    %v2969 = vadd.f32 %v2968, %v2684
    %v2970 = vadd.f32 %v2969, %v2685
    %v2971 = vadd.f32 %v2970, %v2686
    %v2972 = vadd.f32 %v2971, %v2687
    %v2973 = vadd.f32 %v2972, %v2688
    %v2974 = vadd.f32 %v2973, %v2689
    %v2975 = vadd.f32 %v2974, %v2690
    %v2976 = vadd.f32 %v2975, %v2691
    %v2977 = vadd.f32 %v2976, %v2692
    %v2978 = vadd.f32 %v2977, %v2693
    %v2979 = vadd.f32 %v2978, %v2694
    %v2980 = vrot.slane %v2979, 4
    %v2981 = vadd.f32 %v2979, %v2980
    %v2982 = vrot.slane %v2981, 2
    %v2983 = vadd.f32 %v2981, %v2982
    %v2984 = vrot.slane %v2983, 1
    %v2985 = vadd.f32 %v2983, %v2984
    %v2986 = vadd.f32 %v2695, %v2696
    %v2987 = vadd.f32 %v2986, %v2697
    %v2988 = vadd.f32 %v2987, %v2698
    %v2989 = vadd.f32 %v2988, %v2699
    %v2990 = vadd.f32 %v2989, %v2700
    %v2991 = vadd.f32 %v2990, %v2701
    %v2992 = vadd.f32 %v2991, %v2702
    %v2993 = vadd.f32 %v2992, %v2703
    %v2994 = vadd.f32 %v2993, %v2704
    %v2995 = vadd.f32 %v2994, %v2705
    %v2996 = vadd.f32 %v2995, %v2706
    %v2997 = vadd.f32 %v2996, %v2707
    %v2998 = vadd.f32 %v2997, %v2708
    %v2999 = vadd.f32 %v2998, %v2709
    %v3000 = vadd.f32 %v2999, %v2710
    %v3001 = vadd.f32 %v3000, %v2711
    %v3002 = vadd.f32 %v3001, %v2712
    %v3003 = vadd.f32 %v3002, %v2713
    %v3004 = vadd.f32 %v3003, %v2714
    %v3005 = vadd.f32 %v3004, %v2715
    %v3006 = vadd.f32 %v3005, %v2716
    %v3007 = vadd.f32 %v3006, %v2717
    %v3008 = vadd.f32 %v3007, %v2718
    %v3009 = vadd.f32 %v3008, %v2719
    %v3010 = vadd.f32 %v3009, %v2720
    %v3011 = vadd.f32 %v3010, %v2721
    %v3012 = vadd.f32 %v3011, %v2722
    %v3013 = vadd.f32 %v3012, %v2723
    %v3014 = vadd.f32 %v3013, %v2724
    %v3015 = vadd.f32 %v3014, %v2725
    %v3016 = vadd.f32 %v3015, %v2726
    %v3017 = vrot.slane %v3016, 4
    %v3018 = vadd.f32 %v3016, %v3017
    %v3019 = vrot.slane %v3018, 2
    %v3020 = vadd.f32 %v3018, %v3019
    %v3021 = vrot.slane %v3020, 1
    %v3022 = vadd.f32 %v3020, %v3021
    %v3023 = vmul.f32 %v2763, 0.00390625
    %v3024 = vmul.f32 %v2800, 0.00390625
    %v3025 = vmul.f32 %v2837, 0.00390625
    %v3026 = vmul.f32 %v2874, 0.00390625
    %v3027 = vmul.f32 %v2911, 0.00390625
    %v3028 = vmul.f32 %v2948, 0.00390625
    %v3029 = vmul.f32 %v2985, 0.00390625
    %v3030 = vmul.f32 %v3022, 0.00390625
    %v3031 = vpack.c.bf16 %v3023, %v3023
    %v3032 = vpack.c.bf16 %v3024, %v3024
    %v3033 = vpack.c.bf16 %v3025, %v3025
    %v3034 = vpack.c.bf16 %v3026, %v3026
    %v3035 = vpack.c.bf16 %v3027, %v3027
    %v3036 = vpack.c.bf16 %v3028, %v3028
    %v3037 = vpack.c.bf16 %v3029, %v3029
    %v3038 = vpack.c.bf16 %v3030, %v3030
    %v3039 = vld [vmem:[#allocation7] sm:$0xf]
    %v3040 = vld [vmem:[#allocation7 + $0x4] sm:$0xf]
    %v3041 = vld [vmem:[#allocation7 + $0x8] sm:$0xf]
    %v3042 = vld [vmem:[#allocation7 + $0xc] sm:$0xf]
    %v3043 = vld [vmem:[#allocation7 + $0x10] sm:$0xf]
    %v3044 = vld [vmem:[#allocation7 + $0x14] sm:$0xf]
    %v3045 = vld [vmem:[#allocation7 + $0x18] sm:$0xf]
    %v3046 = vld [vmem:[#allocation7 + $0x1c] sm:$0xf]
    %v3047 = vld [vmem:[#allocation7 + $0x20] sm:$0xf]
    %v3048 = vld [vmem:[#allocation7 + $0x24] sm:$0xf]
    %v3049 = vld [vmem:[#allocation7 + $0x28] sm:$0xf]
    %v3050 = vld [vmem:[#allocation7 + $0x2c] sm:$0xf]
    %v3051 = vld [vmem:[#allocation7 + $0x30] sm:$0xf]
    %v3052 = vld [vmem:[#allocation7 + $0x34] sm:$0xf]
    %v3053 = vld [vmem:[#allocation7 + $0x38] sm:$0xf]
    %v3054 = vld [vmem:[#allocation7 + $0x3c] sm:$0xf]
    %v3055 = vld [vmem:[%s4] sm:$0x1]
    %v3057 = vlaneseq
    %v3058 = vshrl.u32 %v3057, 7
    %v3059 = vsub.s32 0, %v3058
    %v3060 = vrot.slane %v3055, %v3059
    %v3070 = vunpack.c.l.b16 %v3031
    %v3071 = vunpack.c.l.b16 %v3032
    %v3072 = vunpack.c.l.b16 %v3033
    %v3073 = vunpack.c.l.b16 %v3034
    %v3074 = vunpack.c.l.b16 %v3035
    %v3075 = vunpack.c.l.b16 %v3036
    %v3076 = vunpack.c.l.b16 %v3037
    %v3077 = vunpack.c.l.b16 %v3038
    %vm3078 = vcmask 1041409
    %v3079 = vsel %vm3078, %v3071, %v3070
    %vm3080 = vcmask 1042434
    %v3081 = vsel %vm3080, %v3072, %v3079
    %vm3082 = vcmask 1043459
    %v3083 = vsel %vm3082, %v3073, %v3081
    %vm3084 = vcmask 1044484
    %v3085 = vsel %vm3084, %v3074, %v3083
    %vm3086 = vcmask 1045509
    %v3087 = vsel %vm3086, %v3075, %v3085
    %vm3088 = vcmask 1046534
    %v3089 = vsel %vm3088, %v3076, %v3087
    %vm3090 = vcmask 1047559
    %v3091 = vsel %vm3090, %v3077, %v3089
    %v3092 = vpack.c.b16 %v3091, %v3091
    %v3110 = vunpack.c.l.b16 %v3039
    %v3111 = vunpack.c.l.b16 %v3040
    %v3112 = vunpack.c.l.b16 %v3041
    %v3113 = vunpack.c.l.b16 %v3042
    %v3114 = vunpack.c.l.b16 %v3043
    %v3115 = vunpack.c.l.b16 %v3044
    %v3116 = vunpack.c.l.b16 %v3045
    %v3117 = vunpack.c.l.b16 %v3046
    %v3118 = vunpack.c.l.b16 %v3047
    %v3119 = vunpack.c.l.b16 %v3048
    %v3120 = vunpack.c.l.b16 %v3049
    %v3121 = vunpack.c.l.b16 %v3050
    %v3122 = vunpack.c.l.b16 %v3051
    %v3123 = vunpack.c.l.b16 %v3052
    %v3124 = vunpack.c.l.b16 %v3053
    %v3125 = vunpack.c.l.b16 %v3054
    %v3126 = vpack.c.b16 %v3111, %v3110
    %v3127 = vpack.c.b16 %v3113, %v3112
    %v3128 = vpack.c.b16 %v3115, %v3114
    %v3129 = vpack.c.b16 %v3117, %v3116
    %v3130 = vpack.c.b16 %v3119, %v3118
    %v3131 = vpack.c.b16 %v3121, %v3120
    %v3132 = vpack.c.b16 %v3123, %v3122
    %v3133 = vpack.c.b16 %v3125, %v3124
    %3142 = vmatprep.subr.bf16.mxu0 0
    %3143 = vmatpush1.bf16.msra.mxu0 %v3126
    %3144 = vmatprep.subr.bf16.mxu0 0
    %3145 = vmatpush1.bf16.msra.mxu0 %v3127
    %3146 = vmatprep.subr.bf16.mxu0 0
    %3147 = vmatpush1.bf16.msra.mxu0 %v3128
    %3148 = vmatprep.subr.bf16.mxu0 0
    %3149 = vmatpush1.bf16.msra.mxu0 %v3129
    %3150 = vmatprep.subr.bf16.mxu0 0
    %3151 = vmatpush1.bf16.msra.mxu0 %v3130
    %3152 = vmatprep.subr.bf16.mxu0 0
    %3153 = vmatpush1.bf16.msra.mxu0 %v3131
    %3154 = vmatprep.subr.bf16.mxu0 0
    %3155 = vmatpush1.bf16.msra.mxu0 %v3132
    %3156 = vmatprep.subr.bf16.mxu0 0
    %3157 = vmatpush1.bf16.msra.mxu0 %v3133
    %3158 = vmatprep.subr.bf16.mxu0 0
    %3159 = vmatpush1.bf16.msra.mxu0 0
    %3160 = vmatprep.subr.bf16.mxu0 0
    %3161 = vmatpush1.bf16.msra.mxu0 0
    %3162 = vmatprep.subr.bf16.mxu0 0
    %3163 = vmatpush1.bf16.msra.mxu0 0
    %3164 = vmatprep.subr.bf16.mxu0 0
    %3165 = vmatpush1.bf16.msra.mxu0 0
    %3166 = vmatprep.subr.bf16.mxu0 0
    %3167 = vmatpush1.bf16.msra.mxu0 0
    %3168 = vmatprep.subr.bf16.mxu0 0
    %3169 = vmatpush1.bf16.msra.mxu0 0
    %3170 = vmatprep.subr.bf16.mxu0 0
    %3171 = vmatpush1.bf16.msra.mxu0 0
    %3172 = vmatprep.subr.bf16.mxu0 0
    %3173 = vmatpush1.bf16.msra.mxu0 0
    %3174 = vmatprep.mubr.bf16.mxu0 0
    %3175 = vmatmul.mubr.bf16.gmra.mrb[0].mxu0 %v3092
    %v3176 = vpop.f32.mrb[0].mxu0
    %v3177 = vadd.f32 %v3060, %v3176
    %v3178 = vpop.f32.mrb[0].mxu0
    %v3179 = vpop.f32.mrb[0].mxu0
    %v3180 = vpop.f32.mrb[0].mxu0
    %3181 = vdwg.mxu0
    %v3182 = vmul.f32 %v3177, %v3177
    %3183 = vadd.xlane.f32.xlu0 %v3182
    %v3184 = vpop.xlane.xlu0 %3183
    %v3185 = vmax.f32 %v3184, 1e-30
    %v3186 = vrsqrt.pop %v3185
    %v3187 = vmul.f32 %v3177, %v3186
    %3188 = vst [vmem:[#allocation8] sm:$0xff] %v3187
    // Predicated region
    $region34: #{tpu_custom_call.1} parent=1 // pred_check
      _
    $region35: #{tpu_custom_call.1} parent=1 // pred_check_branch
      %3190 = sbr.rel (0) target = $region37
    $region36: #{tpu_custom_call.1} parent=1 // pred_region
      %s3192 = ssub.s32 128, 128
      %3193 = vsyncadd [#allocation4], %s3192
      %s3195 = sshll.u32 [#allocation8], 4
      %s3196 = int_to_ptr.vmem [resolvable:$true] %s3195
      %3198 = dma.vmem_to_hbm [thread:$0]  %s3196, 128, %s5, [#allocation4]
    $region37: #{tpu_custom_call.1} parent=1 // pred_fallthru
      _
    // Predicated region
    $region38: #{tpu_custom_call.1} parent=1 // pred_check
      _
    $region39: #{tpu_custom_call.1} parent=1 // pred_check_branch
      %3200 = sbr.rel (0) target = $region41
    $region40: #{tpu_custom_call.1} parent=1 // pred_region
      %3201 = dma.done [#allocation4], 128
    $region41: #{tpu_custom_call.1} parent=1 // pred_fallthru
      _
    %3202 = vsyncpa [#allocation3], 1
    %3203 = vsyncpa [#allocation6], 1
    %3204 = vsyncpa [#allocation4], 1

</llo_original>
